<compile_context>
chip_gen: v7x
topology: tpu7x:2x2x1
jax: 0.10.0
libtpu: 0.0.40
codegen_flags: <defaults>
</compile_context>

<pallas_src>
import jax
import jax.numpy as jnp
from jax import lax
from jax.experimental import pallas as pl
from jax.experimental.pallas import tpu as pltpu


def _round_up(x, m):
    return ((x + m - 1) // m) * m


def _largest_tile(n, cap, mult):
    """Largest multiple of `mult` that divides n and is <= cap (requires n % mult == 0)."""
    best = mult
    d = mult
    lim = min(n, cap)
    while d <= lim:
        if n % d == 0:
            best = d
        d += mult
    return best


# ------------------------- Fused stacked-LSTM kernel -------------------------
def _stacked_lstm_kernel(x_ref, wih_ref, whh_ref, b_ref, out_ref,
                         xbuf, gbuf, h_st, c_st):
    """All layers and all timesteps of the stacked LSTM in one kernel.

    Shapes (all padded):
      x_ref   : (T1, Bp, P)     layer-0 inputs (features + embeddings)
      wih_ref : (L,  P, 4*Hp)   input->gate weights (gate order i, f, g, o)
      whh_ref : (L, Hp, 4*Hp)   hidden->gate weights
      b_ref   : (L,  1, 4*Hp)   combined bias (b_ih + b_hh)
      out_ref : (T1, Bp, Hp)    last-layer hidden states
    Scratch:
      xbuf    : (T1, Bp, P)     current layer's input / activations (VMEM)
      gbuf    : (T1, Bp, 4*Hp)  hoisted input-projection gates (VMEM)
      h_st, c_st : (Bp, Hp)     recurrent state (VMEM)
    """
    T1, Bp, P = xbuf.shape
    L = wih_ref.shape[0]
    Hp = whh_ref.shape[1]

    xbuf[...] = x_ref[...]

    for l in range(L):  # static: unrolled over layers, activations stay in VMEM
        # Hoisted input projection: one big MXU matmul over all timesteps.
        xg = (
            jnp.dot(xbuf[...].reshape(T1 * Bp, P), wih_ref[l],
                    preferred_element_type=jnp.float32)
            + b_ref[l]
        )
        gbuf[...] = xg.reshape(T1, Bp, 4 * Hp)

        h_st[...] = jnp.zeros_like(h_st)
        c_st[...] = jnp.zeros_like(c_st)
        w_hh = whh_ref[l]          # (Hp, 4*Hp), hoisted out of the time loop
        last = (l == L - 1)

        def step(t, w_hh=w_hh, last=last):
            gates = gbuf[t] + jnp.dot(h_st[...], w_hh,
                                      preferred_element_type=jnp.float32)
            # Hp % 128 == 0 -> each gate slice is 128-lane aligned (free view).
            i = jax.nn.sigmoid(gates[:, 0 * Hp:1 * Hp])
            f = jax.nn.sigmoid(gates[:, 1 * Hp:2 * Hp])
            g = jnp.tanh(gates[:, 2 * Hp:3 * Hp])
            o = jax.nn.sigmoid(gates[:, 3 * Hp:4 * Hp])
            c_new = f * c_st[...] + i * g
            h_new = o * jnp.tanh(c_new)
            c_st[...] = c_new
            h_st[...] = h_new
            if last:
                out_ref[t] = h_new        # write final layer straight to output
            else:
                xbuf[t, :, 0:Hp] = h_new  # becomes next layer's input

        if T1 <= 32:
            # Short fixed trip count: fully unrolled, static indices.
            for t in range(T1):
                step(t)
        else:
            def body(t, carry):
                step(t)
                return carry
            lax.fori_loop(0, T1, body, 0)


def stacked_lstm(x, wih, whh, bias):
    """x: (T1, Bp, P) -> (T1, Bp, Hp). Weights stacked over layers."""
    T1, Bp, P = x.shape
    L, Hp, H4 = whh.shape
    return pl.pallas_call(
        _stacked_lstm_kernel,
        out_shape=jax.ShapeDtypeStruct((T1, Bp, Hp), jnp.float32),
        grid=(1,),
        in_specs=[
            pl.BlockSpec((T1, Bp, P), lambda i: (0, 0, 0)),
            pl.BlockSpec((L, P, H4), lambda i: (0, 0, 0)),
            pl.BlockSpec((L, Hp, H4), lambda i: (0, 0, 0)),
            pl.BlockSpec((L, 1, H4), lambda i: (0, 0, 0)),
        ],
        out_specs=pl.BlockSpec((T1, Bp, Hp), lambda i: (0, 0, 0)),
        scratch_shapes=[
            pltpu.VMEM((T1, Bp, P), jnp.float32),    # layer activations
            pltpu.VMEM((T1, Bp, H4), jnp.float32),   # hoisted input gates
            pltpu.VMEM((Bp, Hp), jnp.float32),       # h state
            pltpu.VMEM((Bp, Hp), jnp.float32),       # c state
        ],
        compiler_params=pltpu.CompilerParams(
            dimension_semantics=("arbitrary",),      # recurrence is serial
        ),
    )(x, wih, whh, bias)


# ---------------------------- Tiled linear kernel -----------------------------
def _linear_kernel(x_ref, w_ref, b_ref, o_ref):
    o_ref[...] = (
        jnp.dot(x_ref[...], w_ref[...], preferred_element_type=jnp.float32)
        + b_ref[...]
    )


def linear(x, w, b, tm, tn):
    """x: (N, Hp), w: (Hp, Vp), b: (1, Vp) -> (N, Vp). Tiled over (rows, vocab)."""
    N, Hp = x.shape
    Vp = w.shape[1]
    return pl.pallas_call(
        _linear_kernel,
        out_shape=jax.ShapeDtypeStruct((N, Vp), jnp.float32),
        grid=(N // tm, Vp // tn),
        in_specs=[
            pl.BlockSpec((tm, Hp), lambda i, j: (i, 0)),
            pl.BlockSpec((Hp, tn), lambda i, j: (0, j)),
            pl.BlockSpec((1, tn), lambda i, j: (0, j)),
        ],
        out_specs=pl.BlockSpec((tm, tn), lambda i, j: (i, j)),
        compiler_params=pltpu.CompilerParams(
            dimension_semantics=("parallel", "parallel"),  # megacore-shardable
        ),
    )(x, w, b)


# ------------------------------- Parameter init --------------------------------
def init_params(key, embed_size, hidden_size, vocab_size, num_layers):
    keys = jax.random.split(key, 2 + num_layers)
    k_embed, k_lin = keys[0], keys[1]
    klstm = keys[2:]

    params = {}
    # nn.Embedding default init: N(0, 1)
    params["embed"] = jax.random.normal(
        k_embed, (vocab_size, embed_size), jnp.float32)

    # nn.LSTM default init: U(-1/sqrt(H), 1/sqrt(H)); gate order i, f, g, o.
    kH = 1.0 / jnp.sqrt(jnp.float32(hidden_size))
    layers = []
    for layer in range(num_layers):
        in_size = embed_size if layer == 0 else hidden_size
        k0, k1, k2, k3 = jax.random.split(klstm[layer], 4)
        w_ih = jax.random.uniform(k0, (in_size, 4 * hidden_size), jnp.float32, -kH, kH)
        w_hh = jax.random.uniform(k1, (hidden_size, 4 * hidden_size), jnp.float32, -kH, kH)
        b_ih = jax.random.uniform(k2, (4 * hidden_size,), jnp.float32, -kH, kH)
        b_hh = jax.random.uniform(k3, (4 * hidden_size,), jnp.float32, -kH, kH)
        layers.append({"w_ih": w_ih, "w_hh": w_hh, "b": (b_ih + b_hh)[None, :]})
    params["lstm"] = layers

    # nn.Linear default init: U(-1/sqrt(fan_in), 1/sqrt(fan_in))
    kL = 1.0 / jnp.sqrt(jnp.float32(hidden_size))
    kw, kb = jax.random.split(k_lin)
    params["linear"] = {
        "w": jax.random.uniform(kw, (hidden_size, vocab_size), jnp.float32, -kL, kL),
        "b": jax.random.uniform(kb, (1, vocab_size), jnp.float32, -kL, kL),
    }
    return params


def pack_params(params):
    """Pad & stack parameters into MXU/vreg-friendly shapes (done once)."""
    E = params["embed"].shape[1]
    H = params["lstm"][0]["w_hh"].shape[0]
    V = params["linear"]["w"].shape[1]
    Hp = _round_up(H, 128)
    P = max(_round_up(E, 128), Hp)
    Vp = _round_up(V, 128)

    def pad_gate_cols(w, rows_pad):
        # (rows, 4H) -> (rows_pad, 4Hp): pad each gate block separately so each
        # gate starts on a 128-lane boundary. Zero rows/cols are inert.
        rows = w.shape[0]
        w4 = w.reshape(rows, 4, H)
        out = jnp.zeros((rows_pad, 4, Hp), jnp.float32).at[:rows, :, :H].set(w4)
        return out.reshape(rows_pad, 4 * Hp)

    def pad_bias(b):
        b4 = b.reshape(4, H)
        out = jnp.zeros((4, Hp), jnp.float32).at[:, :H].set(b4)
        return out.reshape(1, 4 * Hp)

    wih = jnp.stack([pad_gate_cols(lp["w_ih"], P) for lp in params["lstm"]])
    whh = jnp.stack([pad_gate_cols(lp["w_hh"], Hp) for lp in params["lstm"]])
    bias = jnp.stack([pad_bias(lp["b"]) for lp in params["lstm"]])
    lin_w = jnp.zeros((Hp, Vp), jnp.float32).at[:H, :V].set(params["linear"]["w"])
    lin_b = jnp.zeros((1, Vp), jnp.float32).at[:, :V].set(params["linear"]["b"])
    return {"embed": params["embed"], "wih": wih, "whh": whh, "bias": bias,
            "lin_w": lin_w, "lin_b": lin_b}


# --------------------------------- Forward pass ---------------------------------
@jax.jit
def decoder_forward(kparams, features, captions):
    """features: (B, E) f32, captions: (T, B) int32 -> (T+1, B, V) f32."""
    embed = kparams["embed"]
    V, E = embed.shape
    emb = jnp.take(embed, captions, axis=0)                    # (T, B, E)
    # Dropout(p=0.5) in eval mode: identity.
    x = jnp.concatenate([features[None, :, :], emb], axis=0)   # (T+1, B, E)
    T1, B, _ = x.shape

    P = kparams["wih"].shape[1]
    Hp = kparams["whh"].shape[1]
    Vp = kparams["lin_w"].shape[1]
    Bp = _round_up(B, 8)

    # Pad batch (sublanes) and feature width (lanes); padded entries are inert.
    xp = jnp.zeros((T1, Bp, P), jnp.float32).at[:, :B, :E].set(x)

    h = stacked_lstm(xp, kparams["wih"], kparams["whh"], kparams["bias"])  # (T1,Bp,Hp)

    N = T1 * Bp                                   # multiple of 8
    hflat = h.reshape(N, Hp)                      # contiguous reshape, free
    tm = _largest_tile(N, 512, 8)                 # exact divisor -> no HBM re-pad
    tn = 512 if Vp % 512 == 0 else (256 if Vp % 256 == 0 else 128)
    out = linear(hflat, kparams["lin_w"], kparams["lin_b"], tm, tn)  # (N, Vp)
    return out.reshape(T1, Bp, Vp)[:, :B, :V]


# --------------------------- Pure-JAX reference (check) --------------------------
def reference_forward(params, features, captions):
    hi = lax.Precision.HIGHEST
    emb = jnp.take(params["embed"], captions, axis=0)
    x = jnp.concatenate([features[None, :, :], emb], axis=0)
    for lp in params["lstm"]:
        H = lp["w_hh"].shape[0]
        T1, B, _ = x.shape
        h = jnp.zeros((B, H), jnp.float32)
        c = jnp.zeros((B, H), jnp.float32)
        hs = []
        for t in range(T1):
            gates = (jnp.dot(x[t], lp["w_ih"], precision=hi)
                     + jnp.dot(h, lp["w_hh"], precision=hi) + lp["b"])
            i = jax.nn.sigmoid(gates[:, 0 * H:1 * H])
            f = jax.nn.sigmoid(gates[:, 1 * H:2 * H])
            g = jnp.tanh(gates[:, 2 * H:3 * H])
            o = jax.nn.sigmoid(gates[:, 3 * H:4 * H])
            c = f * c + i * g
            h = o * jnp.tanh(c)
            hs.append(h)
        x = jnp.stack(hs, axis=0)
    return jnp.dot(x, params["linear"]["w"], precision=hi) + params["linear"]["b"]


if __name__ == "__main__":
    embed_size = 32
    hidden_size = 32
    vocab_size = 64
    num_layers = 2
    seq_len = 8
    batch = 2

    key = jax.random.PRNGKey(0)
    k_params, k_feat, k_cap = jax.random.split(key, 3)

    params = init_params(k_params, embed_size, hidden_size, vocab_size, num_layers)
    kparams = pack_params(params)

    features = jax.random.normal(k_feat, (batch, embed_size), jnp.float32)
    captions = jax.random.randint(k_cap, (seq_len, batch), 0, vocab_size, jnp.int32)

    outputs = decoder_forward(kparams, features, captions)
    jax.block_until_ready(outputs)

    assert outputs.shape == (seq_len + 1, batch, vocab_size), outputs.shape
    assert outputs.dtype == jnp.float32
    assert bool(jnp.all(jnp.isfinite(outputs)))

    ref = reference_forward(params, features, captions)
    max_err = float(jnp.max(jnp.abs(outputs - ref)))
    assert bool(jnp.allclose(outputs, ref, atol=5e-2, rtol=5e-2)), max_err

    print("KERNEL_OK")
</pallas_src>

<mosaic_0001>
module attributes {stable_mosaic.version = 11 : i64} {
  func.func @_linear_kernel(%arg0: i32, %arg1: i32, %arg2: memref<72x128xf32, #tpu.memory_space<vmem>>, %arg3: memref<128x128xf32, #tpu.memory_space<vmem>>, %arg4: memref<1x128xf32, #tpu.memory_space<vmem>>, %arg5: memref<72x128xf32, #tpu.memory_space<vmem>>) attributes {dimension_semantics = [#tpu.dimension_semantics<parallel>, #tpu.dimension_semantics<parallel>], iteration_bounds = array<i64: 1, 1>, scalar_prefetch = 0 : i64, scratch_operands = 0 : i64, tpu.core_type = #tpu.core_type<tc>, window_params = [{transform_indices = @transform_0, window_bounds = array<i64: 72, 128>}, {transform_indices = @transform_1, window_bounds = array<i64: 128, 128>}, {transform_indices = @transform_2, window_bounds = array<i64: 1, 128>}, {transform_indices = @transform_3, window_bounds = array<i64: 72, 128>}]} {
    %c0 = arith.constant 0 : index
    %c0_0 = arith.constant 0 : index
    %0 = vector.load %arg2[%c0, %c0_0] : memref<72x128xf32, #tpu.memory_space<vmem>>, vector<72x128xf32>
    %c0_1 = arith.constant 0 : index
    %c0_2 = arith.constant 0 : index
    %1 = vector.load %arg3[%c0_1, %c0_2] : memref<128x128xf32, #tpu.memory_space<vmem>>, vector<128x128xf32>
    %cst = arith.constant dense<0.000000e+00> : vector<72x128xf32>
    %2 = tpu.matmul %0, %1, %cst {dimension_numbers = #tpu.dot_dimension_numbers<[1], [0], [0], [1], [0, 0, 1, 1], [], []>} : vector<72x128xf32>, vector<128x128xf32>, vector<72x128xf32> -> vector<72x128xf32>
    %c0_3 = arith.constant 0 : index
    %c0_4 = arith.constant 0 : index
    %3 = vector.load %arg4[%c0_3, %c0_4] : memref<1x128xf32, #tpu.memory_space<vmem>>, vector<1x128xf32>
    %4 = vector.broadcast %3 : vector<1x128xf32> to vector<72x128xf32>
    %5 = arith.addf %2, %4 : vector<72x128xf32>
    %c0_5 = arith.constant 0 : index
    %c0_6 = arith.constant 0 : index
    %6 = vector.load %arg5[%c0_5, %c0_6] : memref<72x128xf32, #tpu.memory_space<vmem>>, vector<72x128xf32>
    tpu.vector_store %arg5[%c0_5, %c0_6], %5 {strides = array<i32>} : memref<72x128xf32, #tpu.memory_space<vmem>>, vector<72x128xf32>,
    return
  }
  func.func @transform_0(%arg0: i32, %arg1: i32) -> (i32, i32) {
    %c0_i32 = arith.constant 0 : i32
    %c0_i32_0 = arith.constant 0 : i32
    return %arg0, %c0_i32 : i32, i32
  }
  func.func @transform_1(%arg0: i32, %arg1: i32) -> (i32, i32) {
    %c0_i32 = arith.constant 0 : i32
    %c0_i32_0 = arith.constant 0 : i32
    return %c0_i32, %arg1 : i32, i32
  }
  func.func @transform_2(%arg0: i32, %arg1: i32) -> (i32, i32) {
    %c0_i32 = arith.constant 0 : i32
    %c0_i32_0 = arith.constant 0 : i32
    return %c0_i32, %arg1 : i32, i32
  }
  func.func @transform_3(%arg0: i32, %arg1: i32) -> (i32, i32) {
    %c0_i32 = arith.constant 0 : i32
    return %arg0, %arg1 : i32, i32
  }
}

module attributes {stable_mosaic.version = 11 : i64} {
  func.func @_stacked_lstm_kernel(%arg0: i32, %arg1: memref<9x8x128xf32, #tpu.memory_space<vmem>>, %arg2: memref<2x128x512xf32, #tpu.memory_space<vmem>>, %arg3: memref<2x128x512xf32, #tpu.memory_space<vmem>>, %arg4: memref<2x1x512xf32, #tpu.memory_space<vmem>>, %arg5: memref<9x8x128xf32, #tpu.memory_space<vmem>>, %arg6: memref<9x8x128xf32, #tpu.memory_space<vmem>>, %arg7: memref<9x8x512xf32, #tpu.memory_space<vmem>>, %arg8: memref<8x128xf32, #tpu.memory_space<vmem>>, %arg9: memref<8x128xf32, #tpu.memory_space<vmem>>) attributes {dimension_semantics = [#tpu.dimension_semantics<arbitrary>], iteration_bounds = array<i64: 1>, scalar_prefetch = 0 : i64, scratch_operands = 4 : i64, tpu.core_type = #tpu.core_type<tc>, window_params = [{pipeline_mode = #tpu.pipeline_mode<synchronous>, transform_indices = @transform_0, window_bounds = array<i64: 9, 8, 128>}, {pipeline_mode = #tpu.pipeline_mode<synchronous>, transform_indices = @transform_1, window_bounds = array<i64: 2, 128, 512>}, {pipeline_mode = #tpu.pipeline_mode<synchronous>, transform_indices = @transform_2, window_bounds = array<i64: 2, 128, 512>}, {pipeline_mode = #tpu.pipeline_mode<synchronous>, transform_indices = @transform_3, window_bounds = array<i64: 2, 1, 512>}, {pipeline_mode = #tpu.pipeline_mode<synchronous>, transform_indices = @transform_4, window_bounds = array<i64: 9, 8, 128>}]} {
    %c0 = arith.constant 0 : index
    %c0_0 = arith.constant 0 : index
    %c0_1 = arith.constant 0 : index
    %0 = vector.load %arg1[%c0, %c0_0, %c0_1] : memref<9x8x128xf32, #tpu.memory_space<vmem>>, vector<9x8x128xf32>
    %c0_2 = arith.constant 0 : index
    %c0_3 = arith.constant 0 : index
    %c0_4 = arith.constant 0 : index
    %1 = vector.load %arg6[%c0_2, %c0_3, %c0_4] : memref<9x8x128xf32, #tpu.memory_space<vmem>>, vector<9x8x128xf32>
    tpu.vector_store %arg6[%c0_2, %c0_3, %c0_4], %0 {strides = array<i32>} : memref<9x8x128xf32, #tpu.memory_space<vmem>>, vector<9x8x128xf32>,
    %c0_5 = arith.constant 0 : index
    %c0_6 = arith.constant 0 : index
    %c0_7 = arith.constant 0 : index
    %2 = vector.load %arg6[%c0_5, %c0_6, %c0_7] : memref<9x8x128xf32, #tpu.memory_space<vmem>>, vector<9x8x128xf32>
    %3 = vector.shape_cast %2 : vector<9x8x128xf32> to vector<72x128xf32>
    %c0_8 = arith.constant 0 : index
    %c0_9 = arith.constant 0 : index
    %c0_10 = arith.constant 0 : index
    %4 = vector.load %arg2[%c0_8, %c0_9, %c0_10] : memref<2x128x512xf32, #tpu.memory_space<vmem>>, vector<1x128x512xf32>
    %5 = vector.shape_cast %4 : vector<1x128x512xf32> to vector<128x512xf32>
    %cst = arith.constant dense<0.000000e+00> : vector<72x512xf32>
    %6 = tpu.matmul %3, %5, %cst {dimension_numbers = #tpu.dot_dimension_numbers<[1], [0], [0], [1], [0, 0, 1, 1], [], []>} : vector<72x128xf32>, vector<128x512xf32>, vector<72x512xf32> -> vector<72x512xf32>
    %c0_11 = arith.constant 0 : index
    %c0_12 = arith.constant 0 : index
    %c0_13 = arith.constant 0 : index
    %7 = vector.load %arg4[%c0_11, %c0_12, %c0_13] : memref<2x1x512xf32, #tpu.memory_space<vmem>>, vector<1x1x512xf32>
    %8 = vector.shape_cast %7 : vector<1x1x512xf32> to vector<1x512xf32>
    %9 = vector.broadcast %8 : vector<1x512xf32> to vector<72x512xf32>
    %10 = arith.addf %6, %9 : vector<72x512xf32>
    %11 = vector.shape_cast %10 : vector<72x512xf32> to vector<9x8x512xf32>
    %c0_14 = arith.constant 0 : index
    %c0_15 = arith.constant 0 : index
    %c0_16 = arith.constant 0 : index
    %12 = vector.load %arg7[%c0_14, %c0_15, %c0_16] : memref<9x8x512xf32, #tpu.memory_space<vmem>>, vector<9x8x512xf32>
    tpu.vector_store %arg7[%c0_14, %c0_15, %c0_16], %11 {strides = array<i32>} : memref<9x8x512xf32, #tpu.memory_space<vmem>>, vector<9x8x512xf32>,
    %cst_17 = arith.constant 0.000000e+00 : f32
    %13 = vector.broadcast %cst_17 : f32 to vector<8x128xf32>
    %c0_18 = arith.constant 0 : index
    %c0_19 = arith.constant 0 : index
    %14 = vector.load %arg8[%c0_18, %c0_19] : memref<8x128xf32, #tpu.memory_space<vmem>>, vector<8x128xf32>
    tpu.vector_store %arg8[%c0_18, %c0_19], %13 {strides = array<i32>} : memref<8x128xf32, #tpu.memory_space<vmem>>, vector<8x128xf32>,
    %cst_20 = arith.constant 0.000000e+00 : f32
    %15 = vector.broadcast %cst_20 : f32 to vector<8x128xf32>
    %c0_21 = arith.constant 0 : index
    %c0_22 = arith.constant 0 : index
    %16 = vector.load %arg9[%c0_21, %c0_22] : memref<8x128xf32, #tpu.memory_space<vmem>>, vector<8x128xf32>
    tpu.vector_store %arg9[%c0_21, %c0_22], %15 {strides = array<i32>} : memref<8x128xf32, #tpu.memory_space<vmem>>, vector<8x128xf32>,
    %c0_23 = arith.constant 0 : index
    %c0_24 = arith.constant 0 : index
    %c0_25 = arith.constant 0 : index
    %17 = vector.load %arg3[%c0_23, %c0_24, %c0_25] : memref<2x128x512xf32, #tpu.memory_space<vmem>>, vector<1x128x512xf32>
    %18 = vector.shape_cast %17 : vector<1x128x512xf32> to vector<128x512xf32>
    %c0_26 = arith.constant 0 : index
    %c0_27 = arith.constant 0 : index
    %c0_28 = arith.constant 0 : index
    %19 = vector.load %arg7[%c0_26, %c0_27, %c0_28] : memref<9x8x512xf32, #tpu.memory_space<vmem>>, vector<1x8x512xf32>
    %20 = vector.shape_cast %19 : vector<1x8x512xf32> to vector<8x512xf32>
    %c0_29 = arith.constant 0 : index
    %c0_30 = arith.constant 0 : index
    %21 = vector.load %arg8[%c0_29, %c0_30] : memref<8x128xf32, #tpu.memory_space<vmem>>, vector<8x128xf32>
    %cst_31 = arith.constant dense<0.000000e+00> : vector<8x512xf32>
    %22 = tpu.matmul %21, %18, %cst_31 {dimension_numbers = #tpu.dot_dimension_numbers<[1], [0], [0], [1], [0, 0, 1, 1], [], []>} : vector<8x128xf32>, vector<128x512xf32>, vector<8x512xf32> -> vector<8x512xf32>
    %23 = arith.addf %20, %22 : vector<8x512xf32>
    %24 = vector.extract_strided_slice %23 {offsets = [0, 0], sizes = [8, 128], strides = [1, 1]} : vector<8x512xf32> to vector<8x128xf32>
    %25 = arith.negf %24 : vector<8x128xf32>
    %26 = math.exp %25 : vector<8x128xf32>
    %cst_32 = arith.constant 1.000000e+00 : f32
    %27 = vector.broadcast %cst_32 : f32 to vector<8x128xf32>
    %28 = arith.addf %27, %26 : vector<8x128xf32>
    %29 = arith.divf %27, %28 : vector<8x128xf32>
    %30 = vector.extract_strided_slice %23 {offsets = [0, 128], sizes = [8, 128], strides = [1, 1]} : vector<8x512xf32> to vector<8x128xf32>
    %31 = arith.negf %30 : vector<8x128xf32>
    %32 = math.exp %31 : vector<8x128xf32>
    %cst_33 = arith.constant 1.000000e+00 : f32
    %33 = vector.broadcast %cst_33 : f32 to vector<8x128xf32>
    %34 = arith.addf %33, %32 : vector<8x128xf32>
    %35 = arith.divf %33, %34 : vector<8x128xf32>
    %36 = vector.extract_strided_slice %23 {offsets = [0, 256], sizes = [8, 128], strides = [1, 1]} : vector<8x512xf32> to vector<8x128xf32>
    %37 = math.tanh %36 : vector<8x128xf32>
    %38 = vector.extract_strided_slice %23 {offsets = [0, 384], sizes = [8, 128], strides = [1, 1]} : vector<8x512xf32> to vector<8x128xf32>
    %39 = arith.negf %38 : vector<8x128xf32>
    %40 = math.exp %39 : vector<8x128xf32>
    %cst_34 = arith.constant 1.000000e+00 : f32
    %41 = vector.broadcast %cst_34 : f32 to vector<8x128xf32>
    %42 = arith.addf %41, %40 : vector<8x128xf32>
    %43 = arith.divf %41, %42 : vector<8x128xf32>
    %c0_35 = arith.constant 0 : index
    %c0_36 = arith.constant 0 : index
    %44 = vector.load %arg9[%c0_35, %c0_36] : memref<8x128xf32, #tpu.memory_space<vmem>>, vector<8x128xf32>
    %45 = arith.mulf %35, %44 : vector<8x128xf32>
    %46 = arith.mulf %29, %37 : vector<8x128xf32>
    %47 = arith.addf %45, %46 : vector<8x128xf32>
    %48 = math.tanh %47 : vector<8x128xf32>
    %49 = arith.mulf %43, %48 : vector<8x128xf32>
    %c0_37 = arith.constant 0 : index
    %c0_38 = arith.constant 0 : index
    %50 = vector.load %arg9[%c0_37, %c0_38] : memref<8x128xf32, #tpu.memory_space<vmem>>, vector<8x128xf32>
    tpu.vector_store %arg9[%c0_37, %c0_38], %47 {strides = array<i32>} : memref<8x128xf32, #tpu.memory_space<vmem>>, vector<8x128xf32>,
    %c0_39 = arith.constant 0 : index
    %c0_40 = arith.constant 0 : index
    %51 = vector.load %arg8[%c0_39, %c0_40] : memref<8x128xf32, #tpu.memory_space<vmem>>, vector<8x128xf32>
    tpu.vector_store %arg8[%c0_39, %c0_40], %49 {strides = array<i32>} : memref<8x128xf32, #tpu.memory_space<vmem>>, vector<8x128xf32>,
    %c0_41 = arith.constant 0 : index
    %c0_42 = arith.constant 0 : index
    %c0_43 = arith.constant 0 : index
    %52 = vector.load %arg6[%c0_41, %c0_42, %c0_43] : memref<9x8x128xf32, #tpu.memory_space<vmem>>, vector<1x8x128xf32>
    %53 = vector.shape_cast %52 : vector<1x8x128xf32> to vector<8x128xf32>
    %54 = vector.shape_cast %49 : vector<8x128xf32> to vector<1x8x128xf32>
    tpu.vector_store %arg6[%c0_41, %c0_42, %c0_43], %54 {strides = array<i32>} : memref<9x8x128xf32, #tpu.memory_space<vmem>>, vector<1x8x128xf32>,
    %c1 = arith.constant 1 : index
    %c0_44 = arith.constant 0 : index
    %c0_45 = arith.constant 0 : index
    %55 = vector.load %arg7[%c1, %c0_44, %c0_45] : memref<9x8x512xf32, #tpu.memory_space<vmem>>, vector<1x8x512xf32>
    %56 = vector.shape_cast %55 : vector<1x8x512xf32> to vector<8x512xf32>
    %c0_46 = arith.constant 0 : index
    %c0_47 = arith.constant 0 : index
    %57 = vector.load %arg8[%c0_46, %c0_47] : memref<8x128xf32, #tpu.memory_space<vmem>>, vector<8x128xf32>
    %cst_48 = arith.constant dense<0.000000e+00> : vector<8x512xf32>
    %58 = tpu.matmul %57, %18, %cst_48 {dimension_numbers = #tpu.dot_dimension_numbers<[1], [0], [0], [1], [0, 0, 1, 1], [], []>} : vector<8x128xf32>, vector<128x512xf32>, vector<8x512xf32> -> vector<8x512xf32>
    %59 = arith.addf %56, %58 : vector<8x512xf32>
    %60 = vector.extract_strided_slice %59 {offsets = [0, 0], sizes = [8, 128], strides = [1, 1]} : vector<8x512xf32> to vector<8x128xf32>
    %61 = arith.negf %60 : vector<8x128xf32>
    %62 = math.exp %61 : vector<8x128xf32>
    %cst_49 = arith.constant 1.000000e+00 : f32
    %63 = vector.broadcast %cst_49 : f32 to vector<8x128xf32>
    %64 = arith.addf %63, %62 : vector<8x128xf32>
    %65 = arith.divf %63, %64 : vector<8x128xf32>
    %66 = vector.extract_strided_slice %59 {offsets = [0, 128], sizes = [8, 128], strides = [1, 1]} : vector<8x512xf32> to vector<8x128xf32>
    %67 = arith.negf %66 : vector<8x128xf32>
    %68 = math.exp %67 : vector<8x128xf32>
    %cst_50 = arith.constant 1.000000e+00 : f32
    %69 = vector.broadcast %cst_50 : f32 to vector<8x128xf32>
    %70 = arith.addf %69, %68 : vector<8x128xf32>
    %71 = arith.divf %69, %70 : vector<8x128xf32>
    %72 = vector.extract_strided_slice %59 {offsets = [0, 256], sizes = [8, 128], strides = [1, 1]} : vector<8x512xf32> to vector<8x128xf32>
    %73 = math.tanh %72 : vector<8x128xf32>
    %74 = vector.extract_strided_slice %59 {offsets = [0, 384], sizes = [8, 128], strides = [1, 1]} : vector<8x512xf32> to vector<8x128xf32>
    %75 = arith.negf %74 : vector<8x128xf32>
    %76 = math.exp %75 : vector<8x128xf32>
    %cst_51 = arith.constant 1.000000e+00 : f32
    %77 = vector.broadcast %cst_51 : f32 to vector<8x128xf32>
    %78 = arith.addf %77, %76 : vector<8x128xf32>
    %79 = arith.divf %77, %78 : vector<8x128xf32>
    %c0_52 = arith.constant 0 : index
    %c0_53 = arith.constant 0 : index
    %80 = vector.load %arg9[%c0_52, %c0_53] : memref<8x128xf32, #tpu.memory_space<vmem>>, vector<8x128xf32>
    %81 = arith.mulf %71, %80 : vector<8x128xf32>
    %82 = arith.mulf %65, %73 : vector<8x128xf32>
    %83 = arith.addf %81, %82 : vector<8x128xf32>
    %84 = math.tanh %83 : vector<8x128xf32>
    %85 = arith.mulf %79, %84 : vector<8x128xf32>
    %c0_54 = arith.constant 0 : index
    %c0_55 = arith.constant 0 : index
    %86 = vector.load %arg9[%c0_54, %c0_55] : memref<8x128xf32, #tpu.memory_space<vmem>>, vector<8x128xf32>
    tpu.vector_store %arg9[%c0_54, %c0_55], %83 {strides = array<i32>} : memref<8x128xf32, #tpu.memory_space<vmem>>, vector<8x128xf32>,
    %c0_56 = arith.constant 0 : index
    %c0_57 = arith.constant 0 : index
    %87 = vector.load %arg8[%c0_56, %c0_57] : memref<8x128xf32, #tpu.memory_space<vmem>>, vector<8x128xf32>
    tpu.vector_store %arg8[%c0_56, %c0_57], %85 {strides = array<i32>} : memref<8x128xf32, #tpu.memory_space<vmem>>, vector<8x128xf32>,
    %c1_58 = arith.constant 1 : index
    %c0_59 = arith.constant 0 : index
    %c0_60 = arith.constant 0 : index
    %88 = vector.load %arg6[%c1_58, %c0_59, %c0_60] : memref<9x8x128xf32, #tpu.memory_space<vmem>>, vector<1x8x128xf32>
    %89 = vector.shape_cast %88 : vector<1x8x128xf32> to vector<8x128xf32>
    %90 = vector.shape_cast %85 : vector<8x128xf32> to vector<1x8x128xf32>
    tpu.vector_store %arg6[%c1_58, %c0_59, %c0_60], %90 {strides = array<i32>} : memref<9x8x128xf32, #tpu.memory_space<vmem>>, vector<1x8x128xf32>,
    %c2 = arith.constant 2 : index
    %c0_61 = arith.constant 0 : index
    %c0_62 = arith.constant 0 : index
    %91 = vector.load %arg7[%c2, %c0_61, %c0_62] : memref<9x8x512xf32, #tpu.memory_space<vmem>>, vector<1x8x512xf32>
    %92 = vector.shape_cast %91 : vector<1x8x512xf32> to vector<8x512xf32>
    %c0_63 = arith.constant 0 : index
    %c0_64 = arith.constant 0 : index
    %93 = vector.load %arg8[%c0_63, %c0_64] : memref<8x128xf32, #tpu.memory_space<vmem>>, vector<8x128xf32>
    %cst_65 = arith.constant dense<0.000000e+00> : vector<8x512xf32>
    %94 = tpu.matmul %93, %18, %cst_65 {dimension_numbers = #tpu.dot_dimension_numbers<[1], [0], [0], [1], [0, 0, 1, 1], [], []>} : vector<8x128xf32>, vector<128x512xf32>, vector<8x512xf32> -> vector<8x512xf32>
    %95 = arith.addf %92, %94 : vector<8x512xf32>
    %96 = vector.extract_strided_slice %95 {offsets = [0, 0], sizes = [8, 128], strides = [1, 1]} : vector<8x512xf32> to vector<8x128xf32>
    %97 = arith.negf %96 : vector<8x128xf32>
    %98 = math.exp %97 : vector<8x128xf32>
    %cst_66 = arith.constant 1.000000e+00 : f32
    %99 = vector.broadcast %cst_66 : f32 to vector<8x128xf32>
    %100 = arith.addf %99, %98 : vector<8x128xf32>
    %101 = arith.divf %99, %100 : vector<8x128xf32>
    %102 = vector.extract_strided_slice %95 {offsets = [0, 128], sizes = [8, 128], strides = [1, 1]} : vector<8x512xf32> to vector<8x128xf32>
    %103 = arith.negf %102 : vector<8x128xf32>
    %104 = math.exp %103 : vector<8x128xf32>
    %cst_67 = arith.constant 1.000000e+00 : f32
    %105 = vector.broadcast %cst_67 : f32 to vector<8x128xf32>
    %106 = arith.addf %105, %104 : vector<8x128xf32>
    %107 = arith.divf %105, %106 : vector<8x128xf32>
    %108 = vector.extract_strided_slice %95 {offsets = [0, 256], sizes = [8, 128], strides = [1, 1]} : vector<8x512xf32> to vector<8x128xf32>
    %109 = math.tanh %108 : vector<8x128xf32>
    %110 = vector.extract_strided_slice %95 {offsets = [0, 384], sizes = [8, 128], strides = [1, 1]} : vector<8x512xf32> to vector<8x128xf32>
    %111 = arith.negf %110 : vector<8x128xf32>
    %112 = math.exp %111 : vector<8x128xf32>
    %cst_68 = arith.constant 1.000000e+00 : f32
    %113 = vector.broadcast %cst_68 : f32 to vector<8x128xf32>
    %114 = arith.addf %113, %112 : vector<8x128xf32>
    %115 = arith.divf %113, %114 : vector<8x128xf32>
    %c0_69 = arith.constant 0 : index
    %c0_70 = arith.constant 0 : index
    %116 = vector.load %arg9[%c0_69, %c0_70] : memref<8x128xf32, #tpu.memory_space<vmem>>, vector<8x128xf32>
    %117 = arith.mulf %107, %116 : vector<8x128xf32>
    %118 = arith.mulf %101, %109 : vector<8x128xf32>
    %119 = arith.addf %117, %118 : vector<8x128xf32>
    %120 = math.tanh %119 : vector<8x128xf32>
    %121 = arith.mulf %115, %120 : vector<8x128xf32>
    %c0_71 = arith.constant 0 : index
    %c0_72 = arith.constant 0 : index
    %122 = vector.load %arg9[%c0_71, %c0_72] : memref<8x128xf32, #tpu.memory_space<vmem>>, vector<8x128xf32>
    tpu.vector_store %arg9[%c0_71, %c0_72], %119 {strides = array<i32>} : memref<8x128xf32, #tpu.memory_space<vmem>>, vector<8x128xf32>,
    %c0_73 = arith.constant 0 : index
    %c0_74 = arith.constant 0 : index
    %123 = vector.load %arg8[%c0_73, %c0_74] : memref<8x128xf32, #tpu.memory_space<vmem>>, vector<8x128xf32>
    tpu.vector_store %arg8[%c0_73, %c0_74], %121 {strides = array<i32>} : memref<8x128xf32, #tpu.memory_space<vmem>>, vector<8x128xf32>,
    %c2_75 = arith.constant 2 : index
    %c0_76 = arith.constant 0 : index
    %c0_77 = arith.constant 0 : index
    %124 = vector.load %arg6[%c2_75, %c0_76, %c0_77] : memref<9x8x128xf32, #tpu.memory_space<vmem>>, vector<1x8x128xf32>
    %125 = vector.shape_cast %124 : vector<1x8x128xf32> to vector<8x128xf32>
    %126 = vector.shape_cast %121 : vector<8x128xf32> to vector<1x8x128xf32>
    tpu.vector_store %arg6[%c2_75, %c0_76, %c0_77], %126 {strides = array<i32>} : memref<9x8x128xf32, #tpu.memory_space<vmem>>, vector<1x8x128xf32>,
    %c3 = arith.constant 3 : index
    %c0_78 = arith.constant 0 : index
    %c0_79 = arith.constant 0 : index
    %127 = vector.load %arg7[%c3, %c0_78, %c0_79] : memref<9x8x512xf32, #tpu.memory_space<vmem>>, vector<1x8x512xf32>
    %128 = vector.shape_cast %127 : vector<1x8x512xf32> to vector<8x512xf32>
    %c0_80 = arith.constant 0 : index
    %c0_81 = arith.constant 0 : index
    %129 = vector.load %arg8[%c0_80, %c0_81] : memref<8x128xf32, #tpu.memory_space<vmem>>, vector<8x128xf32>
    %cst_82 = arith.constant dense<0.000000e+00> : vector<8x512xf32>
    %130 = tpu.matmul %129, %18, %cst_82 {dimension_numbers = #tpu.dot_dimension_numbers<[1], [0], [0], [1], [0, 0, 1, 1], [], []>} : vector<8x128xf32>, vector<128x512xf32>, vector<8x512xf32> -> vector<8x512xf32>
    %131 = arith.addf %128, %130 : vector<8x512xf32>
    %132 = vector.extract_strided_slice %131 {offsets = [0, 0], sizes = [8, 128], strides = [1, 1]} : vector<8x512xf32> to vector<8x128xf32>
    %133 = arith.negf %132 : vector<8x128xf32>
    %134 = math.exp %133 : vector<8x128xf32>
    %cst_83 = arith.constant 1.000000e+00 : f32
    %135 = vector.broadcast %cst_83 : f32 to vector<8x128xf32>
    %136 = arith.addf %135, %134 : vector<8x128xf32>
    %137 = arith.divf %135, %136 : vector<8x128xf32>
    %138 = vector.extract_strided_slice %131 {offsets = [0, 128], sizes = [8, 128], strides = [1, 1]} : vector<8x512xf32> to vector<8x128xf32>
    %139 = arith.negf %138 : vector<8x128xf32>
    %140 = math.exp %139 : vector<8x128xf32>
    %cst_84 = arith.constant 1.000000e+00 : f32
    %141 = vector.broadcast %cst_84 : f32 to vector<8x128xf32>
    %142 = arith.addf %141, %140 : vector<8x128xf32>
    %143 = arith.divf %141, %142 : vector<8x128xf32>
    %144 = vector.extract_strided_slice %131 {offsets = [0, 256], sizes = [8, 128], strides = [1, 1]} : vector<8x512xf32> to vector<8x128xf32>
    %145 = math.tanh %144 : vector<8x128xf32>
    %146 = vector.extract_strided_slice %131 {offsets = [0, 384], sizes = [8, 128], strides = [1, 1]} : vector<8x512xf32> to vector<8x128xf32>
    %147 = arith.negf %146 : vector<8x128xf32>
    %148 = math.exp %147 : vector<8x128xf32>
    %cst_85 = arith.constant 1.000000e+00 : f32
    %149 = vector.broadcast %cst_85 : f32 to vector<8x128xf32>
    %150 = arith.addf %149, %148 : vector<8x128xf32>
    %151 = arith.divf %149, %150 : vector<8x128xf32>
    %c0_86 = arith.constant 0 : index
    %c0_87 = arith.constant 0 : index
    %152 = vector.load %arg9[%c0_86, %c0_87] : memref<8x128xf32, #tpu.memory_space<vmem>>, vector<8x128xf32>
    %153 = arith.mulf %143, %152 : vector<8x128xf32>
    %154 = arith.mulf %137, %145 : vector<8x128xf32>
    %155 = arith.addf %153, %154 : vector<8x128xf32>
    %156 = math.tanh %155 : vector<8x128xf32>
    %157 = arith.mulf %151, %156 : vector<8x128xf32>
    %c0_88 = arith.constant 0 : index
    %c0_89 = arith.constant 0 : index
    %158 = vector.load %arg9[%c0_88, %c0_89] : memref<8x128xf32, #tpu.memory_space<vmem>>, vector<8x128xf32>
    tpu.vector_store %arg9[%c0_88, %c0_89], %155 {strides = array<i32>} : memref<8x128xf32, #tpu.memory_space<vmem>>, vector<8x128xf32>,
    %c0_90 = arith.constant 0 : index
    %c0_91 = arith.constant 0 : index
    %159 = vector.load %arg8[%c0_90, %c0_91] : memref<8x128xf32, #tpu.memory_space<vmem>>, vector<8x128xf32>
    tpu.vector_store %arg8[%c0_90, %c0_91], %157 {strides = array<i32>} : memref<8x128xf32, #tpu.memory_space<vmem>>, vector<8x128xf32>,
    %c3_92 = arith.constant 3 : index
    %c0_93 = arith.constant 0 : index
    %c0_94 = arith.constant 0 : index
    %160 = vector.load %arg6[%c3_92, %c0_93, %c0_94] : memref<9x8x128xf32, #tpu.memory_space<vmem>>, vector<1x8x128xf32>
    %161 = vector.shape_cast %160 : vector<1x8x128xf32> to vector<8x128xf32>
    %162 = vector.shape_cast %157 : vector<8x128xf32> to vector<1x8x128xf32>
    tpu.vector_store %arg6[%c3_92, %c0_93, %c0_94], %162 {strides = array<i32>} : memref<9x8x128xf32, #tpu.memory_space<vmem>>, vector<1x8x128xf32>,
    %c4 = arith.constant 4 : index
    %c0_95 = arith.constant 0 : index
    %c0_96 = arith.constant 0 : index
    %163 = vector.load %arg7[%c4, %c0_95, %c0_96] : memref<9x8x512xf32, #tpu.memory_space<vmem>>, vector<1x8x512xf32>
    %164 = vector.shape_cast %163 : vector<1x8x512xf32> to vector<8x512xf32>
    %c0_97 = arith.constant 0 : index
    %c0_98 = arith.constant 0 : index
    %165 = vector.load %arg8[%c0_97, %c0_98] : memref<8x128xf32, #tpu.memory_space<vmem>>, vector<8x128xf32>
    %cst_99 = arith.constant dense<0.000000e+00> : vector<8x512xf32>
    %166 = tpu.matmul %165, %18, %cst_99 {dimension_numbers = #tpu.dot_dimension_numbers<[1], [0], [0], [1], [0, 0, 1, 1], [], []>} : vector<8x128xf32>, vector<128x512xf32>, vector<8x512xf32> -> vector<8x512xf32>
    %167 = arith.addf %164, %166 : vector<8x512xf32>
    %168 = vector.extract_strided_slice %167 {offsets = [0, 0], sizes = [8, 128], strides = [1, 1]} : vector<8x512xf32> to vector<8x128xf32>
    %169 = arith.negf %168 : vector<8x128xf32>
    %170 = math.exp %169 : vector<8x128xf32>
    %cst_100 = arith.constant 1.000000e+00 : f32
    %171 = vector.broadcast %cst_100 : f32 to vector<8x128xf32>
    %172 = arith.addf %171, %170 : vector<8x128xf32>
    %173 = arith.divf %171, %172 : vector<8x128xf32>
    %174 = vector.extract_strided_slice %167 {offsets = [0, 128], sizes = [8, 128], strides = [1, 1]} : vector<8x512xf32> to vector<8x128xf32>
    %175 = arith.negf %174 : vector<8x128xf32>
    %176 = math.exp %175 : vector<8x128xf32>
    %cst_101 = arith.constant 1.000000e+00 : f32
    %177 = vector.broadcast %cst_101 : f32 to vector<8x128xf32>
    %178 = arith.addf %177, %176 : vector<8x128xf32>
    %179 = arith.divf %177, %178 : vector<8x128xf32>
    %180 = vector.extract_strided_slice %167 {offsets = [0, 256], sizes = [8, 128], strides = [1, 1]} : vector<8x512xf32> to vector<8x128xf32>
    %181 = math.tanh %180 : vector<8x128xf32>
    %182 = vector.extract_strided_slice %167 {offsets = [0, 384], sizes = [8, 128], strides = [1, 1]} : vector<8x512xf32> to vector<8x128xf32>
    %183 = arith.negf %182 : vector<8x128xf32>
    %184 = math.exp %183 : vector<8x128xf32>
    %cst_102 = arith.constant 1.000000e+00 : f32
    %185 = vector.broadcast %cst_102 : f32 to vector<8x128xf32>
    %186 = arith.addf %185, %184 : vector<8x128xf32>
    %187 = arith.divf %185, %186 : vector<8x128xf32>
    %c0_103 = arith.constant 0 : index
    %c0_104 = arith.constant 0 : index
    %188 = vector.load %arg9[%c0_103, %c0_104] : memref<8x128xf32, #tpu.memory_space<vmem>>, vector<8x128xf32>
    %189 = arith.mulf %179, %188 : vector<8x128xf32>
    %190 = arith.mulf %173, %181 : vector<8x128xf32>
    %191 = arith.addf %189, %190 : vector<8x128xf32>
    %192 = math.tanh %191 : vector<8x128xf32>
    %193 = arith.mulf %187, %192 : vector<8x128xf32>
    %c0_105 = arith.constant 0 : index
    %c0_106 = arith.constant 0 : index
    %194 = vector.load %arg9[%c0_105, %c0_106] : memref<8x128xf32, #tpu.memory_space<vmem>>, vector<8x128xf32>
    tpu.vector_store %arg9[%c0_105, %c0_106], %191 {strides = array<i32>} : memref<8x128xf32, #tpu.memory_space<vmem>>, vector<8x128xf32>,
    %c0_107 = arith.constant 0 : index
    %c0_108 = arith.constant 0 : index
    %195 = vector.load %arg8[%c0_107, %c0_108] : memref<8x128xf32, #tpu.memory_space<vmem>>, vector<8x128xf32>
    tpu.vector_store %arg8[%c0_107, %c0_108], %193 {strides = array<i32>} : memref<8x128xf32, #tpu.memory_space<vmem>>, vector<8x128xf32>,
    %c4_109 = arith.constant 4 : index
    %c0_110 = arith.constant 0 : index
    %c0_111 = arith.constant 0 : index
    %196 = vector.load %arg6[%c4_109, %c0_110, %c0_111] : memref<9x8x128xf32, #tpu.memory_space<vmem>>, vector<1x8x128xf32>
    %197 = vector.shape_cast %196 : vector<1x8x128xf32> to vector<8x128xf32>
    %198 = vector.shape_cast %193 : vector<8x128xf32> to vector<1x8x128xf32>
    tpu.vector_store %arg6[%c4_109, %c0_110, %c0_111], %198 {strides = array<i32>} : memref<9x8x128xf32, #tpu.memory_space<vmem>>, vector<1x8x128xf32>,
    %c5 = arith.constant 5 : index
    %c0_112 = arith.constant 0 : index
    %c0_113 = arith.constant 0 : index
    %199 = vector.load %arg7[%c5, %c0_112, %c0_113] : memref<9x8x512xf32, #tpu.memory_space<vmem>>, vector<1x8x512xf32>
    %200 = vector.shape_cast %199 : vector<1x8x512xf32> to vector<8x512xf32>
    %c0_114 = arith.constant 0 : index
    %c0_115 = arith.constant 0 : index
    %201 = vector.load %arg8[%c0_114, %c0_115] : memref<8x128xf32, #tpu.memory_space<vmem>>, vector<8x128xf32>
    %cst_116 = arith.constant dense<0.000000e+00> : vector<8x512xf32>
    %202 = tpu.matmul %201, %18, %cst_116 {dimension_numbers = #tpu.dot_dimension_numbers<[1], [0], [0], [1], [0, 0, 1, 1], [], []>} : vector<8x128xf32>, vector<128x512xf32>, vector<8x512xf32> -> vector<8x512xf32>
    %203 = arith.addf %200, %202 : vector<8x512xf32>
    %204 = vector.extract_strided_slice %203 {offsets = [0, 0], sizes = [8, 128], strides = [1, 1]} : vector<8x512xf32> to vector<8x128xf32>
    %205 = arith.negf %204 : vector<8x128xf32>
    %206 = math.exp %205 : vector<8x128xf32>
    %cst_117 = arith.constant 1.000000e+00 : f32
    %207 = vector.broadcast %cst_117 : f32 to vector<8x128xf32>
    %208 = arith.addf %207, %206 : vector<8x128xf32>
    %209 = arith.divf %207, %208 : vector<8x128xf32>
    %210 = vector.extract_strided_slice %203 {offsets = [0, 128], sizes = [8, 128], strides = [1, 1]} : vector<8x512xf32> to vector<8x128xf32>
    %211 = arith.negf %210 : vector<8x128xf32>
    %212 = math.exp %211 : vector<8x128xf32>
    %cst_118 = arith.constant 1.000000e+00 : f32
    %213 = vector.broadcast %cst_118 : f32 to vector<8x128xf32>
    %214 = arith.addf %213, %212 : vector<8x128xf32>
    %215 = arith.divf %213, %214 : vector<8x128xf32>
    %216 = vector.extract_strided_slice %203 {offsets = [0, 256], sizes = [8, 128], strides = [1, 1]} : vector<8x512xf32> to vector<8x128xf32>
    %217 = math.tanh %216 : vector<8x128xf32>
    %218 = vector.extract_strided_slice %203 {offsets = [0, 384], sizes = [8, 128], strides = [1, 1]} : vector<8x512xf32> to vector<8x128xf32>
    %219 = arith.negf %218 : vector<8x128xf32>
    %220 = math.exp %219 : vector<8x128xf32>
    %cst_119 = arith.constant 1.000000e+00 : f32
    %221 = vector.broadcast %cst_119 : f32 to vector<8x128xf32>
    %222 = arith.addf %221, %220 : vector<8x128xf32>
    %223 = arith.divf %221, %222 : vector<8x128xf32>
    %c0_120 = arith.constant 0 : index
    %c0_121 = arith.constant 0 : index
    %224 = vector.load %arg9[%c0_120, %c0_121] : memref<8x128xf32, #tpu.memory_space<vmem>>, vector<8x128xf32>
    %225 = arith.mulf %215, %224 : vector<8x128xf32>
    %226 = arith.mulf %209, %217 : vector<8x128xf32>
    %227 = arith.addf %225, %226 : vector<8x128xf32>
    %228 = math.tanh %227 : vector<8x128xf32>
    %229 = arith.mulf %223, %228 : vector<8x128xf32>
    %c0_122 = arith.constant 0 : index
    %c0_123 = arith.constant 0 : index
    %230 = vector.load %arg9[%c0_122, %c0_123] : memref<8x128xf32, #tpu.memory_space<vmem>>, vector<8x128xf32>
    tpu.vector_store %arg9[%c0_122, %c0_123], %227 {strides = array<i32>} : memref<8x128xf32, #tpu.memory_space<vmem>>, vector<8x128xf32>,
    %c0_124 = arith.constant 0 : index
    %c0_125 = arith.constant 0 : index
    %231 = vector.load %arg8[%c0_124, %c0_125] : memref<8x128xf32, #tpu.memory_space<vmem>>, vector<8x128xf32>
    tpu.vector_store %arg8[%c0_124, %c0_125], %229 {strides = array<i32>} : memref<8x128xf32, #tpu.memory_space<vmem>>, vector<8x128xf32>,
    %c5_126 = arith.constant 5 : index
    %c0_127 = arith.constant 0 : index
    %c0_128 = arith.constant 0 : index
    %232 = vector.load %arg6[%c5_126, %c0_127, %c0_128] : memref<9x8x128xf32, #tpu.memory_space<vmem>>, vector<1x8x128xf32>
    %233 = vector.shape_cast %232 : vector<1x8x128xf32> to vector<8x128xf32>
    %234 = vector.shape_cast %229 : vector<8x128xf32> to vector<1x8x128xf32>
    tpu.vector_store %arg6[%c5_126, %c0_127, %c0_128], %234 {strides = array<i32>} : memref<9x8x128xf32, #tpu.memory_space<vmem>>, vector<1x8x128xf32>,
    %c6 = arith.constant 6 : index
    %c0_129 = arith.constant 0 : index
    %c0_130 = arith.constant 0 : index
    %235 = vector.load %arg7[%c6, %c0_129, %c0_130] : memref<9x8x512xf32, #tpu.memory_space<vmem>>, vector<1x8x512xf32>
    %236 = vector.shape_cast %235 : vector<1x8x512xf32> to vector<8x512xf32>
    %c0_131 = arith.constant 0 : index
    %c0_132 = arith.constant 0 : index
    %237 = vector.load %arg8[%c0_131, %c0_132] : memref<8x128xf32, #tpu.memory_space<vmem>>, vector<8x128xf32>
    %cst_133 = arith.constant dense<0.000000e+00> : vector<8x512xf32>
    %238 = tpu.matmul %237, %18, %cst_133 {dimension_numbers = #tpu.dot_dimension_numbers<[1], [0], [0], [1], [0, 0, 1, 1], [], []>} : vector<8x128xf32>, vector<128x512xf32>, vector<8x512xf32> -> vector<8x512xf32>
    %239 = arith.addf %236, %238 : vector<8x512xf32>
    %240 = vector.extract_strided_slice %239 {offsets = [0, 0], sizes = [8, 128], strides = [1, 1]} : vector<8x512xf32> to vector<8x128xf32>
    %241 = arith.negf %240 : vector<8x128xf32>
    %242 = math.exp %241 : vector<8x128xf32>
    %cst_134 = arith.constant 1.000000e+00 : f32
    %243 = vector.broadcast %cst_134 : f32 to vector<8x128xf32>
    %244 = arith.addf %243, %242 : vector<8x128xf32>
    %245 = arith.divf %243, %244 : vector<8x128xf32>
    %246 = vector.extract_strided_slice %239 {offsets = [0, 128], sizes = [8, 128], strides = [1, 1]} : vector<8x512xf32> to vector<8x128xf32>
    %247 = arith.negf %246 : vector<8x128xf32>
    %248 = math.exp %247 : vector<8x128xf32>
    %cst_135 = arith.constant 1.000000e+00 : f32
    %249 = vector.broadcast %cst_135 : f32 to vector<8x128xf32>
    %250 = arith.addf %249, %248 : vector<8x128xf32>
    %251 = arith.divf %249, %250 : vector<8x128xf32>
    %252 = vector.extract_strided_slice %239 {offsets = [0, 256], sizes = [8, 128], strides = [1, 1]} : vector<8x512xf32> to vector<8x128xf32>
    %253 = math.tanh %252 : vector<8x128xf32>
    %254 = vector.extract_strided_slice %239 {offsets = [0, 384], sizes = [8, 128], strides = [1, 1]} : vector<8x512xf32> to vector<8x128xf32>
    %255 = arith.negf %254 : vector<8x128xf32>
    %256 = math.exp %255 : vector<8x128xf32>
    %cst_136 = arith.constant 1.000000e+00 : f32
    %257 = vector.broadcast %cst_136 : f32 to vector<8x128xf32>
    %258 = arith.addf %257, %256 : vector<8x128xf32>
    %259 = arith.divf %257, %258 : vector<8x128xf32>
    %c0_137 = arith.constant 0 : index
    %c0_138 = arith.constant 0 : index
    %260 = vector.load %arg9[%c0_137, %c0_138] : memref<8x128xf32, #tpu.memory_space<vmem>>, vector<8x128xf32>
    %261 = arith.mulf %251, %260 : vector<8x128xf32>
    %262 = arith.mulf %245, %253 : vector<8x128xf32>
    %263 = arith.addf %261, %262 : vector<8x128xf32>
    %264 = math.tanh %263 : vector<8x128xf32>
    %265 = arith.mulf %259, %264 : vector<8x128xf32>
    %c0_139 = arith.constant 0 : index
    %c0_140 = arith.constant 0 : index
    %266 = vector.load %arg9[%c0_139, %c0_140] : memref<8x128xf32, #tpu.memory_space<vmem>>, vector<8x128xf32>
    tpu.vector_store %arg9[%c0_139, %c0_140], %263 {strides = array<i32>} : memref<8x128xf32, #tpu.memory_space<vmem>>, vector<8x128xf32>,
    %c0_141 = arith.constant 0 : index
    %c0_142 = arith.constant 0 : index
    %267 = vector.load %arg8[%c0_141, %c0_142] : memref<8x128xf32, #tpu.memory_space<vmem>>, vector<8x128xf32>
    tpu.vector_store %arg8[%c0_141, %c0_142], %265 {strides = array<i32>} : memref<8x128xf32, #tpu.memory_space<vmem>>, vector<8x128xf32>,
    %c6_143 = arith.constant 6 : index
    %c0_144 = arith.constant 0 : index
    %c0_145 = arith.constant 0 : index
    %268 = vector.load %arg6[%c6_143, %c0_144, %c0_145] : memref<9x8x128xf32, #tpu.memory_space<vmem>>, vector<1x8x128xf32>
    %269 = vector.shape_cast %268 : vector<1x8x128xf32> to vector<8x128xf32>
    %270 = vector.shape_cast %265 : vector<8x128xf32> to vector<1x8x128xf32>
    tpu.vector_store %arg6[%c6_143, %c0_144, %c0_145], %270 {strides = array<i32>} : memref<9x8x128xf32, #tpu.memory_space<vmem>>, vector<1x8x128xf32>,
    %c7 = arith.constant 7 : index
    %c0_146 = arith.constant 0 : index
    %c0_147 = arith.constant 0 : index
    %271 = vector.load %arg7[%c7, %c0_146, %c0_147] : memref<9x8x512xf32, #tpu.memory_space<vmem>>, vector<1x8x512xf32>
    %272 = vector.shape_cast %271 : vector<1x8x512xf32> to vector<8x512xf32>
    %c0_148 = arith.constant 0 : index
    %c0_149 = arith.constant 0 : index
    %273 = vector.load %arg8[%c0_148, %c0_149] : memref<8x128xf32, #tpu.memory_space<vmem>>, vector<8x128xf32>
    %cst_150 = arith.constant dense<0.000000e+00> : vector<8x512xf32>
    %274 = tpu.matmul %273, %18, %cst_150 {dimension_numbers = #tpu.dot_dimension_numbers<[1], [0], [0], [1], [0, 0, 1, 1], [], []>} : vector<8x128xf32>, vector<128x512xf32>, vector<8x512xf32> -> vector<8x512xf32>
    %275 = arith.addf %272, %274 : vector<8x512xf32>
    %276 = vector.extract_strided_slice %275 {offsets = [0, 0], sizes = [8, 128], strides = [1, 1]} : vector<8x512xf32> to vector<8x128xf32>
    %277 = arith.negf %276 : vector<8x128xf32>
    %278 = math.exp %277 : vector<8x128xf32>
    %cst_151 = arith.constant 1.000000e+00 : f32
    %279 = vector.broadcast %cst_151 : f32 to vector<8x128xf32>
    %280 = arith.addf %279, %278 : vector<8x128xf32>
    %281 = arith.divf %279, %280 : vector<8x128xf32>
    %282 = vector.extract_strided_slice %275 {offsets = [0, 128], sizes = [8, 128], strides = [1, 1]} : vector<8x512xf32> to vector<8x128xf32>
    %283 = arith.negf %282 : vector<8x128xf32>
    %284 = math.exp %283 : vector<8x128xf32>
    %cst_152 = arith.constant 1.000000e+00 : f32
    %285 = vector.broadcast %cst_152 : f32 to vector<8x128xf32>
    %286 = arith.addf %285, %284 : vector<8x128xf32>
    %287 = arith.divf %285, %286 : vector<8x128xf32>
    %288 = vector.extract_strided_slice %275 {offsets = [0, 256], sizes = [8, 128], strides = [1, 1]} : vector<8x512xf32> to vector<8x128xf32>
    %289 = math.tanh %288 : vector<8x128xf32>
    %290 = vector.extract_strided_slice %275 {offsets = [0, 384], sizes = [8, 128], strides = [1, 1]} : vector<8x512xf32> to vector<8x128xf32>
    %291 = arith.negf %290 : vector<8x128xf32>
    %292 = math.exp %291 : vector<8x128xf32>
    %cst_153 = arith.constant 1.000000e+00 : f32
    %293 = vector.broadcast %cst_153 : f32 to vector<8x128xf32>
    %294 = arith.addf %293, %292 : vector<8x128xf32>
    %295 = arith.divf %293, %294 : vector<8x128xf32>
    %c0_154 = arith.constant 0 : index
    %c0_155 = arith.constant 0 : index
    %296 = vector.load %arg9[%c0_154, %c0_155] : memref<8x128xf32, #tpu.memory_space<vmem>>, vector<8x128xf32>
    %297 = arith.mulf %287, %296 : vector<8x128xf32>
    %298 = arith.mulf %281, %289 : vector<8x128xf32>
    %299 = arith.addf %297, %298 : vector<8x128xf32>
    %300 = math.tanh %299 : vector<8x128xf32>
    %301 = arith.mulf %295, %300 : vector<8x128xf32>
    %c0_156 = arith.constant 0 : index
    %c0_157 = arith.constant 0 : index
    %302 = vector.load %arg9[%c0_156, %c0_157] : memref<8x128xf32, #tpu.memory_space<vmem>>, vector<8x128xf32>
    tpu.vector_store %arg9[%c0_156, %c0_157], %299 {strides = array<i32>} : memref<8x128xf32, #tpu.memory_space<vmem>>, vector<8x128xf32>,
    %c0_158 = arith.constant 0 : index
    %c0_159 = arith.constant 0 : index
    %303 = vector.load %arg8[%c0_158, %c0_159] : memref<8x128xf32, #tpu.memory_space<vmem>>, vector<8x128xf32>
    tpu.vector_store %arg8[%c0_158, %c0_159], %301 {strides = array<i32>} : memref<8x128xf32, #tpu.memory_space<vmem>>, vector<8x128xf32>,
    %c7_160 = arith.constant 7 : index
    %c0_161 = arith.constant 0 : index
    %c0_162 = arith.constant 0 : index
    %304 = vector.load %arg6[%c7_160, %c0_161, %c0_162] : memref<9x8x128xf32, #tpu.memory_space<vmem>>, vector<1x8x128xf32>
    %305 = vector.shape_cast %304 : vector<1x8x128xf32> to vector<8x128xf32>
    %306 = vector.shape_cast %301 : vector<8x128xf32> to vector<1x8x128xf32>
    tpu.vector_store %arg6[%c7_160, %c0_161, %c0_162], %306 {strides = array<i32>} : memref<9x8x128xf32, #tpu.memory_space<vmem>>, vector<1x8x128xf32>,
    %c8 = arith.constant 8 : index
    %c0_163 = arith.constant 0 : index
    %c0_164 = arith.constant 0 : index
    %307 = vector.load %arg7[%c8, %c0_163, %c0_164] : memref<9x8x512xf32, #tpu.memory_space<vmem>>, vector<1x8x512xf32>
    %308 = vector.shape_cast %307 : vector<1x8x512xf32> to vector<8x512xf32>
    %c0_165 = arith.constant 0 : index
    %c0_166 = arith.constant 0 : index
    %309 = vector.load %arg8[%c0_165, %c0_166] : memref<8x128xf32, #tpu.memory_space<vmem>>, vector<8x128xf32>
    %cst_167 = arith.constant dense<0.000000e+00> : vector<8x512xf32>
    %310 = tpu.matmul %309, %18, %cst_167 {dimension_numbers = #tpu.dot_dimension_numbers<[1], [0], [0], [1], [0, 0, 1, 1], [], []>} : vector<8x128xf32>, vector<128x512xf32>, vector<8x512xf32> -> vector<8x512xf32>
    %311 = arith.addf %308, %310 : vector<8x512xf32>
    %312 = vector.extract_strided_slice %311 {offsets = [0, 0], sizes = [8, 128], strides = [1, 1]} : vector<8x512xf32> to vector<8x128xf32>
    %313 = arith.negf %312 : vector<8x128xf32>
    %314 = math.exp %313 : vector<8x128xf32>
    %cst_168 = arith.constant 1.000000e+00 : f32
    %315 = vector.broadcast %cst_168 : f32 to vector<8x128xf32>
    %316 = arith.addf %315, %314 : vector<8x128xf32>
    %317 = arith.divf %315, %316 : vector<8x128xf32>
    %318 = vector.extract_strided_slice %311 {offsets = [0, 128], sizes = [8, 128], strides = [1, 1]} : vector<8x512xf32> to vector<8x128xf32>
    %319 = arith.negf %318 : vector<8x128xf32>
    %320 = math.exp %319 : vector<8x128xf32>
    %cst_169 = arith.constant 1.000000e+00 : f32
    %321 = vector.broadcast %cst_169 : f32 to vector<8x128xf32>
    %322 = arith.addf %321, %320 : vector<8x128xf32>
    %323 = arith.divf %321, %322 : vector<8x128xf32>
    %324 = vector.extract_strided_slice %311 {offsets = [0, 256], sizes = [8, 128], strides = [1, 1]} : vector<8x512xf32> to vector<8x128xf32>
    %325 = math.tanh %324 : vector<8x128xf32>
    %326 = vector.extract_strided_slice %311 {offsets = [0, 384], sizes = [8, 128], strides = [1, 1]} : vector<8x512xf32> to vector<8x128xf32>
    %327 = arith.negf %326 : vector<8x128xf32>
    %328 = math.exp %327 : vector<8x128xf32>
    %cst_170 = arith.constant 1.000000e+00 : f32
    %329 = vector.broadcast %cst_170 : f32 to vector<8x128xf32>
    %330 = arith.addf %329, %328 : vector<8x128xf32>
    %331 = arith.divf %329, %330 : vector<8x128xf32>
    %c0_171 = arith.constant 0 : index
    %c0_172 = arith.constant 0 : index
    %332 = vector.load %arg9[%c0_171, %c0_172] : memref<8x128xf32, #tpu.memory_space<vmem>>, vector<8x128xf32>
    %333 = arith.mulf %323, %332 : vector<8x128xf32>
    %334 = arith.mulf %317, %325 : vector<8x128xf32>
    %335 = arith.addf %333, %334 : vector<8x128xf32>
    %336 = math.tanh %335 : vector<8x128xf32>
    %337 = arith.mulf %331, %336 : vector<8x128xf32>
    %c0_173 = arith.constant 0 : index
    %c0_174 = arith.constant 0 : index
    %338 = vector.load %arg9[%c0_173, %c0_174] : memref<8x128xf32, #tpu.memory_space<vmem>>, vector<8x128xf32>
    tpu.vector_store %arg9[%c0_173, %c0_174], %335 {strides = array<i32>} : memref<8x128xf32, #tpu.memory_space<vmem>>, vector<8x128xf32>,
    %c0_175 = arith.constant 0 : index
    %c0_176 = arith.constant 0 : index
    %339 = vector.load %arg8[%c0_175, %c0_176] : memref<8x128xf32, #tpu.memory_space<vmem>>, vector<8x128xf32>
    tpu.vector_store %arg8[%c0_175, %c0_176], %337 {strides = array<i32>} : memref<8x128xf32, #tpu.memory_space<vmem>>, vector<8x128xf32>,
    %c8_177 = arith.constant 8 : index
    %c0_178 = arith.constant 0 : index
    %c0_179 = arith.constant 0 : index
    %340 = vector.load %arg6[%c8_177, %c0_178, %c0_179] : memref<9x8x128xf32, #tpu.memory_space<vmem>>, vector<1x8x128xf32>
    %341 = vector.shape_cast %340 : vector<1x8x128xf32> to vector<8x128xf32>
    %342 = vector.shape_cast %337 : vector<8x128xf32> to vector<1x8x128xf32>
    tpu.vector_store %arg6[%c8_177, %c0_178, %c0_179], %342 {strides = array<i32>} : memref<9x8x128xf32, #tpu.memory_space<vmem>>, vector<1x8x128xf32>,
    %c0_180 = arith.constant 0 : index
    %c0_181 = arith.constant 0 : index
    %c0_182 = arith.constant 0 : index
    %343 = vector.load %arg6[%c0_180, %c0_181, %c0_182] : memref<9x8x128xf32, #tpu.memory_space<vmem>>, vector<9x8x128xf32>
    %344 = vector.shape_cast %343 : vector<9x8x128xf32> to vector<72x128xf32>
    %c1_183 = arith.constant 1 : index
    %c0_184 = arith.constant 0 : index
    %c0_185 = arith.constant 0 : index
    %345 = vector.load %arg2[%c1_183, %c0_184, %c0_185] : memref<2x128x512xf32, #tpu.memory_space<vmem>>, vector<1x128x512xf32>
    %346 = vector.shape_cast %345 : vector<1x128x512xf32> to vector<128x512xf32>
    %cst_186 = arith.constant dense<0.000000e+00> : vector<72x512xf32>
    %347 = tpu.matmul %344, %346, %cst_186 {dimension_numbers = #tpu.dot_dimension_numbers<[1], [0], [0], [1], [0, 0, 1, 1], [], []>} : vector<72x128xf32>, vector<128x512xf32>, vector<72x512xf32> -> vector<72x512xf32>
    %c1_187 = arith.constant 1 : index
    %c0_188 = arith.constant 0 : index
    %c0_189 = arith.constant 0 : index
    %348 = vector.load %arg4[%c1_187, %c0_188, %c0_189] : memref<2x1x512xf32, #tpu.memory_space<vmem>>, vector<1x1x512xf32>
    %349 = vector.shape_cast %348 : vector<1x1x512xf32> to vector<1x512xf32>
    %350 = vector.broadcast %349 : vector<1x512xf32> to vector<72x512xf32>
    %351 = arith.addf %347, %350 : vector<72x512xf32>
    %352 = vector.shape_cast %351 : vector<72x512xf32> to vector<9x8x512xf32>
    %c0_190 = arith.constant 0 : index
    %c0_191 = arith.constant 0 : index
    %c0_192 = arith.constant 0 : index
    %353 = vector.load %arg7[%c0_190, %c0_191, %c0_192] : memref<9x8x512xf32, #tpu.memory_space<vmem>>, vector<9x8x512xf32>
    tpu.vector_store %arg7[%c0_190, %c0_191, %c0_192], %352 {strides = array<i32>} : memref<9x8x512xf32, #tpu.memory_space<vmem>>, vector<9x8x512xf32>,
    %cst_193 = arith.constant 0.000000e+00 : f32
    %354 = vector.broadcast %cst_193 : f32 to vector<8x128xf32>
    %c0_194 = arith.constant 0 : index
    %c0_195 = arith.constant 0 : index
    %355 = vector.load %arg8[%c0_194, %c0_195] : memref<8x128xf32, #tpu.memory_space<vmem>>, vector<8x128xf32>
    tpu.vector_store %arg8[%c0_194, %c0_195], %354 {strides = array<i32>} : memref<8x128xf32, #tpu.memory_space<vmem>>, vector<8x128xf32>,
    %cst_196 = arith.constant 0.000000e+00 : f32
    %356 = vector.broadcast %cst_196 : f32 to vector<8x128xf32>
    %c0_197 = arith.constant 0 : index
    %c0_198 = arith.constant 0 : index
    %357 = vector.load %arg9[%c0_197, %c0_198] : memref<8x128xf32, #tpu.memory_space<vmem>>, vector<8x128xf32>
    tpu.vector_store %arg9[%c0_197, %c0_198], %356 {strides = array<i32>} : memref<8x128xf32, #tpu.memory_space<vmem>>, vector<8x128xf32>,
    %c1_199 = arith.constant 1 : index
    %c0_200 = arith.constant 0 : index
    %c0_201 = arith.constant 0 : index
    %358 = vector.load %arg3[%c1_199, %c0_200, %c0_201] : memref<2x128x512xf32, #tpu.memory_space<vmem>>, vector<1x128x512xf32>
    %359 = vector.shape_cast %358 : vector<1x128x512xf32> to vector<128x512xf32>
    %c0_202 = arith.constant 0 : index
    %c0_203 = arith.constant 0 : index
    %c0_204 = arith.constant 0 : index
    %360 = vector.load %arg7[%c0_202, %c0_203, %c0_204] : memref<9x8x512xf32, #tpu.memory_space<vmem>>, vector<1x8x512xf32>
    %361 = vector.shape_cast %360 : vector<1x8x512xf32> to vector<8x512xf32>
    %c0_205 = arith.constant 0 : index
    %c0_206 = arith.constant 0 : index
    %362 = vector.load %arg8[%c0_205, %c0_206] : memref<8x128xf32, #tpu.memory_space<vmem>>, vector<8x128xf32>
    %cst_207 = arith.constant dense<0.000000e+00> : vector<8x512xf32>
    %363 = tpu.matmul %362, %359, %cst_207 {dimension_numbers = #tpu.dot_dimension_numbers<[1], [0], [0], [1], [0, 0, 1, 1], [], []>} : vector<8x128xf32>, vector<128x512xf32>, vector<8x512xf32> -> vector<8x512xf32>
    %364 = arith.addf %361, %363 : vector<8x512xf32>
    %365 = vector.extract_strided_slice %364 {offsets = [0, 0], sizes = [8, 128], strides = [1, 1]} : vector<8x512xf32> to vector<8x128xf32>
    %366 = arith.negf %365 : vector<8x128xf32>
    %367 = math.exp %366 : vector<8x128xf32>
    %cst_208 = arith.constant 1.000000e+00 : f32
    %368 = vector.broadcast %cst_208 : f32 to vector<8x128xf32>
    %369 = arith.addf %368, %367 : vector<8x128xf32>
    %370 = arith.divf %368, %369 : vector<8x128xf32>
    %371 = vector.extract_strided_slice %364 {offsets = [0, 128], sizes = [8, 128], strides = [1, 1]} : vector<8x512xf32> to vector<8x128xf32>
    %372 = arith.negf %371 : vector<8x128xf32>
    %373 = math.exp %372 : vector<8x128xf32>
    %cst_209 = arith.constant 1.000000e+00 : f32
    %374 = vector.broadcast %cst_209 : f32 to vector<8x128xf32>
    %375 = arith.addf %374, %373 : vector<8x128xf32>
    %376 = arith.divf %374, %375 : vector<8x128xf32>
    %377 = vector.extract_strided_slice %364 {offsets = [0, 256], sizes = [8, 128], strides = [1, 1]} : vector<8x512xf32> to vector<8x128xf32>
    %378 = math.tanh %377 : vector<8x128xf32>
    %379 = vector.extract_strided_slice %364 {offsets = [0, 384], sizes = [8, 128], strides = [1, 1]} : vector<8x512xf32> to vector<8x128xf32>
    %380 = arith.negf %379 : vector<8x128xf32>
    %381 = math.exp %380 : vector<8x128xf32>
    %cst_210 = arith.constant 1.000000e+00 : f32
    %382 = vector.broadcast %cst_210 : f32 to vector<8x128xf32>
    %383 = arith.addf %382, %381 : vector<8x128xf32>
    %384 = arith.divf %382, %383 : vector<8x128xf32>
    %c0_211 = arith.constant 0 : index
    %c0_212 = arith.constant 0 : index
    %385 = vector.load %arg9[%c0_211, %c0_212] : memref<8x128xf32, #tpu.memory_space<vmem>>, vector<8x128xf32>
    %386 = arith.mulf %376, %385 : vector<8x128xf32>
    %387 = arith.mulf %370, %378 : vector<8x128xf32>
    %388 = arith.addf %386, %387 : vector<8x128xf32>
    %389 = math.tanh %388 : vector<8x128xf32>
    %390 = arith.mulf %384, %389 : vector<8x128xf32>
    %c0_213 = arith.constant 0 : index
    %c0_214 = arith.constant 0 : index
    %391 = vector.load %arg9[%c0_213, %c0_214] : memref<8x128xf32, #tpu.memory_space<vmem>>, vector<8x128xf32>
    tpu.vector_store %arg9[%c0_213, %c0_214], %388 {strides = array<i32>} : memref<8x128xf32, #tpu.memory_space<vmem>>, vector<8x128xf32>,
    %c0_215 = arith.constant 0 : index
    %c0_216 = arith.constant 0 : index
    %392 = vector.load %arg8[%c0_215, %c0_216] : memref<8x128xf32, #tpu.memory_space<vmem>>, vector<8x128xf32>
    tpu.vector_store %arg8[%c0_215, %c0_216], %390 {strides = array<i32>} : memref<8x128xf32, #tpu.memory_space<vmem>>, vector<8x128xf32>,
    %c0_217 = arith.constant 0 : index
    %c0_218 = arith.constant 0 : index
    %c0_219 = arith.constant 0 : index
    %393 = vector.load %arg5[%c0_217, %c0_218, %c0_219] : memref<9x8x128xf32, #tpu.memory_space<vmem>>, vector<1x8x128xf32>
    %394 = vector.shape_cast %393 : vector<1x8x128xf32> to vector<8x128xf32>
    %395 = vector.shape_cast %390 : vector<8x128xf32> to vector<1x8x128xf32>
    tpu.vector_store %arg5[%c0_217, %c0_218, %c0_219], %395 {strides = array<i32>} : memref<9x8x128xf32, #tpu.memory_space<vmem>>, vector<1x8x128xf32>,
    %c1_220 = arith.constant 1 : index
    %c0_221 = arith.constant 0 : index
    %c0_222 = arith.constant 0 : index
    %396 = vector.load %arg7[%c1_220, %c0_221, %c0_222] : memref<9x8x512xf32, #tpu.memory_space<vmem>>, vector<1x8x512xf32>
    %397 = vector.shape_cast %396 : vector<1x8x512xf32> to vector<8x512xf32>
    %c0_223 = arith.constant 0 : index
    %c0_224 = arith.constant 0 : index
    %398 = vector.load %arg8[%c0_223, %c0_224] : memref<8x128xf32, #tpu.memory_space<vmem>>, vector<8x128xf32>
    %cst_225 = arith.constant dense<0.000000e+00> : vector<8x512xf32>
    %399 = tpu.matmul %398, %359, %cst_225 {dimension_numbers = #tpu.dot_dimension_numbers<[1], [0], [0], [1], [0, 0, 1, 1], [], []>} : vector<8x128xf32>, vector<128x512xf32>, vector<8x512xf32> -> vector<8x512xf32>
    %400 = arith.addf %397, %399 : vector<8x512xf32>
    %401 = vector.extract_strided_slice %400 {offsets = [0, 0], sizes = [8, 128], strides = [1, 1]} : vector<8x512xf32> to vector<8x128xf32>
    %402 = arith.negf %401 : vector<8x128xf32>
    %403 = math.exp %402 : vector<8x128xf32>
    %cst_226 = arith.constant 1.000000e+00 : f32
    %404 = vector.broadcast %cst_226 : f32 to vector<8x128xf32>
    %405 = arith.addf %404, %403 : vector<8x128xf32>
    %406 = arith.divf %404, %405 : vector<8x128xf32>
    %407 = vector.extract_strided_slice %400 {offsets = [0, 128], sizes = [8, 128], strides = [1, 1]} : vector<8x512xf32> to vector<8x128xf32>
    %408 = arith.negf %407 : vector<8x128xf32>
    %409 = math.exp %408 : vector<8x128xf32>
    %cst_227 = arith.constant 1.000000e+00 : f32
    %410 = vector.broadcast %cst_227 : f32 to vector<8x128xf32>
    %411 = arith.addf %410, %409 : vector<8x128xf32>
    %412 = arith.divf %410, %411 : vector<8x128xf32>
    %413 = vector.extract_strided_slice %400 {offsets = [0, 256], sizes = [8, 128], strides = [1, 1]} : vector<8x512xf32> to vector<8x128xf32>
    %414 = math.tanh %413 : vector<8x128xf32>
    %415 = vector.extract_strided_slice %400 {offsets = [0, 384], sizes = [8, 128], strides = [1, 1]} : vector<8x512xf32> to vector<8x128xf32>
    %416 = arith.negf %415 : vector<8x128xf32>
    %417 = math.exp %416 : vector<8x128xf32>
    %cst_228 = arith.constant 1.000000e+00 : f32
    %418 = vector.broadcast %cst_228 : f32 to vector<8x128xf32>
    %419 = arith.addf %418, %417 : vector<8x128xf32>
    %420 = arith.divf %418, %419 : vector<8x128xf32>
    %c0_229 = arith.constant 0 : index
    %c0_230 = arith.constant 0 : index
    %421 = vector.load %arg9[%c0_229, %c0_230] : memref<8x128xf32, #tpu.memory_space<vmem>>, vector<8x128xf32>
    %422 = arith.mulf %412, %421 : vector<8x128xf32>
    %423 = arith.mulf %406, %414 : vector<8x128xf32>
    %424 = arith.addf %422, %423 : vector<8x128xf32>
    %425 = math.tanh %424 : vector<8x128xf32>
    %426 = arith.mulf %420, %425 : vector<8x128xf32>
    %c0_231 = arith.constant 0 : index
    %c0_232 = arith.constant 0 : index
    %427 = vector.load %arg9[%c0_231, %c0_232] : memref<8x128xf32, #tpu.memory_space<vmem>>, vector<8x128xf32>
    tpu.vector_store %arg9[%c0_231, %c0_232], %424 {strides = array<i32>} : memref<8x128xf32, #tpu.memory_space<vmem>>, vector<8x128xf32>,
    %c0_233 = arith.constant 0 : index
    %c0_234 = arith.constant 0 : index
    %428 = vector.load %arg8[%c0_233, %c0_234] : memref<8x128xf32, #tpu.memory_space<vmem>>, vector<8x128xf32>
    tpu.vector_store %arg8[%c0_233, %c0_234], %426 {strides = array<i32>} : memref<8x128xf32, #tpu.memory_space<vmem>>, vector<8x128xf32>,
    %c1_235 = arith.constant 1 : index
    %c0_236 = arith.constant 0 : index
    %c0_237 = arith.constant 0 : index
    %429 = vector.load %arg5[%c1_235, %c0_236, %c0_237] : memref<9x8x128xf32, #tpu.memory_space<vmem>>, vector<1x8x128xf32>
    %430 = vector.shape_cast %429 : vector<1x8x128xf32> to vector<8x128xf32>
    %431 = vector.shape_cast %426 : vector<8x128xf32> to vector<1x8x128xf32>
    tpu.vector_store %arg5[%c1_235, %c0_236, %c0_237], %431 {strides = array<i32>} : memref<9x8x128xf32, #tpu.memory_space<vmem>>, vector<1x8x128xf32>,
    %c2_238 = arith.constant 2 : index
    %c0_239 = arith.constant 0 : index
    %c0_240 = arith.constant 0 : index
    %432 = vector.load %arg7[%c2_238, %c0_239, %c0_240] : memref<9x8x512xf32, #tpu.memory_space<vmem>>, vector<1x8x512xf32>
    %433 = vector.shape_cast %432 : vector<1x8x512xf32> to vector<8x512xf32>
    %c0_241 = arith.constant 0 : index
    %c0_242 = arith.constant 0 : index
    %434 = vector.load %arg8[%c0_241, %c0_242] : memref<8x128xf32, #tpu.memory_space<vmem>>, vector<8x128xf32>
    %cst_243 = arith.constant dense<0.000000e+00> : vector<8x512xf32>
    %435 = tpu.matmul %434, %359, %cst_243 {dimension_numbers = #tpu.dot_dimension_numbers<[1], [0], [0], [1], [0, 0, 1, 1], [], []>} : vector<8x128xf32>, vector<128x512xf32>, vector<8x512xf32> -> vector<8x512xf32>
    %436 = arith.addf %433, %435 : vector<8x512xf32>
    %437 = vector.extract_strided_slice %436 {offsets = [0, 0], sizes = [8, 128], strides = [1, 1]} : vector<8x512xf32> to vector<8x128xf32>
    %438 = arith.negf %437 : vector<8x128xf32>
    %439 = math.exp %438 : vector<8x128xf32>
    %cst_244 = arith.constant 1.000000e+00 : f32
    %440 = vector.broadcast %cst_244 : f32 to vector<8x128xf32>
    %441 = arith.addf %440, %439 : vector<8x128xf32>
    %442 = arith.divf %440, %441 : vector<8x128xf32>
    %443 = vector.extract_strided_slice %436 {offsets = [0, 128], sizes = [8, 128], strides = [1, 1]} : vector<8x512xf32> to vector<8x128xf32>
    %444 = arith.negf %443 : vector<8x128xf32>
    %445 = math.exp %444 : vector<8x128xf32>
    %cst_245 = arith.constant 1.000000e+00 : f32
    %446 = vector.broadcast %cst_245 : f32 to vector<8x128xf32>
    %447 = arith.addf %446, %445 : vector<8x128xf32>
    %448 = arith.divf %446, %447 : vector<8x128xf32>
    %449 = vector.extract_strided_slice %436 {offsets = [0, 256], sizes = [8, 128], strides = [1, 1]} : vector<8x512xf32> to vector<8x128xf32>
    %450 = math.tanh %449 : vector<8x128xf32>
    %451 = vector.extract_strided_slice %436 {offsets = [0, 384], sizes = [8, 128], strides = [1, 1]} : vector<8x512xf32> to vector<8x128xf32>
    %452 = arith.negf %451 : vector<8x128xf32>
    %453 = math.exp %452 : vector<8x128xf32>
    %cst_246 = arith.constant 1.000000e+00 : f32
    %454 = vector.broadcast %cst_246 : f32 to vector<8x128xf32>
    %455 = arith.addf %454, %453 : vector<8x128xf32>
    %456 = arith.divf %454, %455 : vector<8x128xf32>
    %c0_247 = arith.constant 0 : index
    %c0_248 = arith.constant 0 : index
    %457 = vector.load %arg9[%c0_247, %c0_248] : memref<8x128xf32, #tpu.memory_space<vmem>>, vector<8x128xf32>
    %458 = arith.mulf %448, %457 : vector<8x128xf32>
    %459 = arith.mulf %442, %450 : vector<8x128xf32>
    %460 = arith.addf %458, %459 : vector<8x128xf32>
    %461 = math.tanh %460 : vector<8x128xf32>
    %462 = arith.mulf %456, %461 : vector<8x128xf32>
    %c0_249 = arith.constant 0 : index
    %c0_250 = arith.constant 0 : index
    %463 = vector.load %arg9[%c0_249, %c0_250] : memref<8x128xf32, #tpu.memory_space<vmem>>, vector<8x128xf32>
    tpu.vector_store %arg9[%c0_249, %c0_250], %460 {strides = array<i32>} : memref<8x128xf32, #tpu.memory_space<vmem>>, vector<8x128xf32>,
    %c0_251 = arith.constant 0 : index
    %c0_252 = arith.constant 0 : index
    %464 = vector.load %arg8[%c0_251, %c0_252] : memref<8x128xf32, #tpu.memory_space<vmem>>, vector<8x128xf32>
    tpu.vector_store %arg8[%c0_251, %c0_252], %462 {strides = array<i32>} : memref<8x128xf32, #tpu.memory_space<vmem>>, vector<8x128xf32>,
    %c2_253 = arith.constant 2 : index
    %c0_254 = arith.constant 0 : index
    %c0_255 = arith.constant 0 : index
    %465 = vector.load %arg5[%c2_253, %c0_254, %c0_255] : memref<9x8x128xf32, #tpu.memory_space<vmem>>, vector<1x8x128xf32>
    %466 = vector.shape_cast %465 : vector<1x8x128xf32> to vector<8x128xf32>
    %467 = vector.shape_cast %462 : vector<8x128xf32> to vector<1x8x128xf32>
    tpu.vector_store %arg5[%c2_253, %c0_254, %c0_255], %467 {strides = array<i32>} : memref<9x8x128xf32, #tpu.memory_space<vmem>>, vector<1x8x128xf32>,
    %c3_256 = arith.constant 3 : index
    %c0_257 = arith.constant 0 : index
    %c0_258 = arith.constant 0 : index
    %468 = vector.load %arg7[%c3_256, %c0_257, %c0_258] : memref<9x8x512xf32, #tpu.memory_space<vmem>>, vector<1x8x512xf32>
    %469 = vector.shape_cast %468 : vector<1x8x512xf32> to vector<8x512xf32>
    %c0_259 = arith.constant 0 : index
    %c0_260 = arith.constant 0 : index
    %470 = vector.load %arg8[%c0_259, %c0_260] : memref<8x128xf32, #tpu.memory_space<vmem>>, vector<8x128xf32>
    %cst_261 = arith.constant dense<0.000000e+00> : vector<8x512xf32>
    %471 = tpu.matmul %470, %359, %cst_261 {dimension_numbers = #tpu.dot_dimension_numbers<[1], [0], [0], [1], [0, 0, 1, 1], [], []>} : vector<8x128xf32>, vector<128x512xf32>, vector<8x512xf32> -> vector<8x512xf32>
    %472 = arith.addf %469, %471 : vector<8x512xf32>
    %473 = vector.extract_strided_slice %472 {offsets = [0, 0], sizes = [8, 128], strides = [1, 1]} : vector<8x512xf32> to vector<8x128xf32>
    %474 = arith.negf %473 : vector<8x128xf32>
    %475 = math.exp %474 : vector<8x128xf32>
    %cst_262 = arith.constant 1.000000e+00 : f32
    %476 = vector.broadcast %cst_262 : f32 to vector<8x128xf32>
    %477 = arith.addf %476, %475 : vector<8x128xf32>
    %478 = arith.divf %476, %477 : vector<8x128xf32>
    %479 = vector.extract_strided_slice %472 {offsets = [0, 128], sizes = [8, 128], strides = [1, 1]} : vector<8x512xf32> to vector<8x128xf32>
    %480 = arith.negf %479 : vector<8x128xf32>
    %481 = math.exp %480 : vector<8x128xf32>
    %cst_263 = arith.constant 1.000000e+00 : f32
    %482 = vector.broadcast %cst_263 : f32 to vector<8x128xf32>
    %483 = arith.addf %482, %481 : vector<8x128xf32>
    %484 = arith.divf %482, %483 : vector<8x128xf32>
    %485 = vector.extract_strided_slice %472 {offsets = [0, 256], sizes = [8, 128], strides = [1, 1]} : vector<8x512xf32> to vector<8x128xf32>
    %486 = math.tanh %485 : vector<8x128xf32>
    %487 = vector.extract_strided_slice %472 {offsets = [0, 384], sizes = [8, 128], strides = [1, 1]} : vector<8x512xf32> to vector<8x128xf32>
    %488 = arith.negf %487 : vector<8x128xf32>
    %489 = math.exp %488 : vector<8x128xf32>
    %cst_264 = arith.constant 1.000000e+00 : f32
    %490 = vector.broadcast %cst_264 : f32 to vector<8x128xf32>
    %491 = arith.addf %490, %489 : vector<8x128xf32>
    %492 = arith.divf %490, %491 : vector<8x128xf32>
    %c0_265 = arith.constant 0 : index
    %c0_266 = arith.constant 0 : index
    %493 = vector.load %arg9[%c0_265, %c0_266] : memref<8x128xf32, #tpu.memory_space<vmem>>, vector<8x128xf32>
    %494 = arith.mulf %484, %493 : vector<8x128xf32>
    %495 = arith.mulf %478, %486 : vector<8x128xf32>
    %496 = arith.addf %494, %495 : vector<8x128xf32>
    %497 = math.tanh %496 : vector<8x128xf32>
    %498 = arith.mulf %492, %497 : vector<8x128xf32>
    %c0_267 = arith.constant 0 : index
    %c0_268 = arith.constant 0 : index
    %499 = vector.load %arg9[%c0_267, %c0_268] : memref<8x128xf32, #tpu.memory_space<vmem>>, vector<8x128xf32>
    tpu.vector_store %arg9[%c0_267, %c0_268], %496 {strides = array<i32>} : memref<8x128xf32, #tpu.memory_space<vmem>>, vector<8x128xf32>,
    %c0_269 = arith.constant 0 : index
    %c0_270 = arith.constant 0 : index
    %500 = vector.load %arg8[%c0_269, %c0_270] : memref<8x128xf32, #tpu.memory_space<vmem>>, vector<8x128xf32>
    tpu.vector_store %arg8[%c0_269, %c0_270], %498 {strides = array<i32>} : memref<8x128xf32, #tpu.memory_space<vmem>>, vector<8x128xf32>,
    %c3_271 = arith.constant 3 : index
    %c0_272 = arith.constant 0 : index
    %c0_273 = arith.constant 0 : index
    %501 = vector.load %arg5[%c3_271, %c0_272, %c0_273] : memref<9x8x128xf32, #tpu.memory_space<vmem>>, vector<1x8x128xf32>
    %502 = vector.shape_cast %501 : vector<1x8x128xf32> to vector<8x128xf32>
    %503 = vector.shape_cast %498 : vector<8x128xf32> to vector<1x8x128xf32>
    tpu.vector_store %arg5[%c3_271, %c0_272, %c0_273], %503 {strides = array<i32>} : memref<9x8x128xf32, #tpu.memory_space<vmem>>, vector<1x8x128xf32>,
    %c4_274 = arith.constant 4 : index
    %c0_275 = arith.constant 0 : index
    %c0_276 = arith.constant 0 : index
    %504 = vector.load %arg7[%c4_274, %c0_275, %c0_276] : memref<9x8x512xf32, #tpu.memory_space<vmem>>, vector<1x8x512xf32>
    %505 = vector.shape_cast %504 : vector<1x8x512xf32> to vector<8x512xf32>
    %c0_277 = arith.constant 0 : index
    %c0_278 = arith.constant 0 : index
    %506 = vector.load %arg8[%c0_277, %c0_278] : memref<8x128xf32, #tpu.memory_space<vmem>>, vector<8x128xf32>
    %cst_279 = arith.constant dense<0.000000e+00> : vector<8x512xf32>
    %507 = tpu.matmul %506, %359, %cst_279 {dimension_numbers = #tpu.dot_dimension_numbers<[1], [0], [0], [1], [0, 0, 1, 1], [], []>} : vector<8x128xf32>, vector<128x512xf32>, vector<8x512xf32> -> vector<8x512xf32>
    %508 = arith.addf %505, %507 : vector<8x512xf32>
    %509 = vector.extract_strided_slice %508 {offsets = [0, 0], sizes = [8, 128], strides = [1, 1]} : vector<8x512xf32> to vector<8x128xf32>
    %510 = arith.negf %509 : vector<8x128xf32>
    %511 = math.exp %510 : vector<8x128xf32>
    %cst_280 = arith.constant 1.000000e+00 : f32
    %512 = vector.broadcast %cst_280 : f32 to vector<8x128xf32>
    %513 = arith.addf %512, %511 : vector<8x128xf32>
    %514 = arith.divf %512, %513 : vector<8x128xf32>
    %515 = vector.extract_strided_slice %508 {offsets = [0, 128], sizes = [8, 128], strides = [1, 1]} : vector<8x512xf32> to vector<8x128xf32>
    %516 = arith.negf %515 : vector<8x128xf32>
    %517 = math.exp %516 : vector<8x128xf32>
    %cst_281 = arith.constant 1.000000e+00 : f32
    %518 = vector.broadcast %cst_281 : f32 to vector<8x128xf32>
    %519 = arith.addf %518, %517 : vector<8x128xf32>
    %520 = arith.divf %518, %519 : vector<8x128xf32>
    %521 = vector.extract_strided_slice %508 {offsets = [0, 256], sizes = [8, 128], strides = [1, 1]} : vector<8x512xf32> to vector<8x128xf32>
    %522 = math.tanh %521 : vector<8x128xf32>
    %523 = vector.extract_strided_slice %508 {offsets = [0, 384], sizes = [8, 128], strides = [1, 1]} : vector<8x512xf32> to vector<8x128xf32>
    %524 = arith.negf %523 : vector<8x128xf32>
    %525 = math.exp %524 : vector<8x128xf32>
    %cst_282 = arith.constant 1.000000e+00 : f32
    %526 = vector.broadcast %cst_282 : f32 to vector<8x128xf32>
    %527 = arith.addf %526, %525 : vector<8x128xf32>
    %528 = arith.divf %526, %527 : vector<8x128xf32>
    %c0_283 = arith.constant 0 : index
    %c0_284 = arith.constant 0 : index
    %529 = vector.load %arg9[%c0_283, %c0_284] : memref<8x128xf32, #tpu.memory_space<vmem>>, vector<8x128xf32>
    %530 = arith.mulf %520, %529 : vector<8x128xf32>
    %531 = arith.mulf %514, %522 : vector<8x128xf32>
    %532 = arith.addf %530, %531 : vector<8x128xf32>
    %533 = math.tanh %532 : vector<8x128xf32>
    %534 = arith.mulf %528, %533 : vector<8x128xf32>
    %c0_285 = arith.constant 0 : index
    %c0_286 = arith.constant 0 : index
    %535 = vector.load %arg9[%c0_285, %c0_286] : memref<8x128xf32, #tpu.memory_space<vmem>>, vector<8x128xf32>
    tpu.vector_store %arg9[%c0_285, %c0_286], %532 {strides = array<i32>} : memref<8x128xf32, #tpu.memory_space<vmem>>, vector<8x128xf32>,
    %c0_287 = arith.constant 0 : index
    %c0_288 = arith.constant 0 : index
    %536 = vector.load %arg8[%c0_287, %c0_288] : memref<8x128xf32, #tpu.memory_space<vmem>>, vector<8x128xf32>
    tpu.vector_store %arg8[%c0_287, %c0_288], %534 {strides = array<i32>} : memref<8x128xf32, #tpu.memory_space<vmem>>, vector<8x128xf32>,
    %c4_289 = arith.constant 4 : index
    %c0_290 = arith.constant 0 : index
    %c0_291 = arith.constant 0 : index
    %537 = vector.load %arg5[%c4_289, %c0_290, %c0_291] : memref<9x8x128xf32, #tpu.memory_space<vmem>>, vector<1x8x128xf32>
    %538 = vector.shape_cast %537 : vector<1x8x128xf32> to vector<8x128xf32>
    %539 = vector.shape_cast %534 : vector<8x128xf32> to vector<1x8x128xf32>
    tpu.vector_store %arg5[%c4_289, %c0_290, %c0_291], %539 {strides = array<i32>} : memref<9x8x128xf32, #tpu.memory_space<vmem>>, vector<1x8x128xf32>,
    %c5_292 = arith.constant 5 : index
    %c0_293 = arith.constant 0 : index
    %c0_294 = arith.constant 0 : index
    %540 = vector.load %arg7[%c5_292, %c0_293, %c0_294] : memref<9x8x512xf32, #tpu.memory_space<vmem>>, vector<1x8x512xf32>
    %541 = vector.shape_cast %540 : vector<1x8x512xf32> to vector<8x512xf32>
    %c0_295 = arith.constant 0 : index
    %c0_296 = arith.constant 0 : index
    %542 = vector.load %arg8[%c0_295, %c0_296] : memref<8x128xf32, #tpu.memory_space<vmem>>, vector<8x128xf32>
    %cst_297 = arith.constant dense<0.000000e+00> : vector<8x512xf32>
    %543 = tpu.matmul %542, %359, %cst_297 {dimension_numbers = #tpu.dot_dimension_numbers<[1], [0], [0], [1], [0, 0, 1, 1], [], []>} : vector<8x128xf32>, vector<128x512xf32>, vector<8x512xf32> -> vector<8x512xf32>
    %544 = arith.addf %541, %543 : vector<8x512xf32>
    %545 = vector.extract_strided_slice %544 {offsets = [0, 0], sizes = [8, 128], strides = [1, 1]} : vector<8x512xf32> to vector<8x128xf32>
    %546 = arith.negf %545 : vector<8x128xf32>
    %547 = math.exp %546 : vector<8x128xf32>
    %cst_298 = arith.constant 1.000000e+00 : f32
    %548 = vector.broadcast %cst_298 : f32 to vector<8x128xf32>
    %549 = arith.addf %548, %547 : vector<8x128xf32>
    %550 = arith.divf %548, %549 : vector<8x128xf32>
    %551 = vector.extract_strided_slice %544 {offsets = [0, 128], sizes = [8, 128], strides = [1, 1]} : vector<8x512xf32> to vector<8x128xf32>
    %552 = arith.negf %551 : vector<8x128xf32>
    %553 = math.exp %552 : vector<8x128xf32>
    %cst_299 = arith.constant 1.000000e+00 : f32
    %554 = vector.broadcast %cst_299 : f32 to vector<8x128xf32>
    %555 = arith.addf %554, %553 : vector<8x128xf32>
    %556 = arith.divf %554, %555 : vector<8x128xf32>
    %557 = vector.extract_strided_slice %544 {offsets = [0, 256], sizes = [8, 128], strides = [1, 1]} : vector<8x512xf32> to vector<8x128xf32>
    %558 = math.tanh %557 : vector<8x128xf32>
    %559 = vector.extract_strided_slice %544 {offsets = [0, 384], sizes = [8, 128], strides = [1, 1]} : vector<8x512xf32> to vector<8x128xf32>
    %560 = arith.negf %559 : vector<8x128xf32>
    %561 = math.exp %560 : vector<8x128xf32>
    %cst_300 = arith.constant 1.000000e+00 : f32
    %562 = vector.broadcast %cst_300 : f32 to vector<8x128xf32>
    %563 = arith.addf %562, %561 : vector<8x128xf32>
    %564 = arith.divf %562, %563 : vector<8x128xf32>
    %c0_301 = arith.constant 0 : index
    %c0_302 = arith.constant 0 : index
    %565 = vector.load %arg9[%c0_301, %c0_302] : memref<8x128xf32, #tpu.memory_space<vmem>>, vector<8x128xf32>
    %566 = arith.mulf %556, %565 : vector<8x128xf32>
    %567 = arith.mulf %550, %558 : vector<8x128xf32>
    %568 = arith.addf %566, %567 : vector<8x128xf32>
    %569 = math.tanh %568 : vector<8x128xf32>
    %570 = arith.mulf %564, %569 : vector<8x128xf32>
    %c0_303 = arith.constant 0 : index
    %c0_304 = arith.constant 0 : index
    %571 = vector.load %arg9[%c0_303, %c0_304] : memref<8x128xf32, #tpu.memory_space<vmem>>, vector<8x128xf32>
    tpu.vector_store %arg9[%c0_303, %c0_304], %568 {strides = array<i32>} : memref<8x128xf32, #tpu.memory_space<vmem>>, vector<8x128xf32>,
    %c0_305 = arith.constant 0 : index
    %c0_306 = arith.constant 0 : index
    %572 = vector.load %arg8[%c0_305, %c0_306] : memref<8x128xf32, #tpu.memory_space<vmem>>, vector<8x128xf32>
    tpu.vector_store %arg8[%c0_305, %c0_306], %570 {strides = array<i32>} : memref<8x128xf32, #tpu.memory_space<vmem>>, vector<8x128xf32>,
    %c5_307 = arith.constant 5 : index
    %c0_308 = arith.constant 0 : index
    %c0_309 = arith.constant 0 : index
    %573 = vector.load %arg5[%c5_307, %c0_308, %c0_309] : memref<9x8x128xf32, #tpu.memory_space<vmem>>, vector<1x8x128xf32>
    %574 = vector.shape_cast %573 : vector<1x8x128xf32> to vector<8x128xf32>
    %575 = vector.shape_cast %570 : vector<8x128xf32> to vector<1x8x128xf32>
    tpu.vector_store %arg5[%c5_307, %c0_308, %c0_309], %575 {strides = array<i32>} : memref<9x8x128xf32, #tpu.memory_space<vmem>>, vector<1x8x128xf32>,
    %c6_310 = arith.constant 6 : index
    %c0_311 = arith.constant 0 : index
    %c0_312 = arith.constant 0 : index
    %576 = vector.load %arg7[%c6_310, %c0_311, %c0_312] : memref<9x8x512xf32, #tpu.memory_space<vmem>>, vector<1x8x512xf32>
    %577 = vector.shape_cast %576 : vector<1x8x512xf32> to vector<8x512xf32>
    %c0_313 = arith.constant 0 : index
    %c0_314 = arith.constant 0 : index
    %578 = vector.load %arg8[%c0_313, %c0_314] : memref<8x128xf32, #tpu.memory_space<vmem>>, vector<8x128xf32>
    %cst_315 = arith.constant dense<0.000000e+00> : vector<8x512xf32>
    %579 = tpu.matmul %578, %359, %cst_315 {dimension_numbers = #tpu.dot_dimension_numbers<[1], [0], [0], [1], [0, 0, 1, 1], [], []>} : vector<8x128xf32>, vector<128x512xf32>, vector<8x512xf32> -> vector<8x512xf32>
    %580 = arith.addf %577, %579 : vector<8x512xf32>
    %581 = vector.extract_strided_slice %580 {offsets = [0, 0], sizes = [8, 128], strides = [1, 1]} : vector<8x512xf32> to vector<8x128xf32>
    %582 = arith.negf %581 : vector<8x128xf32>
    %583 = math.exp %582 : vector<8x128xf32>
    %cst_316 = arith.constant 1.000000e+00 : f32
    %584 = vector.broadcast %cst_316 : f32 to vector<8x128xf32>
    %585 = arith.addf %584, %583 : vector<8x128xf32>
    %586 = arith.divf %584, %585 : vector<8x128xf32>
    %587 = vector.extract_strided_slice %580 {offsets = [0, 128], sizes = [8, 128], strides = [1, 1]} : vector<8x512xf32> to vector<8x128xf32>
    %588 = arith.negf %587 : vector<8x128xf32>
    %589 = math.exp %588 : vector<8x128xf32>
    %cst_317 = arith.constant 1.000000e+00 : f32
    %590 = vector.broadcast %cst_317 : f32 to vector<8x128xf32>
    %591 = arith.addf %590, %589 : vector<8x128xf32>
    %592 = arith.divf %590, %591 : vector<8x128xf32>
    %593 = vector.extract_strided_slice %580 {offsets = [0, 256], sizes = [8, 128], strides = [1, 1]} : vector<8x512xf32> to vector<8x128xf32>
    %594 = math.tanh %593 : vector<8x128xf32>
    %595 = vector.extract_strided_slice %580 {offsets = [0, 384], sizes = [8, 128], strides = [1, 1]} : vector<8x512xf32> to vector<8x128xf32>
    %596 = arith.negf %595 : vector<8x128xf32>
    %597 = math.exp %596 : vector<8x128xf32>
    %cst_318 = arith.constant 1.000000e+00 : f32
    %598 = vector.broadcast %cst_318 : f32 to vector<8x128xf32>
    %599 = arith.addf %598, %597 : vector<8x128xf32>
    %600 = arith.divf %598, %599 : vector<8x128xf32>
    %c0_319 = arith.constant 0 : index
    %c0_320 = arith.constant 0 : index
    %601 = vector.load %arg9[%c0_319, %c0_320] : memref<8x128xf32, #tpu.memory_space<vmem>>, vector<8x128xf32>
    %602 = arith.mulf %592, %601 : vector<8x128xf32>
    %603 = arith.mulf %586, %594 : vector<8x128xf32>
    %604 = arith.addf %602, %603 : vector<8x128xf32>
    %605 = math.tanh %604 : vector<8x128xf32>
    %606 = arith.mulf %600, %605 : vector<8x128xf32>
    %c0_321 = arith.constant 0 : index
    %c0_322 = arith.constant 0 : index
    %607 = vector.load %arg9[%c0_321, %c0_322] : memref<8x128xf32, #tpu.memory_space<vmem>>, vector<8x128xf32>
    tpu.vector_store %arg9[%c0_321, %c0_322], %604 {strides = array<i32>} : memref<8x128xf32, #tpu.memory_space<vmem>>, vector<8x128xf32>,
    %c0_323 = arith.constant 0 : index
    %c0_324 = arith.constant 0 : index
    %608 = vector.load %arg8[%c0_323, %c0_324] : memref<8x128xf32, #tpu.memory_space<vmem>>, vector<8x128xf32>
    tpu.vector_store %arg8[%c0_323, %c0_324], %606 {strides = array<i32>} : memref<8x128xf32, #tpu.memory_space<vmem>>, vector<8x128xf32>,
    %c6_325 = arith.constant 6 : index
    %c0_326 = arith.constant 0 : index
    %c0_327 = arith.constant 0 : index
    %609 = vector.load %arg5[%c6_325, %c0_326, %c0_327] : memref<9x8x128xf32, #tpu.memory_space<vmem>>, vector<1x8x128xf32>
    %610 = vector.shape_cast %609 : vector<1x8x128xf32> to vector<8x128xf32>
    %611 = vector.shape_cast %606 : vector<8x128xf32> to vector<1x8x128xf32>
    tpu.vector_store %arg5[%c6_325, %c0_326, %c0_327], %611 {strides = array<i32>} : memref<9x8x128xf32, #tpu.memory_space<vmem>>, vector<1x8x128xf32>,
    %c7_328 = arith.constant 7 : index
    %c0_329 = arith.constant 0 : index
    %c0_330 = arith.constant 0 : index
    %612 = vector.load %arg7[%c7_328, %c0_329, %c0_330] : memref<9x8x512xf32, #tpu.memory_space<vmem>>, vector<1x8x512xf32>
    %613 = vector.shape_cast %612 : vector<1x8x512xf32> to vector<8x512xf32>
    %c0_331 = arith.constant 0 : index
    %c0_332 = arith.constant 0 : index
    %614 = vector.load %arg8[%c0_331, %c0_332] : memref<8x128xf32, #tpu.memory_space<vmem>>, vector<8x128xf32>
    %cst_333 = arith.constant dense<0.000000e+00> : vector<8x512xf32>
    %615 = tpu.matmul %614, %359, %cst_333 {dimension_numbers = #tpu.dot_dimension_numbers<[1], [0], [0], [1], [0, 0, 1, 1], [], []>} : vector<8x128xf32>, vector<128x512xf32>, vector<8x512xf32> -> vector<8x512xf32>
    %616 = arith.addf %613, %615 : vector<8x512xf32>
    %617 = vector.extract_strided_slice %616 {offsets = [0, 0], sizes = [8, 128], strides = [1, 1]} : vector<8x512xf32> to vector<8x128xf32>
    %618 = arith.negf %617 : vector<8x128xf32>
    %619 = math.exp %618 : vector<8x128xf32>
    %cst_334 = arith.constant 1.000000e+00 : f32
    %620 = vector.broadcast %cst_334 : f32 to vector<8x128xf32>
    %621 = arith.addf %620, %619 : vector<8x128xf32>
    %622 = arith.divf %620, %621 : vector<8x128xf32>
    %623 = vector.extract_strided_slice %616 {offsets = [0, 128], sizes = [8, 128], strides = [1, 1]} : vector<8x512xf32> to vector<8x128xf32>
    %624 = arith.negf %623 : vector<8x128xf32>
    %625 = math.exp %624 : vector<8x128xf32>
    %cst_335 = arith.constant 1.000000e+00 : f32
    %626 = vector.broadcast %cst_335 : f32 to vector<8x128xf32>
    %627 = arith.addf %626, %625 : vector<8x128xf32>
    %628 = arith.divf %626, %627 : vector<8x128xf32>
    %629 = vector.extract_strided_slice %616 {offsets = [0, 256], sizes = [8, 128], strides = [1, 1]} : vector<8x512xf32> to vector<8x128xf32>
    %630 = math.tanh %629 : vector<8x128xf32>
    %631 = vector.extract_strided_slice %616 {offsets = [0, 384], sizes = [8, 128], strides = [1, 1]} : vector<8x512xf32> to vector<8x128xf32>
    %632 = arith.negf %631 : vector<8x128xf32>
    %633 = math.exp %632 : vector<8x128xf32>
    %cst_336 = arith.constant 1.000000e+00 : f32
    %634 = vector.broadcast %cst_336 : f32 to vector<8x128xf32>
    %635 = arith.addf %634, %633 : vector<8x128xf32>
    %636 = arith.divf %634, %635 : vector<8x128xf32>
    %c0_337 = arith.constant 0 : index
    %c0_338 = arith.constant 0 : index
    %637 = vector.load %arg9[%c0_337, %c0_338] : memref<8x128xf32, #tpu.memory_space<vmem>>, vector<8x128xf32>
    %638 = arith.mulf %628, %637 : vector<8x128xf32>
    %639 = arith.mulf %622, %630 : vector<8x128xf32>
    %640 = arith.addf %638, %639 : vector<8x128xf32>
    %641 = math.tanh %640 : vector<8x128xf32>
    %642 = arith.mulf %636, %641 : vector<8x128xf32>
    %c0_339 = arith.constant 0 : index
    %c0_340 = arith.constant 0 : index
    %643 = vector.load %arg9[%c0_339, %c0_340] : memref<8x128xf32, #tpu.memory_space<vmem>>, vector<8x128xf32>
    tpu.vector_store %arg9[%c0_339, %c0_340], %640 {strides = array<i32>} : memref<8x128xf32, #tpu.memory_space<vmem>>, vector<8x128xf32>,
    %c0_341 = arith.constant 0 : index
    %c0_342 = arith.constant 0 : index
    %644 = vector.load %arg8[%c0_341, %c0_342] : memref<8x128xf32, #tpu.memory_space<vmem>>, vector<8x128xf32>
    tpu.vector_store %arg8[%c0_341, %c0_342], %642 {strides = array<i32>} : memref<8x128xf32, #tpu.memory_space<vmem>>, vector<8x128xf32>,
    %c7_343 = arith.constant 7 : index
    %c0_344 = arith.constant 0 : index
    %c0_345 = arith.constant 0 : index
    %645 = vector.load %arg5[%c7_343, %c0_344, %c0_345] : memref<9x8x128xf32, #tpu.memory_space<vmem>>, vector<1x8x128xf32>
    %646 = vector.shape_cast %645 : vector<1x8x128xf32> to vector<8x128xf32>
    %647 = vector.shape_cast %642 : vector<8x128xf32> to vector<1x8x128xf32>
    tpu.vector_store %arg5[%c7_343, %c0_344, %c0_345], %647 {strides = array<i32>} : memref<9x8x128xf32, #tpu.memory_space<vmem>>, vector<1x8x128xf32>,
    %c8_346 = arith.constant 8 : index
    %c0_347 = arith.constant 0 : index
    %c0_348 = arith.constant 0 : index
    %648 = vector.load %arg7[%c8_346, %c0_347, %c0_348] : memref<9x8x512xf32, #tpu.memory_space<vmem>>, vector<1x8x512xf32>
    %649 = vector.shape_cast %648 : vector<1x8x512xf32> to vector<8x512xf32>
    %c0_349 = arith.constant 0 : index
    %c0_350 = arith.constant 0 : index
    %650 = vector.load %arg8[%c0_349, %c0_350] : memref<8x128xf32, #tpu.memory_space<vmem>>, vector<8x128xf32>
    %cst_351 = arith.constant dense<0.000000e+00> : vector<8x512xf32>
    %651 = tpu.matmul %650, %359, %cst_351 {dimension_numbers = #tpu.dot_dimension_numbers<[1], [0], [0], [1], [0, 0, 1, 1], [], []>} : vector<8x128xf32>, vector<128x512xf32>, vector<8x512xf32> -> vector<8x512xf32>
    %652 = arith.addf %649, %651 : vector<8x512xf32>
    %653 = vector.extract_strided_slice %652 {offsets = [0, 0], sizes = [8, 128], strides = [1, 1]} : vector<8x512xf32> to vector<8x128xf32>
    %654 = arith.negf %653 : vector<8x128xf32>
    %655 = math.exp %654 : vector<8x128xf32>
    %cst_352 = arith.constant 1.000000e+00 : f32
    %656 = vector.broadcast %cst_352 : f32 to vector<8x128xf32>
    %657 = arith.addf %656, %655 : vector<8x128xf32>
    %658 = arith.divf %656, %657 : vector<8x128xf32>
    %659 = vector.extract_strided_slice %652 {offsets = [0, 128], sizes = [8, 128], strides = [1, 1]} : vector<8x512xf32> to vector<8x128xf32>
    %660 = arith.negf %659 : vector<8x128xf32>
    %661 = math.exp %660 : vector<8x128xf32>
    %cst_353 = arith.constant 1.000000e+00 : f32
    %662 = vector.broadcast %cst_353 : f32 to vector<8x128xf32>
    %663 = arith.addf %662, %661 : vector<8x128xf32>
    %664 = arith.divf %662, %663 : vector<8x128xf32>
    %665 = vector.extract_strided_slice %652 {offsets = [0, 256], sizes = [8, 128], strides = [1, 1]} : vector<8x512xf32> to vector<8x128xf32>
    %666 = math.tanh %665 : vector<8x128xf32>
    %667 = vector.extract_strided_slice %652 {offsets = [0, 384], sizes = [8, 128], strides = [1, 1]} : vector<8x512xf32> to vector<8x128xf32>
    %668 = arith.negf %667 : vector<8x128xf32>
    %669 = math.exp %668 : vector<8x128xf32>
    %cst_354 = arith.constant 1.000000e+00 : f32
    %670 = vector.broadcast %cst_354 : f32 to vector<8x128xf32>
    %671 = arith.addf %670, %669 : vector<8x128xf32>
    %672 = arith.divf %670, %671 : vector<8x128xf32>
    %c0_355 = arith.constant 0 : index
    %c0_356 = arith.constant 0 : index
    %673 = vector.load %arg9[%c0_355, %c0_356] : memref<8x128xf32, #tpu.memory_space<vmem>>, vector<8x128xf32>
    %674 = arith.mulf %664, %673 : vector<8x128xf32>
    %675 = arith.mulf %658, %666 : vector<8x128xf32>
    %676 = arith.addf %674, %675 : vector<8x128xf32>
    %677 = math.tanh %676 : vector<8x128xf32>
    %678 = arith.mulf %672, %677 : vector<8x128xf32>
    %c0_357 = arith.constant 0 : index
    %c0_358 = arith.constant 0 : index
    %679 = vector.load %arg9[%c0_357, %c0_358] : memref<8x128xf32, #tpu.memory_space<vmem>>, vector<8x128xf32>
    tpu.vector_store %arg9[%c0_357, %c0_358], %676 {strides = array<i32>} : memref<8x128xf32, #tpu.memory_space<vmem>>, vector<8x128xf32>,
    %c0_359 = arith.constant 0 : index
    %c0_360 = arith.constant 0 : index
    %680 = vector.load %arg8[%c0_359, %c0_360] : memref<8x128xf32, #tpu.memory_space<vmem>>, vector<8x128xf32>
    tpu.vector_store %arg8[%c0_359, %c0_360], %678 {strides = array<i32>} : memref<8x128xf32, #tpu.memory_space<vmem>>, vector<8x128xf32>,
    %c8_361 = arith.constant 8 : index
    %c0_362 = arith.constant 0 : index
    %c0_363 = arith.constant 0 : index
    %681 = vector.load %arg5[%c8_361, %c0_362, %c0_363] : memref<9x8x128xf32, #tpu.memory_space<vmem>>, vector<1x8x128xf32>
    %682 = vector.shape_cast %681 : vector<1x8x128xf32> to vector<8x128xf32>
    %683 = vector.shape_cast %678 : vector<8x128xf32> to vector<1x8x128xf32>
    tpu.vector_store %arg5[%c8_361, %c0_362, %c0_363], %683 {strides = array<i32>} : memref<9x8x128xf32, #tpu.memory_space<vmem>>, vector<1x8x128xf32>,
    return
  }
  func.func @transform_0(%arg0: i32) -> (i32, i32, i32) {
    %c0_i32 = arith.constant 0 : i32
    %c0_i32_0 = arith.constant 0 : i32
    %c0_i32_1 = arith.constant 0 : i32
    %c0_i32_2 = arith.constant 0 : i32
    return %c0_i32, %c0_i32_0, %c0_i32_1 : i32, i32, i32
  }
  func.func @transform_1(%arg0: i32) -> (i32, i32, i32) {
    %c0_i32 = arith.constant 0 : i32
    %c0_i32_0 = arith.constant 0 : i32
    %c0_i32_1 = arith.constant 0 : i32
    %c0_i32_2 = arith.constant 0 : i32
    return %c0_i32, %c0_i32_0, %c0_i32_1 : i32, i32, i32
  }
  func.func @transform_2(%arg0: i32) -> (i32, i32, i32) {
    %c0_i32 = arith.constant 0 : i32
    %c0_i32_0 = arith.constant 0 : i32
    %c0_i32_1 = arith.constant 0 : i32
    %c0_i32_2 = arith.constant 0 : i32
    return %c0_i32, %c0_i32_0, %c0_i32_1 : i32, i32, i32
  }
  func.func @transform_3(%arg0: i32) -> (i32, i32, i32) {
    %c0_i32 = arith.constant 0 : i32
    %c0_i32_0 = arith.constant 0 : i32
    %c0_i32_1 = arith.constant 0 : i32
    %c0_i32_2 = arith.constant 0 : i32
    return %c0_i32, %c0_i32_0, %c0_i32_1 : i32, i32, i32
  }
  func.func @transform_4(%arg0: i32) -> (i32, i32, i32) {
    %c0_i32 = arith.constant 0 : i32
    %c0_i32_0 = arith.constant 0 : i32
    %c0_i32_1 = arith.constant 0 : i32
    %c0_i32_2 = arith.constant 0 : i32
    return %c0_i32, %c0_i32_0, %c0_i32_1 : i32, i32, i32
  }
}

</mosaic_0001>

<llo_original>
// kernel: decoder_forward.3
$region0: #{decoder_forward.3}
  #allocation0 [shape = 'u32[]', space=smem, size = 0x4, offset = 0x4, fixed_abs, tag = 'smem constant byte address 0x4 - core index']
  #allocation1 [shape = 'u32[144,128]{1,0:T(1,128)}', space=vmem, size = 0x12000, scoped, tag = 'internal scratch']
  %s0 = inlined_call_operand.vmem [shape: f32[72,128], index: 0, kind: input, shape index: {}]
  %s1 = inlined_call_operand.vmem [shape: f32[128,128], index: 1, kind: input, shape index: {}]
  %s2 = inlined_call_operand.vmem [shape: f32[1,128], index: 2, kind: input, shape index: {}]
  %s3 = inlined_call_operand.vmem [shape: f32[72,128], index: 3, kind: output, shape index: {}]
  %s4 = sld [smem:[#allocation0]]
  $region22: #{decoder_forward.3} parent=0
    _
  %s6 = ssub.s32 1, %s4
  %s7 = scalar_select 0, %s6, %s4
  // Predicated region
  $region2: #{decoder_forward.3} parent=0 // pred_check
    _
  $region3: #{decoder_forward.3} parent=0 // pred_check_branch
    %9 = sbr.rel (0) target = $region5
  $region4: #{decoder_forward.3} parent=0 // pred_region
    _
  $region5: #{decoder_forward.3} parent=0 // pred_fallthru
    _
  // Predicated region
  $region6: #{decoder_forward.3} parent=0 // pred_check
    _
  $region7: #{decoder_forward.3} parent=0 // pred_check_branch
    %11 = sbr.rel (0) target = $region9
  $region8: #{decoder_forward.3} parent=0 // pred_region
    _
  $region9: #{decoder_forward.3} parent=0 // pred_fallthru
    _
  // Predicated region
  $region10: #{decoder_forward.3} parent=0 // pred_check
    _
  $region11: #{decoder_forward.3} parent=0 // pred_check_branch
    %13 = sbr.rel (0) target = $region13
  $region12: #{decoder_forward.3} parent=0 // pred_region
    _
  $region13: #{decoder_forward.3} parent=0 // pred_fallthru
    _
  %v14 = vld [vmem:[%s0] sm:$0xff]
  %v15 = vld [vmem:[%s0 + $0x8] sm:$0xff]
  %v16 = vld [vmem:[%s0 + $0x10] sm:$0xff]
  %v17 = vld [vmem:[%s0 + $0x18] sm:$0xff]
  %v18 = vld [vmem:[%s0 + $0x20] sm:$0xff]
  %v19 = vld [vmem:[%s0 + $0x28] sm:$0xff]
  %v20 = vld [vmem:[%s0 + $0x30] sm:$0xff]
  %v21 = vld [vmem:[%s0 + $0x38] sm:$0xff]
  %v22 = vld [vmem:[%s0 + $0x40] sm:$0xff]
  %v23 = vld [vmem:[%s1] sm:$0xff]
  %v24 = vld [vmem:[%s1 + $0x8] sm:$0xff]
  %v25 = vld [vmem:[%s1 + $0x10] sm:$0xff]
  %v26 = vld [vmem:[%s1 + $0x18] sm:$0xff]
  %v27 = vld [vmem:[%s1 + $0x20] sm:$0xff]
  %v28 = vld [vmem:[%s1 + $0x28] sm:$0xff]
  %v29 = vld [vmem:[%s1 + $0x30] sm:$0xff]
  %v30 = vld [vmem:[%s1 + $0x38] sm:$0xff]
  %v31 = vld [vmem:[%s1 + $0x40] sm:$0xff]
  %v32 = vld [vmem:[%s1 + $0x48] sm:$0xff]
  %v33 = vld [vmem:[%s1 + $0x50] sm:$0xff]
  %v34 = vld [vmem:[%s1 + $0x58] sm:$0xff]
  %v35 = vld [vmem:[%s1 + $0x60] sm:$0xff]
  %v36 = vld [vmem:[%s1 + $0x68] sm:$0xff]
  %v37 = vld [vmem:[%s1 + $0x70] sm:$0xff]
  %v38 = vld [vmem:[%s1 + $0x78] sm:$0xff]
  %v39 = vld [vmem:[%s2] sm:$0x1]
  %v41 = vlaneseq
  %v42 = vshrl.u32 %v41, 7
  %v43 = vsub.s32 0, %v42
  %v44 = vrot.slane %v39, %v43
  %46 = vmatprep.subr.mxu0 0.0
  %47 = vmatpush1.msra.mxu0 %v23
  %48 = vmatprep.subr.mxu0 0.0
  %49 = vmatpush1.msra.mxu0 %v24
  %50 = vmatprep.subr.mxu0 0.0
  %51 = vmatpush1.msra.mxu0 %v25
  %52 = vmatprep.subr.mxu0 0.0
  %53 = vmatpush1.msra.mxu0 %v26
  %54 = vmatprep.subr.mxu0 0.0
  %55 = vmatpush1.msra.mxu0 %v27
  %56 = vmatprep.subr.mxu0 0.0
  %57 = vmatpush1.msra.mxu0 %v28
  %58 = vmatprep.subr.mxu0 0.0
  %59 = vmatpush1.msra.mxu0 %v29
  %60 = vmatprep.subr.mxu0 0.0
  %61 = vmatpush1.msra.mxu0 %v30
  %62 = vmatprep.subr.mxu0 0.0
  %63 = vmatpush1.msra.mxu0 %v31
  %64 = vmatprep.subr.mxu0 0.0
  %65 = vmatpush1.msra.mxu0 %v32
  %66 = vmatprep.subr.mxu0 0.0
  %67 = vmatpush1.msra.mxu0 %v33
  %68 = vmatprep.subr.mxu0 0.0
  %69 = vmatpush1.msra.mxu0 %v34
  %70 = vmatprep.subr.mxu0 0.0
  %71 = vmatpush1.msra.mxu0 %v35
  %72 = vmatprep.subr.mxu0 0.0
  %73 = vmatpush1.msra.mxu0 %v36
  %74 = vmatprep.subr.mxu0 0.0
  %75 = vmatpush1.msra.mxu0 %v37
  %76 = vmatprep.subr.mxu0 0.0
  %77 = vmatpush1.msra.mxu0 %v38
  %78 = vmatprep.subr.mxu0 0.0
  %79 = vmatpush1.msra.mxu0 0.0
  %80 = vmatprep.subr.mxu0 0.0
  %81 = vmatpush1.msra.mxu0 0.0
  %82 = vmatprep.subr.mxu0 0.0
  %83 = vmatpush1.msra.mxu0 0.0
  %84 = vmatprep.subr.mxu0 0.0
  %85 = vmatpush1.msra.mxu0 0.0
  %86 = vmatprep.subr.mxu0 0.0
  %87 = vmatpush1.msra.mxu0 0.0
  %88 = vmatprep.subr.mxu0 0.0
  %89 = vmatpush1.msra.mxu0 0.0
  %90 = vmatprep.subr.mxu0 0.0
  %91 = vmatpush1.msra.mxu0 0.0
  %92 = vmatprep.subr.mxu0 0.0
  %93 = vmatpush1.msra.mxu0 0.0
  %94 = vmatprep.subr.mxu0 0.0
  %95 = vmatpush1.msra.mxu0 0.0
  %96 = vmatprep.subr.mxu0 0.0
  %97 = vmatpush1.msra.mxu0 0.0
  %98 = vmatprep.subr.mxu0 0.0
  %99 = vmatpush1.msra.mxu0 0.0
  %100 = vmatprep.subr.mxu0 0.0
  %101 = vmatpush1.msra.mxu0 0.0
  %102 = vmatprep.subr.mxu0 0.0
  %103 = vmatpush1.msra.mxu0 0.0
  %104 = vmatprep.subr.mxu0 0.0
  %105 = vmatpush1.msra.mxu0 0.0
  %106 = vmatprep.subr.mxu0 0.0
  %107 = vmatpush1.msra.mxu0 0.0
  %108 = vmatprep.subr.mxu0 0.0
  %109 = vmatpush1.msra.mxu0 0.0
  %110 = vmatprep.mubr.f32.mxu0 0.0
  %111 = vmatmul.mubr.f32.gmra.mrb[0].mxu0 %v14
  %v112 = vpop.f32.mrb[0].mxu0
  %v113 = vadd.f32 %v44, %v112
  %v114 = vpop.f32.mrb[0].mxu0
  %115 = vmatprep.mubr.f32.mxu0 0.0
  %116 = vmatmul.mubr.f32.gmra.mrb[0].mxu0 %v15
  %v117 = vpop.f32.mrb[0].mxu0
  %v118 = vadd.f32 %v44, %v117
  %v119 = vpop.f32.mrb[0].mxu0
  %120 = vmatprep.mubr.f32.mxu0 0.0
  %121 = vmatmul.mubr.f32.gmra.mrb[0].mxu0 %v16
  %v122 = vpop.f32.mrb[0].mxu0
  %v123 = vadd.f32 %v44, %v122
  %v124 = vpop.f32.mrb[0].mxu0
  %125 = vmatprep.mubr.f32.mxu0 0.0
  %126 = vmatmul.mubr.f32.gmra.mrb[0].mxu0 %v17
  %v127 = vpop.f32.mrb[0].mxu0
  %v128 = vadd.f32 %v44, %v127
  %v129 = vpop.f32.mrb[0].mxu0
  %130 = vmatprep.mubr.f32.mxu0 0.0
  %131 = vmatmul.mubr.f32.gmra.mrb[0].mxu0 %v18
  %v132 = vpop.f32.mrb[0].mxu0
  %v133 = vadd.f32 %v44, %v132
  %v134 = vpop.f32.mrb[0].mxu0
  %135 = vmatprep.mubr.f32.mxu0 0.0
  %136 = vmatmul.mubr.f32.gmra.mrb[0].mxu0 %v19
  %v137 = vpop.f32.mrb[0].mxu0
  %v138 = vadd.f32 %v44, %v137
  %v139 = vpop.f32.mrb[0].mxu0
  %140 = vmatprep.mubr.f32.mxu0 0.0
  %141 = vmatmul.mubr.f32.gmra.mrb[0].mxu0 %v20
  %v142 = vpop.f32.mrb[0].mxu0
  %v143 = vadd.f32 %v44, %v142
  %v144 = vpop.f32.mrb[0].mxu0
  %145 = vmatprep.mubr.f32.mxu0 0.0
  %146 = vmatmul.mubr.f32.gmra.mrb[0].mxu0 %v21
  %v147 = vpop.f32.mrb[0].mxu0
  %v148 = vadd.f32 %v44, %v147
  %v149 = vpop.f32.mrb[0].mxu0
  %150 = vmatprep.mubr.f32.mxu0 0.0
  %151 = vmatmul.mubr.f32.gmra.mrb[0].mxu0 %v22
  %v152 = vpop.f32.mrb[0].mxu0
  %v153 = vadd.f32 %v44, %v152
  %v154 = vpop.f32.mrb[0].mxu0
  %155 = vdwg.mxu0
  %156 = vst [vmem:[%s3] sm:$0xff] %v113
  %157 = vst [vmem:[%s3 + $0x8] sm:$0xff] %v118
  %158 = vst [vmem:[%s3 + $0x10] sm:$0xff] %v123
  %159 = vst [vmem:[%s3 + $0x18] sm:$0xff] %v128
  %160 = vst [vmem:[%s3 + $0x20] sm:$0xff] %v133
  %161 = vst [vmem:[%s3 + $0x28] sm:$0xff] %v138
  %162 = vst [vmem:[%s3 + $0x30] sm:$0xff] %v143
  %163 = vst [vmem:[%s3 + $0x38] sm:$0xff] %v148
  %164 = vst [vmem:[%s3 + $0x40] sm:$0xff] %v153
  // Predicated region
  $region14: #{decoder_forward.3} parent=0 // pred_check
    _
  $region15: #{decoder_forward.3} parent=0 // pred_check_branch
    %166 = sbr.rel (0) target = $region17
  $region16: #{decoder_forward.3} parent=0 // pred_region
    _
  $region17: #{decoder_forward.3} parent=0 // pred_fallthru
    _
  // Predicated region
  $region18: #{decoder_forward.3} parent=0 // pred_check
    _
  $region19: #{decoder_forward.3} parent=0 // pred_check_branch
    %168 = sbr.rel (0) target = $region21
  $region20: #{decoder_forward.3} parent=0 // pred_region
    _
  $region21: #{decoder_forward.3} parent=0 // pred_fallthru
    _

// kernel: decoder_forward.2
$region0: #{decoder_forward.2}
  #allocation0 [shape = 'u32[]', space=smem, size = 0x4, offset = 0x4, fixed_abs, tag = 'smem constant byte address 0x4 - core index']
  #allocation1 [shape = 'u32[144,128]{1,0:T(1,128)}', space=vmem, size = 0x12000, scoped, tag = 'internal scratch']
  #allocation2 [shape = 'f32[9,8,128]{2,1,0:T(8,128)}', space=vmem, size = 0x9000, scoped, tag = 'scratch operand']
  #allocation3 [shape = 'f32[9,8,512]{2,1,0:T(8,128)}', space=vmem, size = 0x24000, scoped, tag = 'scratch operand']
  #allocation4 [shape = 'f32[8,128]{1,0:T(8,128)}', space=vmem, size = 0x1000, scoped, tag = 'scratch operand']
  #allocation5 [shape = 'f32[8,128]{1,0:T(8,128)}', space=vmem, size = 0x1000, scoped, tag = 'scratch operand']
  %s0 = inlined_call_operand.vmem [shape: f32[9,8,128], index: 0, kind: input, shape index: {}]
  %s1 = inlined_call_operand.hbm [shape: f32[2,128,512], index: 1, kind: input, shape index: {}]
  %s2 = inlined_call_operand.hbm [shape: f32[2,128,512], index: 2, kind: input, shape index: {}]
  %s3 = inlined_call_operand.vmem [shape: f32[2,1,512], index: 3, kind: input, shape index: {}]
  %s4 = inlined_call_operand.vmem [shape: f32[9,8,128], index: 4, kind: output, shape index: {}]
  %s5 = sld [smem:[#allocation0]]
  $region34: #{decoder_forward.2} parent=0
    _
  %s7 = ssub.s32 1, %s5
  %s8 = scalar_select 0, %s7, %s5
  $region1: #{decoder_forward.2} parent=0
    #allocation6 [shape = 'u8[524288]{0}', space=vmem, size = 0x80000, scoped, tag = 'input window, operand 1, single buffered']
    #allocation7 [shape = 's32[1]{0}', space=sflag, size = 0x4, scoped, tag = 'scoped memory for decoder_forward.2']
    #allocation8 [shape = 'u8[524288]{0}', space=vmem, size = 0x80000, scoped, tag = 'input window, operand 2, single buffered']
    #allocation9 [shape = 's32[1]{0}', space=sflag, size = 0x4, scoped, tag = 'scoped memory for decoder_forward.2']
    %9 = vsyncpa [#allocation7], 0
    %10 = vsyncpa [#allocation9], 0
    // Predicated region
    $region2: #{decoder_forward.2} parent=1 // pred_check
      _
    $region3: #{decoder_forward.2} parent=1 // pred_check_branch
      %12 = sbr.rel (0) target = $region5
    $region4: #{decoder_forward.2} parent=1 // pred_region
      _
    $region5: #{decoder_forward.2} parent=1 // pred_fallthru
      _
    // Predicated region
    $region6: #{decoder_forward.2} parent=1 // pred_check
      _
    $region7: #{decoder_forward.2} parent=1 // pred_check_branch
      %14 = sbr.rel (0) target = $region9
    $region8: #{decoder_forward.2} parent=1 // pred_region
      %s16 = ssub.s32 16384, 16384
      %17 = vsyncadd [#allocation7], %s16
      %s18 = sshll.u32 [#allocation6], 4
      %s19 = int_to_ptr.vmem [resolvable:$true] %s18
      %24 = dma.hbm_to_vmem [thread:$0]  %s1, 16384, %s19, [#allocation7], 512, 512, 32
    $region9: #{decoder_forward.2} parent=1 // pred_fallthru
      _
    // Predicated region
    $region10: #{decoder_forward.2} parent=1 // pred_check
      _
    $region11: #{decoder_forward.2} parent=1 // pred_check_branch
      %26 = sbr.rel (0) target = $region13
    $region12: #{decoder_forward.2} parent=1 // pred_region
      %s28 = ssub.s32 16384, 16384
      %29 = vsyncadd [#allocation9], %s28
      %s30 = sshll.u32 [#allocation8], 4
      %s31 = int_to_ptr.vmem [resolvable:$true] %s30
      %36 = dma.hbm_to_vmem [thread:$0]  %s2, 16384, %s31, [#allocation9], 512, 512, 32
    $region13: #{decoder_forward.2} parent=1 // pred_fallthru
      _
    // Predicated region
    $region14: #{decoder_forward.2} parent=1 // pred_check
      _
    $region15: #{decoder_forward.2} parent=1 // pred_check_branch
      %38 = sbr.rel (0) target = $region17
    $region16: #{decoder_forward.2} parent=1 // pred_region
      _
    $region17: #{decoder_forward.2} parent=1 // pred_fallthru
      _
    // Predicated region
    $region18: #{decoder_forward.2} parent=1 // pred_check
      _
    $region19: #{decoder_forward.2} parent=1 // pred_check_branch
      %40 = sbr.rel (0) target = $region21
    $region20: #{decoder_forward.2} parent=1 // pred_region
      %41 = dma.done [#allocation7], 16384
    $region21: #{decoder_forward.2} parent=1 // pred_fallthru
      _
    // Predicated region
    $region22: #{decoder_forward.2} parent=1 // pred_check
      _
    $region23: #{decoder_forward.2} parent=1 // pred_check_branch
      %43 = sbr.rel (0) target = $region25
    $region24: #{decoder_forward.2} parent=1 // pred_region
      %44 = dma.done [#allocation9], 16384
    $region25: #{decoder_forward.2} parent=1 // pred_fallthru
      _
    %v45 = vld [vmem:[%s0] sm:$0xff]
    %v46 = vld [vmem:[%s0 + $0x8] sm:$0xff]
    %v47 = vld [vmem:[%s0 + $0x10] sm:$0xff]
    %v48 = vld [vmem:[%s0 + $0x18] sm:$0xff]
    %v49 = vld [vmem:[%s0 + $0x20] sm:$0xff]
    %v50 = vld [vmem:[%s0 + $0x28] sm:$0xff]
    %v51 = vld [vmem:[%s0 + $0x30] sm:$0xff]
    %v52 = vld [vmem:[%s0 + $0x38] sm:$0xff]
    %v53 = vld [vmem:[%s0 + $0x40] sm:$0xff]
    %54 = vst [vmem:[#allocation2] sm:$0xff] %v45
    %55 = vst [vmem:[#allocation2 + $0x8] sm:$0xff] %v46
    %56 = vst [vmem:[#allocation2 + $0x10] sm:$0xff] %v47
    %57 = vst [vmem:[#allocation2 + $0x18] sm:$0xff] %v48
    %58 = vst [vmem:[#allocation2 + $0x20] sm:$0xff] %v49
    %59 = vst [vmem:[#allocation2 + $0x28] sm:$0xff] %v50
    %60 = vst [vmem:[#allocation2 + $0x30] sm:$0xff] %v51
    %61 = vst [vmem:[#allocation2 + $0x38] sm:$0xff] %v52
    %62 = vst [vmem:[#allocation2 + $0x40] sm:$0xff] %v53
    %v63 = vld [vmem:[#allocation2] sm:$0xff]
    %v64 = vld [vmem:[#allocation2 + $0x8] sm:$0xff]
    %v65 = vld [vmem:[#allocation2 + $0x10] sm:$0xff]
    %v66 = vld [vmem:[#allocation2 + $0x18] sm:$0xff]
    %v67 = vld [vmem:[#allocation2 + $0x20] sm:$0xff]
    %v68 = vld [vmem:[#allocation2 + $0x28] sm:$0xff]
    %v69 = vld [vmem:[#allocation2 + $0x30] sm:$0xff]
    %v70 = vld [vmem:[#allocation2 + $0x38] sm:$0xff]
    %v71 = vld [vmem:[#allocation2 + $0x40] sm:$0xff]
    %v72 = vld [vmem:[#allocation6] sm:$0xff]
    %v73 = vld [vmem:[#allocation6 + $0x8] sm:$0xff]
    %v74 = vld [vmem:[#allocation6 + $0x10] sm:$0xff]
    %v75 = vld [vmem:[#allocation6 + $0x18] sm:$0xff]
    %v76 = vld [vmem:[#allocation6 + $0x20] sm:$0xff]
    %v77 = vld [vmem:[#allocation6 + $0x28] sm:$0xff]
    %v78 = vld [vmem:[#allocation6 + $0x30] sm:$0xff]
    %v79 = vld [vmem:[#allocation6 + $0x38] sm:$0xff]
    %v80 = vld [vmem:[#allocation6 + $0x40] sm:$0xff]
    %v81 = vld [vmem:[#allocation6 + $0x48] sm:$0xff]
    %v82 = vld [vmem:[#allocation6 + $0x50] sm:$0xff]
    %v83 = vld [vmem:[#allocation6 + $0x58] sm:$0xff]
    %v84 = vld [vmem:[#allocation6 + $0x60] sm:$0xff]
    %v85 = vld [vmem:[#allocation6 + $0x68] sm:$0xff]
    %v86 = vld [vmem:[#allocation6 + $0x70] sm:$0xff]
    %v87 = vld [vmem:[#allocation6 + $0x78] sm:$0xff]
    %v88 = vld [vmem:[#allocation6 + $0x80] sm:$0xff]
    %v89 = vld [vmem:[#allocation6 + $0x88] sm:$0xff]
    %v90 = vld [vmem:[#allocation6 + $0x90] sm:$0xff]
    %v91 = vld [vmem:[#allocation6 + $0x98] sm:$0xff]
    %v92 = vld [vmem:[#allocation6 + $0xa0] sm:$0xff]
    %v93 = vld [vmem:[#allocation6 + $0xa8] sm:$0xff]
    %v94 = vld [vmem:[#allocation6 + $0xb0] sm:$0xff]
    %v95 = vld [vmem:[#allocation6 + $0xb8] sm:$0xff]
    %v96 = vld [vmem:[#allocation6 + $0xc0] sm:$0xff]
    %v97 = vld [vmem:[#allocation6 + $0xc8] sm:$0xff]
    %v98 = vld [vmem:[#allocation6 + $0xd0] sm:$0xff]
    %v99 = vld [vmem:[#allocation6 + $0xd8] sm:$0xff]
    %v100 = vld [vmem:[#allocation6 + $0xe0] sm:$0xff]
    %v101 = vld [vmem:[#allocation6 + $0xe8] sm:$0xff]
    %v102 = vld [vmem:[#allocation6 + $0xf0] sm:$0xff]
    %v103 = vld [vmem:[#allocation6 + $0xf8] sm:$0xff]
    %v104 = vld [vmem:[#allocation6 + $0x100] sm:$0xff]
    %v105 = vld [vmem:[#allocation6 + $0x108] sm:$0xff]
    %v106 = vld [vmem:[#allocation6 + $0x110] sm:$0xff]
    %v107 = vld [vmem:[#allocation6 + $0x118] sm:$0xff]
    %v108 = vld [vmem:[#allocation6 + $0x120] sm:$0xff]
    %v109 = vld [vmem:[#allocation6 + $0x128] sm:$0xff]
    %v110 = vld [vmem:[#allocation6 + $0x130] sm:$0xff]
    %v111 = vld [vmem:[#allocation6 + $0x138] sm:$0xff]
    %v112 = vld [vmem:[#allocation6 + $0x140] sm:$0xff]
    %v113 = vld [vmem:[#allocation6 + $0x148] sm:$0xff]
    %v114 = vld [vmem:[#allocation6 + $0x150] sm:$0xff]
    %v115 = vld [vmem:[#allocation6 + $0x158] sm:$0xff]
    %v116 = vld [vmem:[#allocation6 + $0x160] sm:$0xff]
    %v117 = vld [vmem:[#allocation6 + $0x168] sm:$0xff]
    %v118 = vld [vmem:[#allocation6 + $0x170] sm:$0xff]
    %v119 = vld [vmem:[#allocation6 + $0x178] sm:$0xff]
    %v120 = vld [vmem:[#allocation6 + $0x180] sm:$0xff]
    %v121 = vld [vmem:[#allocation6 + $0x188] sm:$0xff]
    %v122 = vld [vmem:[#allocation6 + $0x190] sm:$0xff]
    %v123 = vld [vmem:[#allocation6 + $0x198] sm:$0xff]
    %v124 = vld [vmem:[#allocation6 + $0x1a0] sm:$0xff]
    %v125 = vld [vmem:[#allocation6 + $0x1a8] sm:$0xff]
    %v126 = vld [vmem:[#allocation6 + $0x1b0] sm:$0xff]
    %v127 = vld [vmem:[#allocation6 + $0x1b8] sm:$0xff]
    %v128 = vld [vmem:[#allocation6 + $0x1c0] sm:$0xff]
    %v129 = vld [vmem:[#allocation6 + $0x1c8] sm:$0xff]
    %v130 = vld [vmem:[#allocation6 + $0x1d0] sm:$0xff]
    %v131 = vld [vmem:[#allocation6 + $0x1d8] sm:$0xff]
    %v132 = vld [vmem:[#allocation6 + $0x1e0] sm:$0xff]
    %v133 = vld [vmem:[#allocation6 + $0x1e8] sm:$0xff]
    %v134 = vld [vmem:[#allocation6 + $0x1f0] sm:$0xff]
    %v135 = vld [vmem:[#allocation6 + $0x1f8] sm:$0xff]
    %v136 = vld [vmem:[%s3] sm:$0xf]
    %v138 = vlaneseq
    %v139 = vshrl.u32 %v138, 7
    %v140 = vsub.s32 0, %v139
    %v141 = vrot.slane %v136, %v140
    %v142 = vlaneseq
    %v143 = vshrl.u32 %v142, 7
    %v144 = vsub.s32 1, %v143
    %v145 = vrot.slane %v136, %v144
    %v146 = vlaneseq
    %v147 = vshrl.u32 %v146, 7
    %v148 = vsub.s32 2, %v147
    %v149 = vrot.slane %v136, %v148
    %v150 = vlaneseq
    %v151 = vshrl.u32 %v150, 7
    %v152 = vsub.s32 3, %v151
    %v153 = vrot.slane %v136, %v152
    %158 = vmatprep.subr.mxu0 %v73
    %159 = vmatpush1.msra.mxu0 %v72
    %160 = vmatprep.subr.mxu0 %v77
    %161 = vmatpush1.msra.mxu0 %v76
    %162 = vmatprep.subr.mxu0 %v81
    %163 = vmatpush1.msra.mxu0 %v80
    %164 = vmatprep.subr.mxu0 %v85
    %165 = vmatpush1.msra.mxu0 %v84
    %166 = vmatprep.subr.mxu0 %v89
    %167 = vmatpush1.msra.mxu0 %v88
    %168 = vmatprep.subr.mxu0 %v93
    %169 = vmatpush1.msra.mxu0 %v92
    %170 = vmatprep.subr.mxu0 %v97
    %171 = vmatpush1.msra.mxu0 %v96
    %172 = vmatprep.subr.mxu0 %v101
    %173 = vmatpush1.msra.mxu0 %v100
    %174 = vmatprep.subr.mxu0 %v105
    %175 = vmatpush1.msra.mxu0 %v104
    %176 = vmatprep.subr.mxu0 %v109
    %177 = vmatpush1.msra.mxu0 %v108
    %178 = vmatprep.subr.mxu0 %v113
    %179 = vmatpush1.msra.mxu0 %v112
    %180 = vmatprep.subr.mxu0 %v117
    %181 = vmatpush1.msra.mxu0 %v116
    %182 = vmatprep.subr.mxu0 %v121
    %183 = vmatpush1.msra.mxu0 %v120
    %184 = vmatprep.subr.mxu0 %v125
    %185 = vmatpush1.msra.mxu0 %v124
    %186 = vmatprep.subr.mxu0 %v129
    %187 = vmatpush1.msra.mxu0 %v128
    %188 = vmatprep.subr.mxu0 %v133
    %189 = vmatpush1.msra.mxu0 %v132
    %190 = vmatprep.subr.mxu0 0.0
    %191 = vmatpush1.msra.mxu0 0.0
    %192 = vmatprep.subr.mxu0 0.0
    %193 = vmatpush1.msra.mxu0 0.0
    %194 = vmatprep.subr.mxu0 0.0
    %195 = vmatpush1.msra.mxu0 0.0
    %196 = vmatprep.subr.mxu0 0.0
    %197 = vmatpush1.msra.mxu0 0.0
    %198 = vmatprep.subr.mxu0 0.0
    %199 = vmatpush1.msra.mxu0 0.0
    %200 = vmatprep.subr.mxu0 0.0
    %201 = vmatpush1.msra.mxu0 0.0
    %202 = vmatprep.subr.mxu0 0.0
    %203 = vmatpush1.msra.mxu0 0.0
    %204 = vmatprep.subr.mxu0 0.0
    %205 = vmatpush1.msra.mxu0 0.0
    %206 = vmatprep.subr.mxu0 0.0
    %207 = vmatpush1.msra.mxu0 0.0
    %208 = vmatprep.subr.mxu0 0.0
    %209 = vmatpush1.msra.mxu0 0.0
    %210 = vmatprep.subr.mxu0 0.0
    %211 = vmatpush1.msra.mxu0 0.0
    %212 = vmatprep.subr.mxu0 0.0
    %213 = vmatpush1.msra.mxu0 0.0
    %214 = vmatprep.subr.mxu0 0.0
    %215 = vmatpush1.msra.mxu0 0.0
    %216 = vmatprep.subr.mxu0 0.0
    %217 = vmatpush1.msra.mxu0 0.0
    %218 = vmatprep.subr.mxu0 0.0
    %219 = vmatpush1.msra.mxu0 0.0
    %220 = vmatprep.subr.mxu0 0.0
    %221 = vmatpush1.msra.mxu0 0.0
    %222 = vmatprep.mubr.f32.mxu0 0.0
    %223 = vmatmul.mubr.f32.gmra.mrb[0].mxu0 %v63
    %v224 = vpop.f32.mrb[0].mxu0
    %v225 = vadd.f32 %v141, %v224
    %v226 = vpop.f32.mrb[0].mxu0
    %v227 = vadd.f32 %v145, %v226
    %228 = vmatprep.mubr.f32.mxu0 0.0
    %229 = vmatmul.mubr.f32.gmra.mrb[0].mxu0 %v64
    %v230 = vpop.f32.mrb[0].mxu0
    %v231 = vadd.f32 %v141, %v230
    %v232 = vpop.f32.mrb[0].mxu0
    %v233 = vadd.f32 %v145, %v232
    %234 = vmatprep.mubr.f32.mxu0 0.0
    %235 = vmatmul.mubr.f32.gmra.mrb[0].mxu0 %v65
    %v236 = vpop.f32.mrb[0].mxu0
    %v237 = vadd.f32 %v141, %v236
    %v238 = vpop.f32.mrb[0].mxu0
    %v239 = vadd.f32 %v145, %v238
    %240 = vmatprep.mubr.f32.mxu0 0.0
    %241 = vmatmul.mubr.f32.gmra.mrb[0].mxu0 %v66
    %v242 = vpop.f32.mrb[0].mxu0
    %v243 = vadd.f32 %v141, %v242
    %v244 = vpop.f32.mrb[0].mxu0
    %v245 = vadd.f32 %v145, %v244
    %246 = vmatprep.mubr.f32.mxu0 0.0
    %247 = vmatmul.mubr.f32.gmra.mrb[0].mxu0 %v67
    %v248 = vpop.f32.mrb[0].mxu0
    %v249 = vadd.f32 %v141, %v248
    %v250 = vpop.f32.mrb[0].mxu0
    %v251 = vadd.f32 %v145, %v250
    %252 = vmatprep.mubr.f32.mxu0 0.0
    %253 = vmatmul.mubr.f32.gmra.mrb[0].mxu0 %v68
    %v254 = vpop.f32.mrb[0].mxu0
    %v255 = vadd.f32 %v141, %v254
    %v256 = vpop.f32.mrb[0].mxu0
    %v257 = vadd.f32 %v145, %v256
    %258 = vmatprep.mubr.f32.mxu0 0.0
    %259 = vmatmul.mubr.f32.gmra.mrb[0].mxu0 %v69
    %v260 = vpop.f32.mrb[0].mxu0
    %v261 = vadd.f32 %v141, %v260
    %v262 = vpop.f32.mrb[0].mxu0
    %v263 = vadd.f32 %v145, %v262
    %264 = vmatprep.mubr.f32.mxu0 0.0
    %265 = vmatmul.mubr.f32.gmra.mrb[0].mxu0 %v70
    %v266 = vpop.f32.mrb[0].mxu0
    %v267 = vadd.f32 %v141, %v266
    %v268 = vpop.f32.mrb[0].mxu0
    %v269 = vadd.f32 %v145, %v268
    %270 = vmatprep.mubr.f32.mxu0 0.0
    %271 = vmatmul.mubr.f32.gmra.mrb[0].mxu0 %v71
    %v272 = vpop.f32.mrb[0].mxu0
    %v273 = vadd.f32 %v141, %v272
    %v274 = vpop.f32.mrb[0].mxu0
    %v275 = vadd.f32 %v145, %v274
    %276 = vdwg.mxu0
    %277 = vmatprep.subr.mxu0 %v75
    %278 = vmatpush1.msra.mxu0 %v74
    %279 = vmatprep.subr.mxu0 %v79
    %280 = vmatpush1.msra.mxu0 %v78
    %281 = vmatprep.subr.mxu0 %v83
    %282 = vmatpush1.msra.mxu0 %v82
    %283 = vmatprep.subr.mxu0 %v87
    %284 = vmatpush1.msra.mxu0 %v86
    %285 = vmatprep.subr.mxu0 %v91
    %286 = vmatpush1.msra.mxu0 %v90
    %287 = vmatprep.subr.mxu0 %v95
    %288 = vmatpush1.msra.mxu0 %v94
    %289 = vmatprep.subr.mxu0 %v99
    %290 = vmatpush1.msra.mxu0 %v98
    %291 = vmatprep.subr.mxu0 %v103
    %292 = vmatpush1.msra.mxu0 %v102
    %293 = vmatprep.subr.mxu0 %v107
    %294 = vmatpush1.msra.mxu0 %v106
    %295 = vmatprep.subr.mxu0 %v111
    %296 = vmatpush1.msra.mxu0 %v110
    %297 = vmatprep.subr.mxu0 %v115
    %298 = vmatpush1.msra.mxu0 %v114
    %299 = vmatprep.subr.mxu0 %v119
    %300 = vmatpush1.msra.mxu0 %v118
    %301 = vmatprep.subr.mxu0 %v123
    %302 = vmatpush1.msra.mxu0 %v122
    %303 = vmatprep.subr.mxu0 %v127
    %304 = vmatpush1.msra.mxu0 %v126
    %305 = vmatprep.subr.mxu0 %v131
    %306 = vmatpush1.msra.mxu0 %v130
    %307 = vmatprep.subr.mxu0 %v135
    %308 = vmatpush1.msra.mxu0 %v134
    %309 = vmatprep.subr.mxu0 0.0
    %310 = vmatpush1.msra.mxu0 0.0
    %311 = vmatprep.subr.mxu0 0.0
    %312 = vmatpush1.msra.mxu0 0.0
    %313 = vmatprep.subr.mxu0 0.0
    %314 = vmatpush1.msra.mxu0 0.0
    %315 = vmatprep.subr.mxu0 0.0
    %316 = vmatpush1.msra.mxu0 0.0
    %317 = vmatprep.subr.mxu0 0.0
    %318 = vmatpush1.msra.mxu0 0.0
    %319 = vmatprep.subr.mxu0 0.0
    %320 = vmatpush1.msra.mxu0 0.0
    %321 = vmatprep.subr.mxu0 0.0
    %322 = vmatpush1.msra.mxu0 0.0
    %323 = vmatprep.subr.mxu0 0.0
    %324 = vmatpush1.msra.mxu0 0.0
    %325 = vmatprep.subr.mxu0 0.0
    %326 = vmatpush1.msra.mxu0 0.0
    %327 = vmatprep.subr.mxu0 0.0
    %328 = vmatpush1.msra.mxu0 0.0
    %329 = vmatprep.subr.mxu0 0.0
    %330 = vmatpush1.msra.mxu0 0.0
    %331 = vmatprep.subr.mxu0 0.0
    %332 = vmatpush1.msra.mxu0 0.0
    %333 = vmatprep.subr.mxu0 0.0
    %334 = vmatpush1.msra.mxu0 0.0
    %335 = vmatprep.subr.mxu0 0.0
    %336 = vmatpush1.msra.mxu0 0.0
    %337 = vmatprep.subr.mxu0 0.0
    %338 = vmatpush1.msra.mxu0 0.0
    %339 = vmatprep.subr.mxu0 0.0
    %340 = vmatpush1.msra.mxu0 0.0
    %341 = vmatprep.mubr.f32.mxu0 0.0
    %342 = vmatmul.mubr.f32.gmra.mrb[0].mxu0 %v63
    %v343 = vpop.f32.mrb[0].mxu0
    %v344 = vadd.f32 %v149, %v343
    %v345 = vpop.f32.mrb[0].mxu0
    %v346 = vadd.f32 %v153, %v345
    %347 = vmatprep.mubr.f32.mxu0 0.0
    %348 = vmatmul.mubr.f32.gmra.mrb[0].mxu0 %v64
    %v349 = vpop.f32.mrb[0].mxu0
    %v350 = vadd.f32 %v149, %v349
    %v351 = vpop.f32.mrb[0].mxu0
    %v352 = vadd.f32 %v153, %v351
    %353 = vmatprep.mubr.f32.mxu0 0.0
    %354 = vmatmul.mubr.f32.gmra.mrb[0].mxu0 %v65
    %v355 = vpop.f32.mrb[0].mxu0
    %v356 = vadd.f32 %v149, %v355
    %v357 = vpop.f32.mrb[0].mxu0
    %v358 = vadd.f32 %v153, %v357
    %359 = vmatprep.mubr.f32.mxu0 0.0
    %360 = vmatmul.mubr.f32.gmra.mrb[0].mxu0 %v66
    %v361 = vpop.f32.mrb[0].mxu0
    %v362 = vadd.f32 %v149, %v361
    %v363 = vpop.f32.mrb[0].mxu0
    %v364 = vadd.f32 %v153, %v363
    %365 = vmatprep.mubr.f32.mxu0 0.0
    %366 = vmatmul.mubr.f32.gmra.mrb[0].mxu0 %v67
    %v367 = vpop.f32.mrb[0].mxu0
    %v368 = vadd.f32 %v149, %v367
    %v369 = vpop.f32.mrb[0].mxu0
    %v370 = vadd.f32 %v153, %v369
    %371 = vmatprep.mubr.f32.mxu0 0.0
    %372 = vmatmul.mubr.f32.gmra.mrb[0].mxu0 %v68
    %v373 = vpop.f32.mrb[0].mxu0
    %v374 = vadd.f32 %v149, %v373
    %v375 = vpop.f32.mrb[0].mxu0
    %v376 = vadd.f32 %v153, %v375
    %377 = vmatprep.mubr.f32.mxu0 0.0
    %378 = vmatmul.mubr.f32.gmra.mrb[0].mxu0 %v69
    %v379 = vpop.f32.mrb[0].mxu0
    %v380 = vadd.f32 %v149, %v379
    %v381 = vpop.f32.mrb[0].mxu0
    %v382 = vadd.f32 %v153, %v381
    %383 = vmatprep.mubr.f32.mxu0 0.0
    %384 = vmatmul.mubr.f32.gmra.mrb[0].mxu0 %v70
    %v385 = vpop.f32.mrb[0].mxu0
    %v386 = vadd.f32 %v149, %v385
    %v387 = vpop.f32.mrb[0].mxu0
    %v388 = vadd.f32 %v153, %v387
    %389 = vmatprep.mubr.f32.mxu0 0.0
    %390 = vmatmul.mubr.f32.gmra.mrb[0].mxu0 %v71
    %v391 = vpop.f32.mrb[0].mxu0
    %v392 = vadd.f32 %v149, %v391
    %v393 = vpop.f32.mrb[0].mxu0
    %v394 = vadd.f32 %v153, %v393
    %395 = vdwg.mxu0
    %396 = vst [vmem:[#allocation3] sm:$0xff] %v225
    %397 = vst [vmem:[#allocation3 + $0x8] sm:$0xff] %v227
    %398 = vst [vmem:[#allocation3 + $0x10] sm:$0xff] %v344
    %399 = vst [vmem:[#allocation3 + $0x18] sm:$0xff] %v346
    %400 = vst [vmem:[#allocation3 + $0x20] sm:$0xff] %v231
    %401 = vst [vmem:[#allocation3 + $0x28] sm:$0xff] %v233
    %402 = vst [vmem:[#allocation3 + $0x30] sm:$0xff] %v350
    %403 = vst [vmem:[#allocation3 + $0x38] sm:$0xff] %v352
    %404 = vst [vmem:[#allocation3 + $0x40] sm:$0xff] %v237
    %405 = vst [vmem:[#allocation3 + $0x48] sm:$0xff] %v239
    %406 = vst [vmem:[#allocation3 + $0x50] sm:$0xff] %v356
    %407 = vst [vmem:[#allocation3 + $0x58] sm:$0xff] %v358
    %408 = vst [vmem:[#allocation3 + $0x60] sm:$0xff] %v243
    %409 = vst [vmem:[#allocation3 + $0x68] sm:$0xff] %v245
    %410 = vst [vmem:[#allocation3 + $0x70] sm:$0xff] %v362
    %411 = vst [vmem:[#allocation3 + $0x78] sm:$0xff] %v364
    %412 = vst [vmem:[#allocation3 + $0x80] sm:$0xff] %v249
    %413 = vst [vmem:[#allocation3 + $0x88] sm:$0xff] %v251
    %414 = vst [vmem:[#allocation3 + $0x90] sm:$0xff] %v368
    %415 = vst [vmem:[#allocation3 + $0x98] sm:$0xff] %v370
    %416 = vst [vmem:[#allocation3 + $0xa0] sm:$0xff] %v255
    %417 = vst [vmem:[#allocation3 + $0xa8] sm:$0xff] %v257
    %418 = vst [vmem:[#allocation3 + $0xb0] sm:$0xff] %v374
    %419 = vst [vmem:[#allocation3 + $0xb8] sm:$0xff] %v376
    %420 = vst [vmem:[#allocation3 + $0xc0] sm:$0xff] %v261
    %421 = vst [vmem:[#allocation3 + $0xc8] sm:$0xff] %v263
    %422 = vst [vmem:[#allocation3 + $0xd0] sm:$0xff] %v380
    %423 = vst [vmem:[#allocation3 + $0xd8] sm:$0xff] %v382
    %424 = vst [vmem:[#allocation3 + $0xe0] sm:$0xff] %v267
    %425 = vst [vmem:[#allocation3 + $0xe8] sm:$0xff] %v269
    %426 = vst [vmem:[#allocation3 + $0xf0] sm:$0xff] %v386
    %427 = vst [vmem:[#allocation3 + $0xf8] sm:$0xff] %v388
    %428 = vst [vmem:[#allocation3 + $0x100] sm:$0xff] %v273
    %429 = vst [vmem:[#allocation3 + $0x108] sm:$0xff] %v275
    %430 = vst [vmem:[#allocation3 + $0x110] sm:$0xff] %v392
    %431 = vst [vmem:[#allocation3 + $0x118] sm:$0xff] %v394
    %432 = vst [vmem:[#allocation4] sm:$0xff] 0.0
    %433 = vst [vmem:[#allocation5] sm:$0xff] 0.0
    %v434 = vld [vmem:[#allocation8] sm:$0xff]
    %v435 = vld [vmem:[#allocation8 + $0x8] sm:$0xff]
    %v436 = vld [vmem:[#allocation8 + $0x10] sm:$0xff]
    %v437 = vld [vmem:[#allocation8 + $0x18] sm:$0xff]
    %v438 = vld [vmem:[#allocation8 + $0x20] sm:$0xff]
    %v439 = vld [vmem:[#allocation8 + $0x28] sm:$0xff]
    %v440 = vld [vmem:[#allocation8 + $0x30] sm:$0xff]
    %v441 = vld [vmem:[#allocation8 + $0x38] sm:$0xff]
    %v442 = vld [vmem:[#allocation8 + $0x40] sm:$0xff]
    %v443 = vld [vmem:[#allocation8 + $0x48] sm:$0xff]
    %v444 = vld [vmem:[#allocation8 + $0x50] sm:$0xff]
    %v445 = vld [vmem:[#allocation8 + $0x58] sm:$0xff]
    %v446 = vld [vmem:[#allocation8 + $0x60] sm:$0xff]
    %v447 = vld [vmem:[#allocation8 + $0x68] sm:$0xff]
    %v448 = vld [vmem:[#allocation8 + $0x70] sm:$0xff]
    %v449 = vld [vmem:[#allocation8 + $0x78] sm:$0xff]
    %v450 = vld [vmem:[#allocation8 + $0x80] sm:$0xff]
    %v451 = vld [vmem:[#allocation8 + $0x88] sm:$0xff]
    %v452 = vld [vmem:[#allocation8 + $0x90] sm:$0xff]
    %v453 = vld [vmem:[#allocation8 + $0x98] sm:$0xff]
    %v454 = vld [vmem:[#allocation8 + $0xa0] sm:$0xff]
    %v455 = vld [vmem:[#allocation8 + $0xa8] sm:$0xff]
    %v456 = vld [vmem:[#allocation8 + $0xb0] sm:$0xff]
    %v457 = vld [vmem:[#allocation8 + $0xb8] sm:$0xff]
    %v458 = vld [vmem:[#allocation8 + $0xc0] sm:$0xff]
    %v459 = vld [vmem:[#allocation8 + $0xc8] sm:$0xff]
    %v460 = vld [vmem:[#allocation8 + $0xd0] sm:$0xff]
    %v461 = vld [vmem:[#allocation8 + $0xd8] sm:$0xff]
    %v462 = vld [vmem:[#allocation8 + $0xe0] sm:$0xff]
    %v463 = vld [vmem:[#allocation8 + $0xe8] sm:$0xff]
    %v464 = vld [vmem:[#allocation8 + $0xf0] sm:$0xff]
    %v465 = vld [vmem:[#allocation8 + $0xf8] sm:$0xff]
    %v466 = vld [vmem:[#allocation8 + $0x100] sm:$0xff]
    %v467 = vld [vmem:[#allocation8 + $0x108] sm:$0xff]
    %v468 = vld [vmem:[#allocation8 + $0x110] sm:$0xff]
    %v469 = vld [vmem:[#allocation8 + $0x118] sm:$0xff]
    %v470 = vld [vmem:[#allocation8 + $0x120] sm:$0xff]
    %v471 = vld [vmem:[#allocation8 + $0x128] sm:$0xff]
    %v472 = vld [vmem:[#allocation8 + $0x130] sm:$0xff]
    %v473 = vld [vmem:[#allocation8 + $0x138] sm:$0xff]
    %v474 = vld [vmem:[#allocation8 + $0x140] sm:$0xff]
    %v475 = vld [vmem:[#allocation8 + $0x148] sm:$0xff]
    %v476 = vld [vmem:[#allocation8 + $0x150] sm:$0xff]
    %v477 = vld [vmem:[#allocation8 + $0x158] sm:$0xff]
    %v478 = vld [vmem:[#allocation8 + $0x160] sm:$0xff]
    %v479 = vld [vmem:[#allocation8 + $0x168] sm:$0xff]
    %v480 = vld [vmem:[#allocation8 + $0x170] sm:$0xff]
    %v481 = vld [vmem:[#allocation8 + $0x178] sm:$0xff]
    %v482 = vld [vmem:[#allocation8 + $0x180] sm:$0xff]
    %v483 = vld [vmem:[#allocation8 + $0x188] sm:$0xff]
    %v484 = vld [vmem:[#allocation8 + $0x190] sm:$0xff]
    %v485 = vld [vmem:[#allocation8 + $0x198] sm:$0xff]
    %v486 = vld [vmem:[#allocation8 + $0x1a0] sm:$0xff]
    %v487 = vld [vmem:[#allocation8 + $0x1a8] sm:$0xff]
    %v488 = vld [vmem:[#allocation8 + $0x1b0] sm:$0xff]
    %v489 = vld [vmem:[#allocation8 + $0x1b8] sm:$0xff]
    %v490 = vld [vmem:[#allocation8 + $0x1c0] sm:$0xff]
    %v491 = vld [vmem:[#allocation8 + $0x1c8] sm:$0xff]
    %v492 = vld [vmem:[#allocation8 + $0x1d0] sm:$0xff]
    %v493 = vld [vmem:[#allocation8 + $0x1d8] sm:$0xff]
    %v494 = vld [vmem:[#allocation8 + $0x1e0] sm:$0xff]
    %v495 = vld [vmem:[#allocation8 + $0x1e8] sm:$0xff]
    %v496 = vld [vmem:[#allocation8 + $0x1f0] sm:$0xff]
    %v497 = vld [vmem:[#allocation8 + $0x1f8] sm:$0xff]
    %v498 = vld [vmem:[#allocation3] sm:$0xff]
    %v499 = vld [vmem:[#allocation3 + $0x8] sm:$0xff]
    %v500 = vld [vmem:[#allocation3 + $0x10] sm:$0xff]
    %v501 = vld [vmem:[#allocation3 + $0x18] sm:$0xff]
    %v502 = vld [vmem:[#allocation4] sm:$0xff]
    %503 = vmatprep.subr.mxu0 %v435
    %504 = vmatpush1.msra.mxu0 %v434
    %505 = vmatprep.subr.mxu0 %v439
    %506 = vmatpush1.msra.mxu0 %v438
    %507 = vmatprep.subr.mxu0 %v443
    %508 = vmatpush1.msra.mxu0 %v442
    %509 = vmatprep.subr.mxu0 %v447
    %510 = vmatpush1.msra.mxu0 %v446
    %511 = vmatprep.subr.mxu0 %v451
    %512 = vmatpush1.msra.mxu0 %v450
    %513 = vmatprep.subr.mxu0 %v455
    %514 = vmatpush1.msra.mxu0 %v454
    %515 = vmatprep.subr.mxu0 %v459
    %516 = vmatpush1.msra.mxu0 %v458
    %517 = vmatprep.subr.mxu0 %v463
    %518 = vmatpush1.msra.mxu0 %v462
    %519 = vmatprep.subr.mxu0 %v467
    %520 = vmatpush1.msra.mxu0 %v466
    %521 = vmatprep.subr.mxu0 %v471
    %522 = vmatpush1.msra.mxu0 %v470
    %523 = vmatprep.subr.mxu0 %v475
    %524 = vmatpush1.msra.mxu0 %v474
    %525 = vmatprep.subr.mxu0 %v479
    %526 = vmatpush1.msra.mxu0 %v478
    %527 = vmatprep.subr.mxu0 %v483
    %528 = vmatpush1.msra.mxu0 %v482
    %529 = vmatprep.subr.mxu0 %v487
    %530 = vmatpush1.msra.mxu0 %v486
    %531 = vmatprep.subr.mxu0 %v491
    %532 = vmatpush1.msra.mxu0 %v490
    %533 = vmatprep.subr.mxu0 %v495
    %534 = vmatpush1.msra.mxu0 %v494
    %535 = vmatprep.subr.mxu0 0.0
    %536 = vmatpush1.msra.mxu0 0.0
    %537 = vmatprep.subr.mxu0 0.0
    %538 = vmatpush1.msra.mxu0 0.0
    %539 = vmatprep.subr.mxu0 0.0
    %540 = vmatpush1.msra.mxu0 0.0
    %541 = vmatprep.subr.mxu0 0.0
    %542 = vmatpush1.msra.mxu0 0.0
    %543 = vmatprep.subr.mxu0 0.0
    %544 = vmatpush1.msra.mxu0 0.0
    %545 = vmatprep.subr.mxu0 0.0
    %546 = vmatpush1.msra.mxu0 0.0
    %547 = vmatprep.subr.mxu0 0.0
    %548 = vmatpush1.msra.mxu0 0.0
    %549 = vmatprep.subr.mxu0 0.0
    %550 = vmatpush1.msra.mxu0 0.0
    %551 = vmatprep.subr.mxu0 0.0
    %552 = vmatpush1.msra.mxu0 0.0
    %553 = vmatprep.subr.mxu0 0.0
    %554 = vmatpush1.msra.mxu0 0.0
    %555 = vmatprep.subr.mxu0 0.0
    %556 = vmatpush1.msra.mxu0 0.0
    %557 = vmatprep.subr.mxu0 0.0
    %558 = vmatpush1.msra.mxu0 0.0
    %559 = vmatprep.subr.mxu0 0.0
    %560 = vmatpush1.msra.mxu0 0.0
    %561 = vmatprep.subr.mxu0 0.0
    %562 = vmatpush1.msra.mxu0 0.0
    %563 = vmatprep.subr.mxu0 0.0
    %564 = vmatpush1.msra.mxu0 0.0
    %565 = vmatprep.subr.mxu0 0.0
    %566 = vmatpush1.msra.mxu0 0.0
    %567 = vmatprep.mubr.f32.mxu0 0.0
    %568 = vmatmul.mubr.f32.gmra.mrb[0].mxu0 %v502
    %v569 = vpop.f32.mrb[0].mxu0
    %v570 = vadd.f32 0.0, %v569
    %v571 = vpop.f32.mrb[0].mxu0
    %v572 = vadd.f32 0.0, %v571
    %573 = vdwg.mxu0
    %574 = vmatprep.subr.mxu0 %v437
    %575 = vmatpush1.msra.mxu0 %v436
    %576 = vmatprep.subr.mxu0 %v441
    %577 = vmatpush1.msra.mxu0 %v440
    %578 = vmatprep.subr.mxu0 %v445
    %579 = vmatpush1.msra.mxu0 %v444
    %580 = vmatprep.subr.mxu0 %v449
    %581 = vmatpush1.msra.mxu0 %v448
    %582 = vmatprep.subr.mxu0 %v453
    %583 = vmatpush1.msra.mxu0 %v452
    %584 = vmatprep.subr.mxu0 %v457
    %585 = vmatpush1.msra.mxu0 %v456
    %586 = vmatprep.subr.mxu0 %v461
    %587 = vmatpush1.msra.mxu0 %v460
    %588 = vmatprep.subr.mxu0 %v465
    %589 = vmatpush1.msra.mxu0 %v464
    %590 = vmatprep.subr.mxu0 %v469
    %591 = vmatpush1.msra.mxu0 %v468
    %592 = vmatprep.subr.mxu0 %v473
    %593 = vmatpush1.msra.mxu0 %v472
    %594 = vmatprep.subr.mxu0 %v477
    %595 = vmatpush1.msra.mxu0 %v476
    %596 = vmatprep.subr.mxu0 %v481
    %597 = vmatpush1.msra.mxu0 %v480
    %598 = vmatprep.subr.mxu0 %v485
    %599 = vmatpush1.msra.mxu0 %v484
    %600 = vmatprep.subr.mxu0 %v489
    %601 = vmatpush1.msra.mxu0 %v488
    %602 = vmatprep.subr.mxu0 %v493
    %603 = vmatpush1.msra.mxu0 %v492
    %604 = vmatprep.subr.mxu0 %v497
    %605 = vmatpush1.msra.mxu0 %v496
    %606 = vmatprep.subr.mxu0 0.0
    %607 = vmatpush1.msra.mxu0 0.0
    %608 = vmatprep.subr.mxu0 0.0
    %609 = vmatpush1.msra.mxu0 0.0
    %610 = vmatprep.subr.mxu0 0.0
    %611 = vmatpush1.msra.mxu0 0.0
    %612 = vmatprep.subr.mxu0 0.0
    %613 = vmatpush1.msra.mxu0 0.0
    %614 = vmatprep.subr.mxu0 0.0
    %615 = vmatpush1.msra.mxu0 0.0
    %616 = vmatprep.subr.mxu0 0.0
    %617 = vmatpush1.msra.mxu0 0.0
    %618 = vmatprep.subr.mxu0 0.0
    %619 = vmatpush1.msra.mxu0 0.0
    %620 = vmatprep.subr.mxu0 0.0
    %621 = vmatpush1.msra.mxu0 0.0
    %622 = vmatprep.subr.mxu0 0.0
    %623 = vmatpush1.msra.mxu0 0.0
    %624 = vmatprep.subr.mxu0 0.0
    %625 = vmatpush1.msra.mxu0 0.0
    %626 = vmatprep.subr.mxu0 0.0
    %627 = vmatpush1.msra.mxu0 0.0
    %628 = vmatprep.subr.mxu0 0.0
    %629 = vmatpush1.msra.mxu0 0.0
    %630 = vmatprep.subr.mxu0 0.0
    %631 = vmatpush1.msra.mxu0 0.0
    %632 = vmatprep.subr.mxu0 0.0
    %633 = vmatpush1.msra.mxu0 0.0
    %634 = vmatprep.subr.mxu0 0.0
    %635 = vmatpush1.msra.mxu0 0.0
    %636 = vmatprep.subr.mxu0 0.0
    %637 = vmatpush1.msra.mxu0 0.0
    %638 = vmatprep.mubr.f32.mxu0 0.0
    %639 = vmatmul.mubr.f32.gmra.mrb[0].mxu0 %v502
    %v640 = vpop.f32.mrb[0].mxu0
    %v641 = vadd.f32 0.0, %v640
    %v642 = vpop.f32.mrb[0].mxu0
    %v643 = vadd.f32 0.0, %v642
    %644 = vdwg.mxu0
    %v645 = vadd.f32 %v498, %v570
    %v646 = vadd.f32 %v499, %v572
    %v647 = vadd.f32 %v500, %v641
    %v648 = vadd.f32 %v501, %v643
    %v649 = vxor.u32 %v645, 2147483648
    %v650 = vmul.f32 %v649, 1.442695
    %v651 = vpow.pop %v650
    %v652 = vadd.f32 %v651, 1.0
    %v653 = vrcp.pop %v652
    %v654 = vmul.f32 1.0, %v653
    %v655 = vxor.u32 %v646, 2147483648
    %v656 = vmul.f32 %v655, 1.442695
    %v657 = vpow.pop %v656
    %v658 = vadd.f32 %v657, 1.0
    %v659 = vrcp.pop %v658
    %v660 = vmul.f32 1.0, %v659
    %v661 = vtanh.pop %v647
    %v662 = vxor.u32 %v648, 2147483648
    %v663 = vmul.f32 %v662, 1.442695
    %v664 = vpow.pop %v663
    %v665 = vadd.f32 %v664, 1.0
    %v666 = vrcp.pop %v665
    %v667 = vmul.f32 1.0, %v666
    %v668 = vld [vmem:[#allocation5] sm:$0xff]
    %v669 = vmul.f32 %v660, %v668
    %v670 = vmul.f32 %v654, %v661
    %v671 = vadd.f32 %v669, %v670
    %v672 = vtanh.pop %v671
    %v673 = vmul.f32 %v667, %v672
    %674 = vst [vmem:[#allocation5] sm:$0xff] %v671
    %675 = vst [vmem:[#allocation4] sm:$0xff] %v673
    %676 = vst [vmem:[#allocation2] sm:$0xff] %v673
    %s677 = scalar_lea.vmem [#allocation3], 32
    %v678 = vld [vmem:[%s677] sm:$0xff]
    %v679 = vld [vmem:[%s677 + $0x8] sm:$0xff]
    %v680 = vld [vmem:[%s677 + $0x10] sm:$0xff]
    %v681 = vld [vmem:[%s677 + $0x18] sm:$0xff]
    %v682 = vld [vmem:[#allocation4] sm:$0xff]
    %683 = vmatprep.subr.mxu0 %v435
    %684 = vmatpush1.msra.mxu0 %v434
    %685 = vmatprep.subr.mxu0 %v439
    %686 = vmatpush1.msra.mxu0 %v438
    %687 = vmatprep.subr.mxu0 %v443
    %688 = vmatpush1.msra.mxu0 %v442
    %689 = vmatprep.subr.mxu0 %v447
    %690 = vmatpush1.msra.mxu0 %v446
    %691 = vmatprep.subr.mxu0 %v451
    %692 = vmatpush1.msra.mxu0 %v450
    %693 = vmatprep.subr.mxu0 %v455
    %694 = vmatpush1.msra.mxu0 %v454
    %695 = vmatprep.subr.mxu0 %v459
    %696 = vmatpush1.msra.mxu0 %v458
    %697 = vmatprep.subr.mxu0 %v463
    %698 = vmatpush1.msra.mxu0 %v462
    %699 = vmatprep.subr.mxu0 %v467
    %700 = vmatpush1.msra.mxu0 %v466
    %701 = vmatprep.subr.mxu0 %v471
    %702 = vmatpush1.msra.mxu0 %v470
    %703 = vmatprep.subr.mxu0 %v475
    %704 = vmatpush1.msra.mxu0 %v474
    %705 = vmatprep.subr.mxu0 %v479
    %706 = vmatpush1.msra.mxu0 %v478
    %707 = vmatprep.subr.mxu0 %v483
    %708 = vmatpush1.msra.mxu0 %v482
    %709 = vmatprep.subr.mxu0 %v487
    %710 = vmatpush1.msra.mxu0 %v486
    %711 = vmatprep.subr.mxu0 %v491
    %712 = vmatpush1.msra.mxu0 %v490
    %713 = vmatprep.subr.mxu0 %v495
    %714 = vmatpush1.msra.mxu0 %v494
    %715 = vmatprep.subr.mxu0 0.0
    %716 = vmatpush1.msra.mxu0 0.0
    %717 = vmatprep.subr.mxu0 0.0
    %718 = vmatpush1.msra.mxu0 0.0
    %719 = vmatprep.subr.mxu0 0.0
    %720 = vmatpush1.msra.mxu0 0.0
    %721 = vmatprep.subr.mxu0 0.0
    %722 = vmatpush1.msra.mxu0 0.0
    %723 = vmatprep.subr.mxu0 0.0
    %724 = vmatpush1.msra.mxu0 0.0
    %725 = vmatprep.subr.mxu0 0.0
    %726 = vmatpush1.msra.mxu0 0.0
    %727 = vmatprep.subr.mxu0 0.0
    %728 = vmatpush1.msra.mxu0 0.0
    %729 = vmatprep.subr.mxu0 0.0
    %730 = vmatpush1.msra.mxu0 0.0
    %731 = vmatprep.subr.mxu0 0.0
    %732 = vmatpush1.msra.mxu0 0.0
    %733 = vmatprep.subr.mxu0 0.0
    %734 = vmatpush1.msra.mxu0 0.0
    %735 = vmatprep.subr.mxu0 0.0
    %736 = vmatpush1.msra.mxu0 0.0
    %737 = vmatprep.subr.mxu0 0.0
    %738 = vmatpush1.msra.mxu0 0.0
    %739 = vmatprep.subr.mxu0 0.0
    %740 = vmatpush1.msra.mxu0 0.0
    %741 = vmatprep.subr.mxu0 0.0
    %742 = vmatpush1.msra.mxu0 0.0
    %743 = vmatprep.subr.mxu0 0.0
    %744 = vmatpush1.msra.mxu0 0.0
    %745 = vmatprep.subr.mxu0 0.0
    %746 = vmatpush1.msra.mxu0 0.0
    %747 = vmatprep.mubr.f32.mxu0 0.0
    %748 = vmatmul.mubr.f32.gmra.mrb[0].mxu0 %v682
    %v749 = vpop.f32.mrb[0].mxu0
    %v750 = vadd.f32 0.0, %v749
    %v751 = vpop.f32.mrb[0].mxu0
    %v752 = vadd.f32 0.0, %v751
    %753 = vdwg.mxu0
    %754 = vmatprep.subr.mxu0 %v437
    %755 = vmatpush1.msra.mxu0 %v436
    %756 = vmatprep.subr.mxu0 %v441
    %757 = vmatpush1.msra.mxu0 %v440
    %758 = vmatprep.subr.mxu0 %v445
    %759 = vmatpush1.msra.mxu0 %v444
    %760 = vmatprep.subr.mxu0 %v449
    %761 = vmatpush1.msra.mxu0 %v448
    %762 = vmatprep.subr.mxu0 %v453
    %763 = vmatpush1.msra.mxu0 %v452
    %764 = vmatprep.subr.mxu0 %v457
    %765 = vmatpush1.msra.mxu0 %v456
    %766 = vmatprep.subr.mxu0 %v461
    %767 = vmatpush1.msra.mxu0 %v460
    %768 = vmatprep.subr.mxu0 %v465
    %769 = vmatpush1.msra.mxu0 %v464
    %770 = vmatprep.subr.mxu0 %v469
    %771 = vmatpush1.msra.mxu0 %v468
    %772 = vmatprep.subr.mxu0 %v473
    %773 = vmatpush1.msra.mxu0 %v472
    %774 = vmatprep.subr.mxu0 %v477
    %775 = vmatpush1.msra.mxu0 %v476
    %776 = vmatprep.subr.mxu0 %v481
    %777 = vmatpush1.msra.mxu0 %v480
    %778 = vmatprep.subr.mxu0 %v485
    %779 = vmatpush1.msra.mxu0 %v484
    %780 = vmatprep.subr.mxu0 %v489
    %781 = vmatpush1.msra.mxu0 %v488
    %782 = vmatprep.subr.mxu0 %v493
    %783 = vmatpush1.msra.mxu0 %v492
    %784 = vmatprep.subr.mxu0 %v497
    %785 = vmatpush1.msra.mxu0 %v496
    %786 = vmatprep.subr.mxu0 0.0
    %787 = vmatpush1.msra.mxu0 0.0
    %788 = vmatprep.subr.mxu0 0.0
    %789 = vmatpush1.msra.mxu0 0.0
    %790 = vmatprep.subr.mxu0 0.0
    %791 = vmatpush1.msra.mxu0 0.0
    %792 = vmatprep.subr.mxu0 0.0
    %793 = vmatpush1.msra.mxu0 0.0
    %794 = vmatprep.subr.mxu0 0.0
    %795 = vmatpush1.msra.mxu0 0.0
    %796 = vmatprep.subr.mxu0 0.0
    %797 = vmatpush1.msra.mxu0 0.0
    %798 = vmatprep.subr.mxu0 0.0
    %799 = vmatpush1.msra.mxu0 0.0
    %800 = vmatprep.subr.mxu0 0.0
    %801 = vmatpush1.msra.mxu0 0.0
    %802 = vmatprep.subr.mxu0 0.0
    %803 = vmatpush1.msra.mxu0 0.0
    %804 = vmatprep.subr.mxu0 0.0
    %805 = vmatpush1.msra.mxu0 0.0
    %806 = vmatprep.subr.mxu0 0.0
    %807 = vmatpush1.msra.mxu0 0.0
    %808 = vmatprep.subr.mxu0 0.0
    %809 = vmatpush1.msra.mxu0 0.0
    %810 = vmatprep.subr.mxu0 0.0
    %811 = vmatpush1.msra.mxu0 0.0
    %812 = vmatprep.subr.mxu0 0.0
    %813 = vmatpush1.msra.mxu0 0.0
    %814 = vmatprep.subr.mxu0 0.0
    %815 = vmatpush1.msra.mxu0 0.0
    %816 = vmatprep.subr.mxu0 0.0
    %817 = vmatpush1.msra.mxu0 0.0
    %818 = vmatprep.mubr.f32.mxu0 0.0
    %819 = vmatmul.mubr.f32.gmra.mrb[0].mxu0 %v682
    %v820 = vpop.f32.mrb[0].mxu0
    %v821 = vadd.f32 0.0, %v820
    %v822 = vpop.f32.mrb[0].mxu0
    %v823 = vadd.f32 0.0, %v822
    %824 = vdwg.mxu0
    %v825 = vadd.f32 %v678, %v750
    %v826 = vadd.f32 %v679, %v752
    %v827 = vadd.f32 %v680, %v821
    %v828 = vadd.f32 %v681, %v823
    %v829 = vxor.u32 %v825, 2147483648
    %v830 = vmul.f32 %v829, 1.442695
    %v831 = vpow.pop %v830
    %v832 = vadd.f32 %v831, 1.0
    %v833 = vrcp.pop %v832
    %v834 = vmul.f32 1.0, %v833
    %v835 = vxor.u32 %v826, 2147483648
    %v836 = vmul.f32 %v835, 1.442695
    %v837 = vpow.pop %v836
    %v838 = vadd.f32 %v837, 1.0
    %v839 = vrcp.pop %v838
    %v840 = vmul.f32 1.0, %v839
    %v841 = vtanh.pop %v827
    %v842 = vxor.u32 %v828, 2147483648
    %v843 = vmul.f32 %v842, 1.442695
    %v844 = vpow.pop %v843
    %v845 = vadd.f32 %v844, 1.0
    %v846 = vrcp.pop %v845
    %v847 = vmul.f32 1.0, %v846
    %v848 = vld [vmem:[#allocation5] sm:$0xff]
    %v849 = vmul.f32 %v840, %v848
    %v850 = vmul.f32 %v834, %v841
    %v851 = vadd.f32 %v849, %v850
    %v852 = vtanh.pop %v851
    %v853 = vmul.f32 %v847, %v852
    %854 = vst [vmem:[#allocation5] sm:$0xff] %v851
    %855 = vst [vmem:[#allocation4] sm:$0xff] %v853
    %s856 = scalar_lea.vmem [#allocation2], 8
    %857 = vst [vmem:[%s856] sm:$0xff] %v853
    %s858 = scalar_lea.vmem [#allocation3], 64
    %v859 = vld [vmem:[%s858] sm:$0xff]
    %v860 = vld [vmem:[%s858 + $0x8] sm:$0xff]
    %v861 = vld [vmem:[%s858 + $0x10] sm:$0xff]
    %v862 = vld [vmem:[%s858 + $0x18] sm:$0xff]
    %v863 = vld [vmem:[#allocation4] sm:$0xff]
    %864 = vmatprep.subr.mxu0 %v435
    %865 = vmatpush1.msra.mxu0 %v434
    %866 = vmatprep.subr.mxu0 %v439
    %867 = vmatpush1.msra.mxu0 %v438
    %868 = vmatprep.subr.mxu0 %v443
    %869 = vmatpush1.msra.mxu0 %v442
    %870 = vmatprep.subr.mxu0 %v447
    %871 = vmatpush1.msra.mxu0 %v446
    %872 = vmatprep.subr.mxu0 %v451
    %873 = vmatpush1.msra.mxu0 %v450
    %874 = vmatprep.subr.mxu0 %v455
    %875 = vmatpush1.msra.mxu0 %v454
    %876 = vmatprep.subr.mxu0 %v459
    %877 = vmatpush1.msra.mxu0 %v458
    %878 = vmatprep.subr.mxu0 %v463
    %879 = vmatpush1.msra.mxu0 %v462
    %880 = vmatprep.subr.mxu0 %v467
    %881 = vmatpush1.msra.mxu0 %v466
    %882 = vmatprep.subr.mxu0 %v471
    %883 = vmatpush1.msra.mxu0 %v470
    %884 = vmatprep.subr.mxu0 %v475
    %885 = vmatpush1.msra.mxu0 %v474
    %886 = vmatprep.subr.mxu0 %v479
    %887 = vmatpush1.msra.mxu0 %v478
    %888 = vmatprep.subr.mxu0 %v483
    %889 = vmatpush1.msra.mxu0 %v482
    %890 = vmatprep.subr.mxu0 %v487
    %891 = vmatpush1.msra.mxu0 %v486
    %892 = vmatprep.subr.mxu0 %v491
    %893 = vmatpush1.msra.mxu0 %v490
    %894 = vmatprep.subr.mxu0 %v495
    %895 = vmatpush1.msra.mxu0 %v494
    %896 = vmatprep.subr.mxu0 0.0
    %897 = vmatpush1.msra.mxu0 0.0
    %898 = vmatprep.subr.mxu0 0.0
    %899 = vmatpush1.msra.mxu0 0.0
    %900 = vmatprep.subr.mxu0 0.0
    %901 = vmatpush1.msra.mxu0 0.0
    %902 = vmatprep.subr.mxu0 0.0
    %903 = vmatpush1.msra.mxu0 0.0
    %904 = vmatprep.subr.mxu0 0.0
    %905 = vmatpush1.msra.mxu0 0.0
    %906 = vmatprep.subr.mxu0 0.0
    %907 = vmatpush1.msra.mxu0 0.0
    %908 = vmatprep.subr.mxu0 0.0
    %909 = vmatpush1.msra.mxu0 0.0
    %910 = vmatprep.subr.mxu0 0.0
    %911 = vmatpush1.msra.mxu0 0.0
    %912 = vmatprep.subr.mxu0 0.0
    %913 = vmatpush1.msra.mxu0 0.0
    %914 = vmatprep.subr.mxu0 0.0
    %915 = vmatpush1.msra.mxu0 0.0
    %916 = vmatprep.subr.mxu0 0.0
    %917 = vmatpush1.msra.mxu0 0.0
    %918 = vmatprep.subr.mxu0 0.0
    %919 = vmatpush1.msra.mxu0 0.0
    %920 = vmatprep.subr.mxu0 0.0
    %921 = vmatpush1.msra.mxu0 0.0
    %922 = vmatprep.subr.mxu0 0.0
    %923 = vmatpush1.msra.mxu0 0.0
    %924 = vmatprep.subr.mxu0 0.0
    %925 = vmatpush1.msra.mxu0 0.0
    %926 = vmatprep.subr.mxu0 0.0
    %927 = vmatpush1.msra.mxu0 0.0
    %928 = vmatprep.mubr.f32.mxu0 0.0
    %929 = vmatmul.mubr.f32.gmra.mrb[0].mxu0 %v863
    %v930 = vpop.f32.mrb[0].mxu0
    %v931 = vadd.f32 0.0, %v930
    %v932 = vpop.f32.mrb[0].mxu0
    %v933 = vadd.f32 0.0, %v932
    %934 = vdwg.mxu0
    %935 = vmatprep.subr.mxu0 %v437
    %936 = vmatpush1.msra.mxu0 %v436
    %937 = vmatprep.subr.mxu0 %v441
    %938 = vmatpush1.msra.mxu0 %v440
    %939 = vmatprep.subr.mxu0 %v445
    %940 = vmatpush1.msra.mxu0 %v444
    %941 = vmatprep.subr.mxu0 %v449
    %942 = vmatpush1.msra.mxu0 %v448
    %943 = vmatprep.subr.mxu0 %v453
    %944 = vmatpush1.msra.mxu0 %v452
    %945 = vmatprep.subr.mxu0 %v457
    %946 = vmatpush1.msra.mxu0 %v456
    %947 = vmatprep.subr.mxu0 %v461
    %948 = vmatpush1.msra.mxu0 %v460
    %949 = vmatprep.subr.mxu0 %v465
    %950 = vmatpush1.msra.mxu0 %v464
    %951 = vmatprep.subr.mxu0 %v469
    %952 = vmatpush1.msra.mxu0 %v468
    %953 = vmatprep.subr.mxu0 %v473
    %954 = vmatpush1.msra.mxu0 %v472
    %955 = vmatprep.subr.mxu0 %v477
    %956 = vmatpush1.msra.mxu0 %v476
    %957 = vmatprep.subr.mxu0 %v481
    %958 = vmatpush1.msra.mxu0 %v480
    %959 = vmatprep.subr.mxu0 %v485
    %960 = vmatpush1.msra.mxu0 %v484
    %961 = vmatprep.subr.mxu0 %v489
    %962 = vmatpush1.msra.mxu0 %v488
    %963 = vmatprep.subr.mxu0 %v493
    %964 = vmatpush1.msra.mxu0 %v492
    %965 = vmatprep.subr.mxu0 %v497
    %966 = vmatpush1.msra.mxu0 %v496
    %967 = vmatprep.subr.mxu0 0.0
    %968 = vmatpush1.msra.mxu0 0.0
    %969 = vmatprep.subr.mxu0 0.0
    %970 = vmatpush1.msra.mxu0 0.0
    %971 = vmatprep.subr.mxu0 0.0
    %972 = vmatpush1.msra.mxu0 0.0
    %973 = vmatprep.subr.mxu0 0.0
    %974 = vmatpush1.msra.mxu0 0.0
    %975 = vmatprep.subr.mxu0 0.0
    %976 = vmatpush1.msra.mxu0 0.0
    %977 = vmatprep.subr.mxu0 0.0
    %978 = vmatpush1.msra.mxu0 0.0
    %979 = vmatprep.subr.mxu0 0.0
    %980 = vmatpush1.msra.mxu0 0.0
    %981 = vmatprep.subr.mxu0 0.0
    %982 = vmatpush1.msra.mxu0 0.0
    %983 = vmatprep.subr.mxu0 0.0
    %984 = vmatpush1.msra.mxu0 0.0
    %985 = vmatprep.subr.mxu0 0.0
    %986 = vmatpush1.msra.mxu0 0.0
    %987 = vmatprep.subr.mxu0 0.0
    %988 = vmatpush1.msra.mxu0 0.0
    %989 = vmatprep.subr.mxu0 0.0
    %990 = vmatpush1.msra.mxu0 0.0
    %991 = vmatprep.subr.mxu0 0.0
    %992 = vmatpush1.msra.mxu0 0.0
    %993 = vmatprep.subr.mxu0 0.0
    %994 = vmatpush1.msra.mxu0 0.0
    %995 = vmatprep.subr.mxu0 0.0
    %996 = vmatpush1.msra.mxu0 0.0
    %997 = vmatprep.subr.mxu0 0.0
    %998 = vmatpush1.msra.mxu0 0.0
    %999 = vmatprep.mubr.f32.mxu0 0.0
    %1000 = vmatmul.mubr.f32.gmra.mrb[0].mxu0 %v863
    %v1001 = vpop.f32.mrb[0].mxu0
    %v1002 = vadd.f32 0.0, %v1001
    %v1003 = vpop.f32.mrb[0].mxu0
    %v1004 = vadd.f32 0.0, %v1003
    %1005 = vdwg.mxu0
    %v1006 = vadd.f32 %v859, %v931
    %v1007 = vadd.f32 %v860, %v933
    %v1008 = vadd.f32 %v861, %v1002
    %v1009 = vadd.f32 %v862, %v1004
    %v1010 = vxor.u32 %v1006, 2147483648
    %v1011 = vmul.f32 %v1010, 1.442695
    %v1012 = vpow.pop %v1011
    %v1013 = vadd.f32 %v1012, 1.0
    %v1014 = vrcp.pop %v1013
    %v1015 = vmul.f32 1.0, %v1014
    %v1016 = vxor.u32 %v1007, 2147483648
    %v1017 = vmul.f32 %v1016, 1.442695
    %v1018 = vpow.pop %v1017
    %v1019 = vadd.f32 %v1018, 1.0
    %v1020 = vrcp.pop %v1019
    %v1021 = vmul.f32 1.0, %v1020
    %v1022 = vtanh.pop %v1008
    %v1023 = vxor.u32 %v1009, 2147483648
    %v1024 = vmul.f32 %v1023, 1.442695
    %v1025 = vpow.pop %v1024
    %v1026 = vadd.f32 %v1025, 1.0
    %v1027 = vrcp.pop %v1026
    %v1028 = vmul.f32 1.0, %v1027
    %v1029 = vld [vmem:[#allocation5] sm:$0xff]
    %v1030 = vmul.f32 %v1021, %v1029
    %v1031 = vmul.f32 %v1015, %v1022
    %v1032 = vadd.f32 %v1030, %v1031
    %v1033 = vtanh.pop %v1032
    %v1034 = vmul.f32 %v1028, %v1033
    %1035 = vst [vmem:[#allocation5] sm:$0xff] %v1032
    %1036 = vst [vmem:[#allocation4] sm:$0xff] %v1034
    %s1037 = scalar_lea.vmem [#allocation2], 16
    %1038 = vst [vmem:[%s1037] sm:$0xff] %v1034
    %s1039 = scalar_lea.vmem [#allocation3], 96
    %v1040 = vld [vmem:[%s1039] sm:$0xff]
    %v1041 = vld [vmem:[%s1039 + $0x8] sm:$0xff]
    %v1042 = vld [vmem:[%s1039 + $0x10] sm:$0xff]
    %v1043 = vld [vmem:[%s1039 + $0x18] sm:$0xff]
    %v1044 = vld [vmem:[#allocation4] sm:$0xff]
    %1045 = vmatprep.subr.mxu0 %v435
    %1046 = vmatpush1.msra.mxu0 %v434
    %1047 = vmatprep.subr.mxu0 %v439
    %1048 = vmatpush1.msra.mxu0 %v438
    %1049 = vmatprep.subr.mxu0 %v443
    %1050 = vmatpush1.msra.mxu0 %v442
    %1051 = vmatprep.subr.mxu0 %v447
    %1052 = vmatpush1.msra.mxu0 %v446
    %1053 = vmatprep.subr.mxu0 %v451
    %1054 = vmatpush1.msra.mxu0 %v450
    %1055 = vmatprep.subr.mxu0 %v455
    %1056 = vmatpush1.msra.mxu0 %v454
    %1057 = vmatprep.subr.mxu0 %v459
    %1058 = vmatpush1.msra.mxu0 %v458
    %1059 = vmatprep.subr.mxu0 %v463
    %1060 = vmatpush1.msra.mxu0 %v462
    %1061 = vmatprep.subr.mxu0 %v467
    %1062 = vmatpush1.msra.mxu0 %v466
    %1063 = vmatprep.subr.mxu0 %v471
    %1064 = vmatpush1.msra.mxu0 %v470
    %1065 = vmatprep.subr.mxu0 %v475
    %1066 = vmatpush1.msra.mxu0 %v474
    %1067 = vmatprep.subr.mxu0 %v479
    %1068 = vmatpush1.msra.mxu0 %v478
    %1069 = vmatprep.subr.mxu0 %v483
    %1070 = vmatpush1.msra.mxu0 %v482
    %1071 = vmatprep.subr.mxu0 %v487
    %1072 = vmatpush1.msra.mxu0 %v486
    %1073 = vmatprep.subr.mxu0 %v491
    %1074 = vmatpush1.msra.mxu0 %v490
    %1075 = vmatprep.subr.mxu0 %v495
    %1076 = vmatpush1.msra.mxu0 %v494
    %1077 = vmatprep.subr.mxu0 0.0
    %1078 = vmatpush1.msra.mxu0 0.0
    %1079 = vmatprep.subr.mxu0 0.0
    %1080 = vmatpush1.msra.mxu0 0.0
    %1081 = vmatprep.subr.mxu0 0.0
    %1082 = vmatpush1.msra.mxu0 0.0
    %1083 = vmatprep.subr.mxu0 0.0
    %1084 = vmatpush1.msra.mxu0 0.0
    %1085 = vmatprep.subr.mxu0 0.0
    %1086 = vmatpush1.msra.mxu0 0.0
    %1087 = vmatprep.subr.mxu0 0.0
    %1088 = vmatpush1.msra.mxu0 0.0
    %1089 = vmatprep.subr.mxu0 0.0
    %1090 = vmatpush1.msra.mxu0 0.0
    %1091 = vmatprep.subr.mxu0 0.0
    %1092 = vmatpush1.msra.mxu0 0.0
    %1093 = vmatprep.subr.mxu0 0.0
    %1094 = vmatpush1.msra.mxu0 0.0
    %1095 = vmatprep.subr.mxu0 0.0
    %1096 = vmatpush1.msra.mxu0 0.0
    %1097 = vmatprep.subr.mxu0 0.0
    %1098 = vmatpush1.msra.mxu0 0.0
    %1099 = vmatprep.subr.mxu0 0.0
    %1100 = vmatpush1.msra.mxu0 0.0
    %1101 = vmatprep.subr.mxu0 0.0
    %1102 = vmatpush1.msra.mxu0 0.0
    %1103 = vmatprep.subr.mxu0 0.0
    %1104 = vmatpush1.msra.mxu0 0.0
    %1105 = vmatprep.subr.mxu0 0.0
    %1106 = vmatpush1.msra.mxu0 0.0
    %1107 = vmatprep.subr.mxu0 0.0
    %1108 = vmatpush1.msra.mxu0 0.0
    %1109 = vmatprep.mubr.f32.mxu0 0.0
    %1110 = vmatmul.mubr.f32.gmra.mrb[0].mxu0 %v1044
    %v1111 = vpop.f32.mrb[0].mxu0
    %v1112 = vadd.f32 0.0, %v1111
    %v1113 = vpop.f32.mrb[0].mxu0
    %v1114 = vadd.f32 0.0, %v1113
    %1115 = vdwg.mxu0
    %1116 = vmatprep.subr.mxu0 %v437
    %1117 = vmatpush1.msra.mxu0 %v436
    %1118 = vmatprep.subr.mxu0 %v441
    %1119 = vmatpush1.msra.mxu0 %v440
    %1120 = vmatprep.subr.mxu0 %v445
    %1121 = vmatpush1.msra.mxu0 %v444
    %1122 = vmatprep.subr.mxu0 %v449
    %1123 = vmatpush1.msra.mxu0 %v448
    %1124 = vmatprep.subr.mxu0 %v453
    %1125 = vmatpush1.msra.mxu0 %v452
    %1126 = vmatprep.subr.mxu0 %v457
    %1127 = vmatpush1.msra.mxu0 %v456
    %1128 = vmatprep.subr.mxu0 %v461
    %1129 = vmatpush1.msra.mxu0 %v460
    %1130 = vmatprep.subr.mxu0 %v465
    %1131 = vmatpush1.msra.mxu0 %v464
    %1132 = vmatprep.subr.mxu0 %v469
    %1133 = vmatpush1.msra.mxu0 %v468
    %1134 = vmatprep.subr.mxu0 %v473
    %1135 = vmatpush1.msra.mxu0 %v472
    %1136 = vmatprep.subr.mxu0 %v477
    %1137 = vmatpush1.msra.mxu0 %v476
    %1138 = vmatprep.subr.mxu0 %v481
    %1139 = vmatpush1.msra.mxu0 %v480
    %1140 = vmatprep.subr.mxu0 %v485
    %1141 = vmatpush1.msra.mxu0 %v484
    %1142 = vmatprep.subr.mxu0 %v489
    %1143 = vmatpush1.msra.mxu0 %v488
    %1144 = vmatprep.subr.mxu0 %v493
    %1145 = vmatpush1.msra.mxu0 %v492
    %1146 = vmatprep.subr.mxu0 %v497
    %1147 = vmatpush1.msra.mxu0 %v496
    %1148 = vmatprep.subr.mxu0 0.0
    %1149 = vmatpush1.msra.mxu0 0.0
    %1150 = vmatprep.subr.mxu0 0.0
    %1151 = vmatpush1.msra.mxu0 0.0
    %1152 = vmatprep.subr.mxu0 0.0
    %1153 = vmatpush1.msra.mxu0 0.0
    %1154 = vmatprep.subr.mxu0 0.0
    %1155 = vmatpush1.msra.mxu0 0.0
    %1156 = vmatprep.subr.mxu0 0.0
    %1157 = vmatpush1.msra.mxu0 0.0
    %1158 = vmatprep.subr.mxu0 0.0
    %1159 = vmatpush1.msra.mxu0 0.0
    %1160 = vmatprep.subr.mxu0 0.0
    %1161 = vmatpush1.msra.mxu0 0.0
    %1162 = vmatprep.subr.mxu0 0.0
    %1163 = vmatpush1.msra.mxu0 0.0
    %1164 = vmatprep.subr.mxu0 0.0
    %1165 = vmatpush1.msra.mxu0 0.0
    %1166 = vmatprep.subr.mxu0 0.0
    %1167 = vmatpush1.msra.mxu0 0.0
    %1168 = vmatprep.subr.mxu0 0.0
    %1169 = vmatpush1.msra.mxu0 0.0
    %1170 = vmatprep.subr.mxu0 0.0
    %1171 = vmatpush1.msra.mxu0 0.0
    %1172 = vmatprep.subr.mxu0 0.0
    %1173 = vmatpush1.msra.mxu0 0.0
    %1174 = vmatprep.subr.mxu0 0.0
    %1175 = vmatpush1.msra.mxu0 0.0
    %1176 = vmatprep.subr.mxu0 0.0
    %1177 = vmatpush1.msra.mxu0 0.0
    %1178 = vmatprep.subr.mxu0 0.0
    %1179 = vmatpush1.msra.mxu0 0.0
    %1180 = vmatprep.mubr.f32.mxu0 0.0
    %1181 = vmatmul.mubr.f32.gmra.mrb[0].mxu0 %v1044
    %v1182 = vpop.f32.mrb[0].mxu0
    %v1183 = vadd.f32 0.0, %v1182
    %v1184 = vpop.f32.mrb[0].mxu0
    %v1185 = vadd.f32 0.0, %v1184
    %1186 = vdwg.mxu0
    %v1187 = vadd.f32 %v1040, %v1112
    %v1188 = vadd.f32 %v1041, %v1114
    %v1189 = vadd.f32 %v1042, %v1183
    %v1190 = vadd.f32 %v1043, %v1185
    %v1191 = vxor.u32 %v1187, 2147483648
    %v1192 = vmul.f32 %v1191, 1.442695
    %v1193 = vpow.pop %v1192
    %v1194 = vadd.f32 %v1193, 1.0
    %v1195 = vrcp.pop %v1194
    %v1196 = vmul.f32 1.0, %v1195
    %v1197 = vxor.u32 %v1188, 2147483648
    %v1198 = vmul.f32 %v1197, 1.442695
    %v1199 = vpow.pop %v1198
    %v1200 = vadd.f32 %v1199, 1.0
    %v1201 = vrcp.pop %v1200
    %v1202 = vmul.f32 1.0, %v1201
    %v1203 = vtanh.pop %v1189
    %v1204 = vxor.u32 %v1190, 2147483648
    %v1205 = vmul.f32 %v1204, 1.442695
    %v1206 = vpow.pop %v1205
    %v1207 = vadd.f32 %v1206, 1.0
    %v1208 = vrcp.pop %v1207
    %v1209 = vmul.f32 1.0, %v1208
    %v1210 = vld [vmem:[#allocation5] sm:$0xff]
    %v1211 = vmul.f32 %v1202, %v1210
    %v1212 = vmul.f32 %v1196, %v1203
    %v1213 = vadd.f32 %v1211, %v1212
    %v1214 = vtanh.pop %v1213
    %v1215 = vmul.f32 %v1209, %v1214
    %1216 = vst [vmem:[#allocation5] sm:$0xff] %v1213
    %1217 = vst [vmem:[#allocation4] sm:$0xff] %v1215
    %s1218 = scalar_lea.vmem [#allocation2], 24
    %1219 = vst [vmem:[%s1218] sm:$0xff] %v1215
    %s1220 = scalar_lea.vmem [#allocation3], 128
    %v1221 = vld [vmem:[%s1220] sm:$0xff]
    %v1222 = vld [vmem:[%s1220 + $0x8] sm:$0xff]
    %v1223 = vld [vmem:[%s1220 + $0x10] sm:$0xff]
    %v1224 = vld [vmem:[%s1220 + $0x18] sm:$0xff]
    %v1225 = vld [vmem:[#allocation4] sm:$0xff]
    %1226 = vmatprep.subr.mxu0 %v435
    %1227 = vmatpush1.msra.mxu0 %v434
    %1228 = vmatprep.subr.mxu0 %v439
    %1229 = vmatpush1.msra.mxu0 %v438
    %1230 = vmatprep.subr.mxu0 %v443
    %1231 = vmatpush1.msra.mxu0 %v442
    %1232 = vmatprep.subr.mxu0 %v447
    %1233 = vmatpush1.msra.mxu0 %v446
    %1234 = vmatprep.subr.mxu0 %v451
    %1235 = vmatpush1.msra.mxu0 %v450
    %1236 = vmatprep.subr.mxu0 %v455
    %1237 = vmatpush1.msra.mxu0 %v454
    %1238 = vmatprep.subr.mxu0 %v459
    %1239 = vmatpush1.msra.mxu0 %v458
    %1240 = vmatprep.subr.mxu0 %v463
    %1241 = vmatpush1.msra.mxu0 %v462
    %1242 = vmatprep.subr.mxu0 %v467
    %1243 = vmatpush1.msra.mxu0 %v466
    %1244 = vmatprep.subr.mxu0 %v471
    %1245 = vmatpush1.msra.mxu0 %v470
    %1246 = vmatprep.subr.mxu0 %v475
    %1247 = vmatpush1.msra.mxu0 %v474
    %1248 = vmatprep.subr.mxu0 %v479
    %1249 = vmatpush1.msra.mxu0 %v478
    %1250 = vmatprep.subr.mxu0 %v483
    %1251 = vmatpush1.msra.mxu0 %v482
    %1252 = vmatprep.subr.mxu0 %v487
    %1253 = vmatpush1.msra.mxu0 %v486
    %1254 = vmatprep.subr.mxu0 %v491
    %1255 = vmatpush1.msra.mxu0 %v490
    %1256 = vmatprep.subr.mxu0 %v495
    %1257 = vmatpush1.msra.mxu0 %v494
    %1258 = vmatprep.subr.mxu0 0.0
    %1259 = vmatpush1.msra.mxu0 0.0
    %1260 = vmatprep.subr.mxu0 0.0
    %1261 = vmatpush1.msra.mxu0 0.0
    %1262 = vmatprep.subr.mxu0 0.0
    %1263 = vmatpush1.msra.mxu0 0.0
    %1264 = vmatprep.subr.mxu0 0.0
    %1265 = vmatpush1.msra.mxu0 0.0
    %1266 = vmatprep.subr.mxu0 0.0
    %1267 = vmatpush1.msra.mxu0 0.0
    %1268 = vmatprep.subr.mxu0 0.0
    %1269 = vmatpush1.msra.mxu0 0.0
    %1270 = vmatprep.subr.mxu0 0.0
    %1271 = vmatpush1.msra.mxu0 0.0
    %1272 = vmatprep.subr.mxu0 0.0
    %1273 = vmatpush1.msra.mxu0 0.0
    %1274 = vmatprep.subr.mxu0 0.0
    %1275 = vmatpush1.msra.mxu0 0.0
    %1276 = vmatprep.subr.mxu0 0.0
    %1277 = vmatpush1.msra.mxu0 0.0
    %1278 = vmatprep.subr.mxu0 0.0
    %1279 = vmatpush1.msra.mxu0 0.0
    %1280 = vmatprep.subr.mxu0 0.0
    %1281 = vmatpush1.msra.mxu0 0.0
    %1282 = vmatprep.subr.mxu0 0.0
    %1283 = vmatpush1.msra.mxu0 0.0
    %1284 = vmatprep.subr.mxu0 0.0
    %1285 = vmatpush1.msra.mxu0 0.0
    %1286 = vmatprep.subr.mxu0 0.0
    %1287 = vmatpush1.msra.mxu0 0.0
    %1288 = vmatprep.subr.mxu0 0.0
    %1289 = vmatpush1.msra.mxu0 0.0
    %1290 = vmatprep.mubr.f32.mxu0 0.0
    %1291 = vmatmul.mubr.f32.gmra.mrb[0].mxu0 %v1225
    %v1292 = vpop.f32.mrb[0].mxu0
    %v1293 = vadd.f32 0.0, %v1292
    %v1294 = vpop.f32.mrb[0].mxu0
    %v1295 = vadd.f32 0.0, %v1294
    %1296 = vdwg.mxu0
    %1297 = vmatprep.subr.mxu0 %v437
    %1298 = vmatpush1.msra.mxu0 %v436
    %1299 = vmatprep.subr.mxu0 %v441
    %1300 = vmatpush1.msra.mxu0 %v440
    %1301 = vmatprep.subr.mxu0 %v445
    %1302 = vmatpush1.msra.mxu0 %v444
    %1303 = vmatprep.subr.mxu0 %v449
    %1304 = vmatpush1.msra.mxu0 %v448
    %1305 = vmatprep.subr.mxu0 %v453
    %1306 = vmatpush1.msra.mxu0 %v452
    %1307 = vmatprep.subr.mxu0 %v457
    %1308 = vmatpush1.msra.mxu0 %v456
    %1309 = vmatprep.subr.mxu0 %v461
    %1310 = vmatpush1.msra.mxu0 %v460
    %1311 = vmatprep.subr.mxu0 %v465
    %1312 = vmatpush1.msra.mxu0 %v464
    %1313 = vmatprep.subr.mxu0 %v469
    %1314 = vmatpush1.msra.mxu0 %v468
    %1315 = vmatprep.subr.mxu0 %v473
    %1316 = vmatpush1.msra.mxu0 %v472
    %1317 = vmatprep.subr.mxu0 %v477
    %1318 = vmatpush1.msra.mxu0 %v476
    %1319 = vmatprep.subr.mxu0 %v481
    %1320 = vmatpush1.msra.mxu0 %v480
    %1321 = vmatprep.subr.mxu0 %v485
    %1322 = vmatpush1.msra.mxu0 %v484
    %1323 = vmatprep.subr.mxu0 %v489
    %1324 = vmatpush1.msra.mxu0 %v488
    %1325 = vmatprep.subr.mxu0 %v493
    %1326 = vmatpush1.msra.mxu0 %v492
    %1327 = vmatprep.subr.mxu0 %v497
    %1328 = vmatpush1.msra.mxu0 %v496
    %1329 = vmatprep.subr.mxu0 0.0
    %1330 = vmatpush1.msra.mxu0 0.0
    %1331 = vmatprep.subr.mxu0 0.0
    %1332 = vmatpush1.msra.mxu0 0.0
    %1333 = vmatprep.subr.mxu0 0.0
    %1334 = vmatpush1.msra.mxu0 0.0
    %1335 = vmatprep.subr.mxu0 0.0
    %1336 = vmatpush1.msra.mxu0 0.0
    %1337 = vmatprep.subr.mxu0 0.0
    %1338 = vmatpush1.msra.mxu0 0.0
    %1339 = vmatprep.subr.mxu0 0.0
    %1340 = vmatpush1.msra.mxu0 0.0
    %1341 = vmatprep.subr.mxu0 0.0
    %1342 = vmatpush1.msra.mxu0 0.0
    %1343 = vmatprep.subr.mxu0 0.0
    %1344 = vmatpush1.msra.mxu0 0.0
    %1345 = vmatprep.subr.mxu0 0.0
    %1346 = vmatpush1.msra.mxu0 0.0
    %1347 = vmatprep.subr.mxu0 0.0
    %1348 = vmatpush1.msra.mxu0 0.0
    %1349 = vmatprep.subr.mxu0 0.0
    %1350 = vmatpush1.msra.mxu0 0.0
    %1351 = vmatprep.subr.mxu0 0.0
    %1352 = vmatpush1.msra.mxu0 0.0
    %1353 = vmatprep.subr.mxu0 0.0
    %1354 = vmatpush1.msra.mxu0 0.0
    %1355 = vmatprep.subr.mxu0 0.0
    %1356 = vmatpush1.msra.mxu0 0.0
    %1357 = vmatprep.subr.mxu0 0.0
    %1358 = vmatpush1.msra.mxu0 0.0
    %1359 = vmatprep.subr.mxu0 0.0
    %1360 = vmatpush1.msra.mxu0 0.0
    %1361 = vmatprep.mubr.f32.mxu0 0.0
    %1362 = vmatmul.mubr.f32.gmra.mrb[0].mxu0 %v1225
    %v1363 = vpop.f32.mrb[0].mxu0
    %v1364 = vadd.f32 0.0, %v1363
    %v1365 = vpop.f32.mrb[0].mxu0
    %v1366 = vadd.f32 0.0, %v1365
    %1367 = vdwg.mxu0
    %v1368 = vadd.f32 %v1221, %v1293
    %v1369 = vadd.f32 %v1222, %v1295
    %v1370 = vadd.f32 %v1223, %v1364
    %v1371 = vadd.f32 %v1224, %v1366
    %v1372 = vxor.u32 %v1368, 2147483648
    %v1373 = vmul.f32 %v1372, 1.442695
    %v1374 = vpow.pop %v1373
    %v1375 = vadd.f32 %v1374, 1.0
    %v1376 = vrcp.pop %v1375
    %v1377 = vmul.f32 1.0, %v1376
    %v1378 = vxor.u32 %v1369, 2147483648
    %v1379 = vmul.f32 %v1378, 1.442695
    %v1380 = vpow.pop %v1379
    %v1381 = vadd.f32 %v1380, 1.0
    %v1382 = vrcp.pop %v1381
    %v1383 = vmul.f32 1.0, %v1382
    %v1384 = vtanh.pop %v1370
    %v1385 = vxor.u32 %v1371, 2147483648
    %v1386 = vmul.f32 %v1385, 1.442695
    %v1387 = vpow.pop %v1386
    %v1388 = vadd.f32 %v1387, 1.0
    %v1389 = vrcp.pop %v1388
    %v1390 = vmul.f32 1.0, %v1389
    %v1391 = vld [vmem:[#allocation5] sm:$0xff]
    %v1392 = vmul.f32 %v1383, %v1391
    %v1393 = vmul.f32 %v1377, %v1384
    %v1394 = vadd.f32 %v1392, %v1393
    %v1395 = vtanh.pop %v1394
    %v1396 = vmul.f32 %v1390, %v1395
    %1397 = vst [vmem:[#allocation5] sm:$0xff] %v1394
    %1398 = vst [vmem:[#allocation4] sm:$0xff] %v1396
    %s1399 = scalar_lea.vmem [#allocation2], 32
    %1400 = vst [vmem:[%s1399] sm:$0xff] %v1396
    %s1401 = scalar_lea.vmem [#allocation3], 160
    %v1402 = vld [vmem:[%s1401] sm:$0xff]
    %v1403 = vld [vmem:[%s1401 + $0x8] sm:$0xff]
    %v1404 = vld [vmem:[%s1401 + $0x10] sm:$0xff]
    %v1405 = vld [vmem:[%s1401 + $0x18] sm:$0xff]
    %v1406 = vld [vmem:[#allocation4] sm:$0xff]
    %1407 = vmatprep.subr.mxu0 %v435
    %1408 = vmatpush1.msra.mxu0 %v434
    %1409 = vmatprep.subr.mxu0 %v439
    %1410 = vmatpush1.msra.mxu0 %v438
    %1411 = vmatprep.subr.mxu0 %v443
    %1412 = vmatpush1.msra.mxu0 %v442
    %1413 = vmatprep.subr.mxu0 %v447
    %1414 = vmatpush1.msra.mxu0 %v446
    %1415 = vmatprep.subr.mxu0 %v451
    %1416 = vmatpush1.msra.mxu0 %v450
    %1417 = vmatprep.subr.mxu0 %v455
    %1418 = vmatpush1.msra.mxu0 %v454
    %1419 = vmatprep.subr.mxu0 %v459
    %1420 = vmatpush1.msra.mxu0 %v458
    %1421 = vmatprep.subr.mxu0 %v463
    %1422 = vmatpush1.msra.mxu0 %v462
    %1423 = vmatprep.subr.mxu0 %v467
    %1424 = vmatpush1.msra.mxu0 %v466
    %1425 = vmatprep.subr.mxu0 %v471
    %1426 = vmatpush1.msra.mxu0 %v470
    %1427 = vmatprep.subr.mxu0 %v475
    %1428 = vmatpush1.msra.mxu0 %v474
    %1429 = vmatprep.subr.mxu0 %v479
    %1430 = vmatpush1.msra.mxu0 %v478
    %1431 = vmatprep.subr.mxu0 %v483
    %1432 = vmatpush1.msra.mxu0 %v482
    %1433 = vmatprep.subr.mxu0 %v487
    %1434 = vmatpush1.msra.mxu0 %v486
    %1435 = vmatprep.subr.mxu0 %v491
    %1436 = vmatpush1.msra.mxu0 %v490
    %1437 = vmatprep.subr.mxu0 %v495
    %1438 = vmatpush1.msra.mxu0 %v494
    %1439 = vmatprep.subr.mxu0 0.0
    %1440 = vmatpush1.msra.mxu0 0.0
    %1441 = vmatprep.subr.mxu0 0.0
    %1442 = vmatpush1.msra.mxu0 0.0
    %1443 = vmatprep.subr.mxu0 0.0
    %1444 = vmatpush1.msra.mxu0 0.0
    %1445 = vmatprep.subr.mxu0 0.0
    %1446 = vmatpush1.msra.mxu0 0.0
    %1447 = vmatprep.subr.mxu0 0.0
    %1448 = vmatpush1.msra.mxu0 0.0
    %1449 = vmatprep.subr.mxu0 0.0
    %1450 = vmatpush1.msra.mxu0 0.0
    %1451 = vmatprep.subr.mxu0 0.0
    %1452 = vmatpush1.msra.mxu0 0.0
    %1453 = vmatprep.subr.mxu0 0.0
    %1454 = vmatpush1.msra.mxu0 0.0
    %1455 = vmatprep.subr.mxu0 0.0
    %1456 = vmatpush1.msra.mxu0 0.0
    %1457 = vmatprep.subr.mxu0 0.0
    %1458 = vmatpush1.msra.mxu0 0.0
    %1459 = vmatprep.subr.mxu0 0.0
    %1460 = vmatpush1.msra.mxu0 0.0
    %1461 = vmatprep.subr.mxu0 0.0
    %1462 = vmatpush1.msra.mxu0 0.0
    %1463 = vmatprep.subr.mxu0 0.0
    %1464 = vmatpush1.msra.mxu0 0.0
    %1465 = vmatprep.subr.mxu0 0.0
    %1466 = vmatpush1.msra.mxu0 0.0
    %1467 = vmatprep.subr.mxu0 0.0
    %1468 = vmatpush1.msra.mxu0 0.0
    %1469 = vmatprep.subr.mxu0 0.0
    %1470 = vmatpush1.msra.mxu0 0.0
    %1471 = vmatprep.mubr.f32.mxu0 0.0
    %1472 = vmatmul.mubr.f32.gmra.mrb[0].mxu0 %v1406
    %v1473 = vpop.f32.mrb[0].mxu0
    %v1474 = vadd.f32 0.0, %v1473
    %v1475 = vpop.f32.mrb[0].mxu0
    %v1476 = vadd.f32 0.0, %v1475
    %1477 = vdwg.mxu0
    %1478 = vmatprep.subr.mxu0 %v437
    %1479 = vmatpush1.msra.mxu0 %v436
    %1480 = vmatprep.subr.mxu0 %v441
    %1481 = vmatpush1.msra.mxu0 %v440
    %1482 = vmatprep.subr.mxu0 %v445
    %1483 = vmatpush1.msra.mxu0 %v444
    %1484 = vmatprep.subr.mxu0 %v449
    %1485 = vmatpush1.msra.mxu0 %v448
    %1486 = vmatprep.subr.mxu0 %v453
    %1487 = vmatpush1.msra.mxu0 %v452
    %1488 = vmatprep.subr.mxu0 %v457
    %1489 = vmatpush1.msra.mxu0 %v456
    %1490 = vmatprep.subr.mxu0 %v461
    %1491 = vmatpush1.msra.mxu0 %v460
    %1492 = vmatprep.subr.mxu0 %v465
    %1493 = vmatpush1.msra.mxu0 %v464
    %1494 = vmatprep.subr.mxu0 %v469
    %1495 = vmatpush1.msra.mxu0 %v468
    %1496 = vmatprep.subr.mxu0 %v473
    %1497 = vmatpush1.msra.mxu0 %v472
    %1498 = vmatprep.subr.mxu0 %v477
    %1499 = vmatpush1.msra.mxu0 %v476
    %1500 = vmatprep.subr.mxu0 %v481
    %1501 = vmatpush1.msra.mxu0 %v480
    %1502 = vmatprep.subr.mxu0 %v485
    %1503 = vmatpush1.msra.mxu0 %v484
    %1504 = vmatprep.subr.mxu0 %v489
    %1505 = vmatpush1.msra.mxu0 %v488
    %1506 = vmatprep.subr.mxu0 %v493
    %1507 = vmatpush1.msra.mxu0 %v492
    %1508 = vmatprep.subr.mxu0 %v497
    %1509 = vmatpush1.msra.mxu0 %v496
    %1510 = vmatprep.subr.mxu0 0.0
    %1511 = vmatpush1.msra.mxu0 0.0
    %1512 = vmatprep.subr.mxu0 0.0
    %1513 = vmatpush1.msra.mxu0 0.0
    %1514 = vmatprep.subr.mxu0 0.0
    %1515 = vmatpush1.msra.mxu0 0.0
    %1516 = vmatprep.subr.mxu0 0.0
    %1517 = vmatpush1.msra.mxu0 0.0
    %1518 = vmatprep.subr.mxu0 0.0
    %1519 = vmatpush1.msra.mxu0 0.0
    %1520 = vmatprep.subr.mxu0 0.0
    %1521 = vmatpush1.msra.mxu0 0.0
    %1522 = vmatprep.subr.mxu0 0.0
    %1523 = vmatpush1.msra.mxu0 0.0
    %1524 = vmatprep.subr.mxu0 0.0
    %1525 = vmatpush1.msra.mxu0 0.0
    %1526 = vmatprep.subr.mxu0 0.0
    %1527 = vmatpush1.msra.mxu0 0.0
    %1528 = vmatprep.subr.mxu0 0.0
    %1529 = vmatpush1.msra.mxu0 0.0
    %1530 = vmatprep.subr.mxu0 0.0
    %1531 = vmatpush1.msra.mxu0 0.0
    %1532 = vmatprep.subr.mxu0 0.0
    %1533 = vmatpush1.msra.mxu0 0.0
    %1534 = vmatprep.subr.mxu0 0.0
    %1535 = vmatpush1.msra.mxu0 0.0
    %1536 = vmatprep.subr.mxu0 0.0
    %1537 = vmatpush1.msra.mxu0 0.0
    %1538 = vmatprep.subr.mxu0 0.0
    %1539 = vmatpush1.msra.mxu0 0.0
    %1540 = vmatprep.subr.mxu0 0.0
    %1541 = vmatpush1.msra.mxu0 0.0
    %1542 = vmatprep.mubr.f32.mxu0 0.0
    %1543 = vmatmul.mubr.f32.gmra.mrb[0].mxu0 %v1406
    %v1544 = vpop.f32.mrb[0].mxu0
    %v1545 = vadd.f32 0.0, %v1544
    %v1546 = vpop.f32.mrb[0].mxu0
    %v1547 = vadd.f32 0.0, %v1546
    %1548 = vdwg.mxu0
    %v1549 = vadd.f32 %v1402, %v1474
    %v1550 = vadd.f32 %v1403, %v1476
    %v1551 = vadd.f32 %v1404, %v1545
    %v1552 = vadd.f32 %v1405, %v1547
    %v1553 = vxor.u32 %v1549, 2147483648
    %v1554 = vmul.f32 %v1553, 1.442695
    %v1555 = vpow.pop %v1554
    %v1556 = vadd.f32 %v1555, 1.0
    %v1557 = vrcp.pop %v1556
    %v1558 = vmul.f32 1.0, %v1557
    %v1559 = vxor.u32 %v1550, 2147483648
    %v1560 = vmul.f32 %v1559, 1.442695
    %v1561 = vpow.pop %v1560
    %v1562 = vadd.f32 %v1561, 1.0
    %v1563 = vrcp.pop %v1562
    %v1564 = vmul.f32 1.0, %v1563
    %v1565 = vtanh.pop %v1551
    %v1566 = vxor.u32 %v1552, 2147483648
    %v1567 = vmul.f32 %v1566, 1.442695
    %v1568 = vpow.pop %v1567
    %v1569 = vadd.f32 %v1568, 1.0
    %v1570 = vrcp.pop %v1569
    %v1571 = vmul.f32 1.0, %v1570
    %v1572 = vld [vmem:[#allocation5] sm:$0xff]
    %v1573 = vmul.f32 %v1564, %v1572
    %v1574 = vmul.f32 %v1558, %v1565
    %v1575 = vadd.f32 %v1573, %v1574
    %v1576 = vtanh.pop %v1575
    %v1577 = vmul.f32 %v1571, %v1576
    %1578 = vst [vmem:[#allocation5] sm:$0xff] %v1575
    %1579 = vst [vmem:[#allocation4] sm:$0xff] %v1577
    %s1580 = scalar_lea.vmem [#allocation2], 40
    %1581 = vst [vmem:[%s1580] sm:$0xff] %v1577
    %s1582 = scalar_lea.vmem [#allocation3], 192
    %v1583 = vld [vmem:[%s1582] sm:$0xff]
    %v1584 = vld [vmem:[%s1582 + $0x8] sm:$0xff]
    %v1585 = vld [vmem:[%s1582 + $0x10] sm:$0xff]
    %v1586 = vld [vmem:[%s1582 + $0x18] sm:$0xff]
    %v1587 = vld [vmem:[#allocation4] sm:$0xff]
    %1588 = vmatprep.subr.mxu0 %v435
    %1589 = vmatpush1.msra.mxu0 %v434
    %1590 = vmatprep.subr.mxu0 %v439
    %1591 = vmatpush1.msra.mxu0 %v438
    %1592 = vmatprep.subr.mxu0 %v443
    %1593 = vmatpush1.msra.mxu0 %v442
    %1594 = vmatprep.subr.mxu0 %v447
    %1595 = vmatpush1.msra.mxu0 %v446
    %1596 = vmatprep.subr.mxu0 %v451
    %1597 = vmatpush1.msra.mxu0 %v450
    %1598 = vmatprep.subr.mxu0 %v455
    %1599 = vmatpush1.msra.mxu0 %v454
    %1600 = vmatprep.subr.mxu0 %v459
    %1601 = vmatpush1.msra.mxu0 %v458
    %1602 = vmatprep.subr.mxu0 %v463
    %1603 = vmatpush1.msra.mxu0 %v462
    %1604 = vmatprep.subr.mxu0 %v467
    %1605 = vmatpush1.msra.mxu0 %v466
    %1606 = vmatprep.subr.mxu0 %v471
    %1607 = vmatpush1.msra.mxu0 %v470
    %1608 = vmatprep.subr.mxu0 %v475
    %1609 = vmatpush1.msra.mxu0 %v474
    %1610 = vmatprep.subr.mxu0 %v479
    %1611 = vmatpush1.msra.mxu0 %v478
    %1612 = vmatprep.subr.mxu0 %v483
    %1613 = vmatpush1.msra.mxu0 %v482
    %1614 = vmatprep.subr.mxu0 %v487
    %1615 = vmatpush1.msra.mxu0 %v486
    %1616 = vmatprep.subr.mxu0 %v491
    %1617 = vmatpush1.msra.mxu0 %v490
    %1618 = vmatprep.subr.mxu0 %v495
    %1619 = vmatpush1.msra.mxu0 %v494
    %1620 = vmatprep.subr.mxu0 0.0
    %1621 = vmatpush1.msra.mxu0 0.0
    %1622 = vmatprep.subr.mxu0 0.0
    %1623 = vmatpush1.msra.mxu0 0.0
    %1624 = vmatprep.subr.mxu0 0.0
    %1625 = vmatpush1.msra.mxu0 0.0
    %1626 = vmatprep.subr.mxu0 0.0
    %1627 = vmatpush1.msra.mxu0 0.0
    %1628 = vmatprep.subr.mxu0 0.0
    %1629 = vmatpush1.msra.mxu0 0.0
    %1630 = vmatprep.subr.mxu0 0.0
    %1631 = vmatpush1.msra.mxu0 0.0
    %1632 = vmatprep.subr.mxu0 0.0
    %1633 = vmatpush1.msra.mxu0 0.0
    %1634 = vmatprep.subr.mxu0 0.0
    %1635 = vmatpush1.msra.mxu0 0.0
    %1636 = vmatprep.subr.mxu0 0.0
    %1637 = vmatpush1.msra.mxu0 0.0
    %1638 = vmatprep.subr.mxu0 0.0
    %1639 = vmatpush1.msra.mxu0 0.0
    %1640 = vmatprep.subr.mxu0 0.0
    %1641 = vmatpush1.msra.mxu0 0.0
    %1642 = vmatprep.subr.mxu0 0.0
    %1643 = vmatpush1.msra.mxu0 0.0
    %1644 = vmatprep.subr.mxu0 0.0
    %1645 = vmatpush1.msra.mxu0 0.0
    %1646 = vmatprep.subr.mxu0 0.0
    %1647 = vmatpush1.msra.mxu0 0.0
    %1648 = vmatprep.subr.mxu0 0.0
    %1649 = vmatpush1.msra.mxu0 0.0
    %1650 = vmatprep.subr.mxu0 0.0
    %1651 = vmatpush1.msra.mxu0 0.0
    %1652 = vmatprep.mubr.f32.mxu0 0.0
    %1653 = vmatmul.mubr.f32.gmra.mrb[0].mxu0 %v1587
    %v1654 = vpop.f32.mrb[0].mxu0
    %v1655 = vadd.f32 0.0, %v1654
    %v1656 = vpop.f32.mrb[0].mxu0
    %v1657 = vadd.f32 0.0, %v1656
    %1658 = vdwg.mxu0
    %1659 = vmatprep.subr.mxu0 %v437
    %1660 = vmatpush1.msra.mxu0 %v436
    %1661 = vmatprep.subr.mxu0 %v441
    %1662 = vmatpush1.msra.mxu0 %v440
    %1663 = vmatprep.subr.mxu0 %v445
    %1664 = vmatpush1.msra.mxu0 %v444
    %1665 = vmatprep.subr.mxu0 %v449
    %1666 = vmatpush1.msra.mxu0 %v448
    %1667 = vmatprep.subr.mxu0 %v453
    %1668 = vmatpush1.msra.mxu0 %v452
    %1669 = vmatprep.subr.mxu0 %v457
    %1670 = vmatpush1.msra.mxu0 %v456
    %1671 = vmatprep.subr.mxu0 %v461
    %1672 = vmatpush1.msra.mxu0 %v460
    %1673 = vmatprep.subr.mxu0 %v465
    %1674 = vmatpush1.msra.mxu0 %v464
    %1675 = vmatprep.subr.mxu0 %v469
    %1676 = vmatpush1.msra.mxu0 %v468
    %1677 = vmatprep.subr.mxu0 %v473
    %1678 = vmatpush1.msra.mxu0 %v472
    %1679 = vmatprep.subr.mxu0 %v477
    %1680 = vmatpush1.msra.mxu0 %v476
    %1681 = vmatprep.subr.mxu0 %v481
    %1682 = vmatpush1.msra.mxu0 %v480
    %1683 = vmatprep.subr.mxu0 %v485
    %1684 = vmatpush1.msra.mxu0 %v484
    %1685 = vmatprep.subr.mxu0 %v489
    %1686 = vmatpush1.msra.mxu0 %v488
    %1687 = vmatprep.subr.mxu0 %v493
    %1688 = vmatpush1.msra.mxu0 %v492
    %1689 = vmatprep.subr.mxu0 %v497
    %1690 = vmatpush1.msra.mxu0 %v496
    %1691 = vmatprep.subr.mxu0 0.0
    %1692 = vmatpush1.msra.mxu0 0.0
    %1693 = vmatprep.subr.mxu0 0.0
    %1694 = vmatpush1.msra.mxu0 0.0
    %1695 = vmatprep.subr.mxu0 0.0
    %1696 = vmatpush1.msra.mxu0 0.0
    %1697 = vmatprep.subr.mxu0 0.0
    %1698 = vmatpush1.msra.mxu0 0.0
    %1699 = vmatprep.subr.mxu0 0.0
    %1700 = vmatpush1.msra.mxu0 0.0
    %1701 = vmatprep.subr.mxu0 0.0
    %1702 = vmatpush1.msra.mxu0 0.0
    %1703 = vmatprep.subr.mxu0 0.0
    %1704 = vmatpush1.msra.mxu0 0.0
    %1705 = vmatprep.subr.mxu0 0.0
    %1706 = vmatpush1.msra.mxu0 0.0
    %1707 = vmatprep.subr.mxu0 0.0
    %1708 = vmatpush1.msra.mxu0 0.0
    %1709 = vmatprep.subr.mxu0 0.0
    %1710 = vmatpush1.msra.mxu0 0.0
    %1711 = vmatprep.subr.mxu0 0.0
    %1712 = vmatpush1.msra.mxu0 0.0
    %1713 = vmatprep.subr.mxu0 0.0
    %1714 = vmatpush1.msra.mxu0 0.0
    %1715 = vmatprep.subr.mxu0 0.0
    %1716 = vmatpush1.msra.mxu0 0.0
    %1717 = vmatprep.subr.mxu0 0.0
    %1718 = vmatpush1.msra.mxu0 0.0
    %1719 = vmatprep.subr.mxu0 0.0
    %1720 = vmatpush1.msra.mxu0 0.0
    %1721 = vmatprep.subr.mxu0 0.0
    %1722 = vmatpush1.msra.mxu0 0.0
    %1723 = vmatprep.mubr.f32.mxu0 0.0
    %1724 = vmatmul.mubr.f32.gmra.mrb[0].mxu0 %v1587
    %v1725 = vpop.f32.mrb[0].mxu0
    %v1726 = vadd.f32 0.0, %v1725
    %v1727 = vpop.f32.mrb[0].mxu0
    %v1728 = vadd.f32 0.0, %v1727
    %1729 = vdwg.mxu0
    %v1730 = vadd.f32 %v1583, %v1655
    %v1731 = vadd.f32 %v1584, %v1657
    %v1732 = vadd.f32 %v1585, %v1726
    %v1733 = vadd.f32 %v1586, %v1728
    %v1734 = vxor.u32 %v1730, 2147483648
    %v1735 = vmul.f32 %v1734, 1.442695
    %v1736 = vpow.pop %v1735
    %v1737 = vadd.f32 %v1736, 1.0
    %v1738 = vrcp.pop %v1737
    %v1739 = vmul.f32 1.0, %v1738
    %v1740 = vxor.u32 %v1731, 2147483648
    %v1741 = vmul.f32 %v1740, 1.442695
    %v1742 = vpow.pop %v1741
    %v1743 = vadd.f32 %v1742, 1.0
    %v1744 = vrcp.pop %v1743
    %v1745 = vmul.f32 1.0, %v1744
    %v1746 = vtanh.pop %v1732
    %v1747 = vxor.u32 %v1733, 2147483648
    %v1748 = vmul.f32 %v1747, 1.442695
    %v1749 = vpow.pop %v1748
    %v1750 = vadd.f32 %v1749, 1.0
    %v1751 = vrcp.pop %v1750
    %v1752 = vmul.f32 1.0, %v1751
    %v1753 = vld [vmem:[#allocation5] sm:$0xff]
    %v1754 = vmul.f32 %v1745, %v1753
    %v1755 = vmul.f32 %v1739, %v1746
    %v1756 = vadd.f32 %v1754, %v1755
    %v1757 = vtanh.pop %v1756
    %v1758 = vmul.f32 %v1752, %v1757
    %1759 = vst [vmem:[#allocation5] sm:$0xff] %v1756
    %1760 = vst [vmem:[#allocation4] sm:$0xff] %v1758
    %s1761 = scalar_lea.vmem [#allocation2], 48
    %1762 = vst [vmem:[%s1761] sm:$0xff] %v1758
    %s1763 = scalar_lea.vmem [#allocation3], 224
    %v1764 = vld [vmem:[%s1763] sm:$0xff]
    %v1765 = vld [vmem:[%s1763 + $0x8] sm:$0xff]
    %v1766 = vld [vmem:[%s1763 + $0x10] sm:$0xff]
    %v1767 = vld [vmem:[%s1763 + $0x18] sm:$0xff]
    %v1768 = vld [vmem:[#allocation4] sm:$0xff]
    %1769 = vmatprep.subr.mxu0 %v435
    %1770 = vmatpush1.msra.mxu0 %v434
    %1771 = vmatprep.subr.mxu0 %v439
    %1772 = vmatpush1.msra.mxu0 %v438
    %1773 = vmatprep.subr.mxu0 %v443
    %1774 = vmatpush1.msra.mxu0 %v442
    %1775 = vmatprep.subr.mxu0 %v447
    %1776 = vmatpush1.msra.mxu0 %v446
    %1777 = vmatprep.subr.mxu0 %v451
    %1778 = vmatpush1.msra.mxu0 %v450
    %1779 = vmatprep.subr.mxu0 %v455
    %1780 = vmatpush1.msra.mxu0 %v454
    %1781 = vmatprep.subr.mxu0 %v459
    %1782 = vmatpush1.msra.mxu0 %v458
    %1783 = vmatprep.subr.mxu0 %v463
    %1784 = vmatpush1.msra.mxu0 %v462
    %1785 = vmatprep.subr.mxu0 %v467
    %1786 = vmatpush1.msra.mxu0 %v466
    %1787 = vmatprep.subr.mxu0 %v471
    %1788 = vmatpush1.msra.mxu0 %v470
    %1789 = vmatprep.subr.mxu0 %v475
    %1790 = vmatpush1.msra.mxu0 %v474
    %1791 = vmatprep.subr.mxu0 %v479
    %1792 = vmatpush1.msra.mxu0 %v478
    %1793 = vmatprep.subr.mxu0 %v483
    %1794 = vmatpush1.msra.mxu0 %v482
    %1795 = vmatprep.subr.mxu0 %v487
    %1796 = vmatpush1.msra.mxu0 %v486
    %1797 = vmatprep.subr.mxu0 %v491
    %1798 = vmatpush1.msra.mxu0 %v490
    %1799 = vmatprep.subr.mxu0 %v495
    %1800 = vmatpush1.msra.mxu0 %v494
    %1801 = vmatprep.subr.mxu0 0.0
    %1802 = vmatpush1.msra.mxu0 0.0
    %1803 = vmatprep.subr.mxu0 0.0
    %1804 = vmatpush1.msra.mxu0 0.0
    %1805 = vmatprep.subr.mxu0 0.0
    %1806 = vmatpush1.msra.mxu0 0.0
    %1807 = vmatprep.subr.mxu0 0.0
    %1808 = vmatpush1.msra.mxu0 0.0
    %1809 = vmatprep.subr.mxu0 0.0
    %1810 = vmatpush1.msra.mxu0 0.0
    %1811 = vmatprep.subr.mxu0 0.0
    %1812 = vmatpush1.msra.mxu0 0.0
    %1813 = vmatprep.subr.mxu0 0.0
    %1814 = vmatpush1.msra.mxu0 0.0
    %1815 = vmatprep.subr.mxu0 0.0
    %1816 = vmatpush1.msra.mxu0 0.0
    %1817 = vmatprep.subr.mxu0 0.0
    %1818 = vmatpush1.msra.mxu0 0.0
    %1819 = vmatprep.subr.mxu0 0.0
    %1820 = vmatpush1.msra.mxu0 0.0
    %1821 = vmatprep.subr.mxu0 0.0
    %1822 = vmatpush1.msra.mxu0 0.0
    %1823 = vmatprep.subr.mxu0 0.0
    %1824 = vmatpush1.msra.mxu0 0.0
    %1825 = vmatprep.subr.mxu0 0.0
    %1826 = vmatpush1.msra.mxu0 0.0
    %1827 = vmatprep.subr.mxu0 0.0
    %1828 = vmatpush1.msra.mxu0 0.0
    %1829 = vmatprep.subr.mxu0 0.0
    %1830 = vmatpush1.msra.mxu0 0.0
    %1831 = vmatprep.subr.mxu0 0.0
    %1832 = vmatpush1.msra.mxu0 0.0
    %1833 = vmatprep.mubr.f32.mxu0 0.0
    %1834 = vmatmul.mubr.f32.gmra.mrb[0].mxu0 %v1768
    %v1835 = vpop.f32.mrb[0].mxu0
    %v1836 = vadd.f32 0.0, %v1835
    %v1837 = vpop.f32.mrb[0].mxu0
    %v1838 = vadd.f32 0.0, %v1837
    %1839 = vdwg.mxu0
    %1840 = vmatprep.subr.mxu0 %v437
    %1841 = vmatpush1.msra.mxu0 %v436
    %1842 = vmatprep.subr.mxu0 %v441
    %1843 = vmatpush1.msra.mxu0 %v440
    %1844 = vmatprep.subr.mxu0 %v445
    %1845 = vmatpush1.msra.mxu0 %v444
    %1846 = vmatprep.subr.mxu0 %v449
    %1847 = vmatpush1.msra.mxu0 %v448
    %1848 = vmatprep.subr.mxu0 %v453
    %1849 = vmatpush1.msra.mxu0 %v452
    %1850 = vmatprep.subr.mxu0 %v457
    %1851 = vmatpush1.msra.mxu0 %v456
    %1852 = vmatprep.subr.mxu0 %v461
    %1853 = vmatpush1.msra.mxu0 %v460
    %1854 = vmatprep.subr.mxu0 %v465
    %1855 = vmatpush1.msra.mxu0 %v464
    %1856 = vmatprep.subr.mxu0 %v469
    %1857 = vmatpush1.msra.mxu0 %v468
    %1858 = vmatprep.subr.mxu0 %v473
    %1859 = vmatpush1.msra.mxu0 %v472
    %1860 = vmatprep.subr.mxu0 %v477
    %1861 = vmatpush1.msra.mxu0 %v476
    %1862 = vmatprep.subr.mxu0 %v481
    %1863 = vmatpush1.msra.mxu0 %v480
    %1864 = vmatprep.subr.mxu0 %v485
    %1865 = vmatpush1.msra.mxu0 %v484
    %1866 = vmatprep.subr.mxu0 %v489
    %1867 = vmatpush1.msra.mxu0 %v488
    %1868 = vmatprep.subr.mxu0 %v493
    %1869 = vmatpush1.msra.mxu0 %v492
    %1870 = vmatprep.subr.mxu0 %v497
    %1871 = vmatpush1.msra.mxu0 %v496
    %1872 = vmatprep.subr.mxu0 0.0
    %1873 = vmatpush1.msra.mxu0 0.0
    %1874 = vmatprep.subr.mxu0 0.0
    %1875 = vmatpush1.msra.mxu0 0.0
    %1876 = vmatprep.subr.mxu0 0.0
    %1877 = vmatpush1.msra.mxu0 0.0
    %1878 = vmatprep.subr.mxu0 0.0
    %1879 = vmatpush1.msra.mxu0 0.0
    %1880 = vmatprep.subr.mxu0 0.0
    %1881 = vmatpush1.msra.mxu0 0.0
    %1882 = vmatprep.subr.mxu0 0.0
    %1883 = vmatpush1.msra.mxu0 0.0
    %1884 = vmatprep.subr.mxu0 0.0
    %1885 = vmatpush1.msra.mxu0 0.0
    %1886 = vmatprep.subr.mxu0 0.0
    %1887 = vmatpush1.msra.mxu0 0.0
    %1888 = vmatprep.subr.mxu0 0.0
    %1889 = vmatpush1.msra.mxu0 0.0
    %1890 = vmatprep.subr.mxu0 0.0
    %1891 = vmatpush1.msra.mxu0 0.0
    %1892 = vmatprep.subr.mxu0 0.0
    %1893 = vmatpush1.msra.mxu0 0.0
    %1894 = vmatprep.subr.mxu0 0.0
    %1895 = vmatpush1.msra.mxu0 0.0
    %1896 = vmatprep.subr.mxu0 0.0
    %1897 = vmatpush1.msra.mxu0 0.0
    %1898 = vmatprep.subr.mxu0 0.0
    %1899 = vmatpush1.msra.mxu0 0.0
    %1900 = vmatprep.subr.mxu0 0.0
    %1901 = vmatpush1.msra.mxu0 0.0
    %1902 = vmatprep.subr.mxu0 0.0
    %1903 = vmatpush1.msra.mxu0 0.0
    %1904 = vmatprep.mubr.f32.mxu0 0.0
    %1905 = vmatmul.mubr.f32.gmra.mrb[0].mxu0 %v1768
    %v1906 = vpop.f32.mrb[0].mxu0
    %v1907 = vadd.f32 0.0, %v1906
    %v1908 = vpop.f32.mrb[0].mxu0
    %v1909 = vadd.f32 0.0, %v1908
    %1910 = vdwg.mxu0
    %v1911 = vadd.f32 %v1764, %v1836
    %v1912 = vadd.f32 %v1765, %v1838
    %v1913 = vadd.f32 %v1766, %v1907
    %v1914 = vadd.f32 %v1767, %v1909
    %v1915 = vxor.u32 %v1911, 2147483648
    %v1916 = vmul.f32 %v1915, 1.442695
    %v1917 = vpow.pop %v1916
    %v1918 = vadd.f32 %v1917, 1.0
    %v1919 = vrcp.pop %v1918
    %v1920 = vmul.f32 1.0, %v1919
    %v1921 = vxor.u32 %v1912, 2147483648
    %v1922 = vmul.f32 %v1921, 1.442695
    %v1923 = vpow.pop %v1922
    %v1924 = vadd.f32 %v1923, 1.0
    %v1925 = vrcp.pop %v1924
    %v1926 = vmul.f32 1.0, %v1925
    %v1927 = vtanh.pop %v1913
    %v1928 = vxor.u32 %v1914, 2147483648
    %v1929 = vmul.f32 %v1928, 1.442695
    %v1930 = vpow.pop %v1929
    %v1931 = vadd.f32 %v1930, 1.0
    %v1932 = vrcp.pop %v1931
    %v1933 = vmul.f32 1.0, %v1932
    %v1934 = vld [vmem:[#allocation5] sm:$0xff]
    %v1935 = vmul.f32 %v1926, %v1934
    %v1936 = vmul.f32 %v1920, %v1927
    %v1937 = vadd.f32 %v1935, %v1936
    %v1938 = vtanh.pop %v1937
    %v1939 = vmul.f32 %v1933, %v1938
    %1940 = vst [vmem:[#allocation5] sm:$0xff] %v1937
    %1941 = vst [vmem:[#allocation4] sm:$0xff] %v1939
    %s1942 = scalar_lea.vmem [#allocation2], 56
    %1943 = vst [vmem:[%s1942] sm:$0xff] %v1939
    %s1944 = scalar_lea.vmem [#allocation3], 256
    %v1945 = vld [vmem:[%s1944] sm:$0xff]
    %v1946 = vld [vmem:[%s1944 + $0x8] sm:$0xff]
    %v1947 = vld [vmem:[%s1944 + $0x10] sm:$0xff]
    %v1948 = vld [vmem:[%s1944 + $0x18] sm:$0xff]
    %v1949 = vld [vmem:[#allocation4] sm:$0xff]
    %1950 = vmatprep.subr.mxu0 %v435
    %1951 = vmatpush1.msra.mxu0 %v434
    %1952 = vmatprep.subr.mxu0 %v439
    %1953 = vmatpush1.msra.mxu0 %v438
    %1954 = vmatprep.subr.mxu0 %v443
    %1955 = vmatpush1.msra.mxu0 %v442
    %1956 = vmatprep.subr.mxu0 %v447
    %1957 = vmatpush1.msra.mxu0 %v446
    %1958 = vmatprep.subr.mxu0 %v451
    %1959 = vmatpush1.msra.mxu0 %v450
    %1960 = vmatprep.subr.mxu0 %v455
    %1961 = vmatpush1.msra.mxu0 %v454
    %1962 = vmatprep.subr.mxu0 %v459
    %1963 = vmatpush1.msra.mxu0 %v458
    %1964 = vmatprep.subr.mxu0 %v463
    %1965 = vmatpush1.msra.mxu0 %v462
    %1966 = vmatprep.subr.mxu0 %v467
    %1967 = vmatpush1.msra.mxu0 %v466
    %1968 = vmatprep.subr.mxu0 %v471
    %1969 = vmatpush1.msra.mxu0 %v470
    %1970 = vmatprep.subr.mxu0 %v475
    %1971 = vmatpush1.msra.mxu0 %v474
    %1972 = vmatprep.subr.mxu0 %v479
    %1973 = vmatpush1.msra.mxu0 %v478
    %1974 = vmatprep.subr.mxu0 %v483
    %1975 = vmatpush1.msra.mxu0 %v482
    %1976 = vmatprep.subr.mxu0 %v487
    %1977 = vmatpush1.msra.mxu0 %v486
    %1978 = vmatprep.subr.mxu0 %v491
    %1979 = vmatpush1.msra.mxu0 %v490
    %1980 = vmatprep.subr.mxu0 %v495
    %1981 = vmatpush1.msra.mxu0 %v494
    %1982 = vmatprep.subr.mxu0 0.0
    %1983 = vmatpush1.msra.mxu0 0.0
    %1984 = vmatprep.subr.mxu0 0.0
    %1985 = vmatpush1.msra.mxu0 0.0
    %1986 = vmatprep.subr.mxu0 0.0
    %1987 = vmatpush1.msra.mxu0 0.0
    %1988 = vmatprep.subr.mxu0 0.0
    %1989 = vmatpush1.msra.mxu0 0.0
    %1990 = vmatprep.subr.mxu0 0.0
    %1991 = vmatpush1.msra.mxu0 0.0
    %1992 = vmatprep.subr.mxu0 0.0
    %1993 = vmatpush1.msra.mxu0 0.0
    %1994 = vmatprep.subr.mxu0 0.0
    %1995 = vmatpush1.msra.mxu0 0.0
    %1996 = vmatprep.subr.mxu0 0.0
    %1997 = vmatpush1.msra.mxu0 0.0
    %1998 = vmatprep.subr.mxu0 0.0
    %1999 = vmatpush1.msra.mxu0 0.0
    %2000 = vmatprep.subr.mxu0 0.0
    %2001 = vmatpush1.msra.mxu0 0.0
    %2002 = vmatprep.subr.mxu0 0.0
    %2003 = vmatpush1.msra.mxu0 0.0
    %2004 = vmatprep.subr.mxu0 0.0
    %2005 = vmatpush1.msra.mxu0 0.0
    %2006 = vmatprep.subr.mxu0 0.0
    %2007 = vmatpush1.msra.mxu0 0.0
    %2008 = vmatprep.subr.mxu0 0.0
    %2009 = vmatpush1.msra.mxu0 0.0
    %2010 = vmatprep.subr.mxu0 0.0
    %2011 = vmatpush1.msra.mxu0 0.0
    %2012 = vmatprep.subr.mxu0 0.0
    %2013 = vmatpush1.msra.mxu0 0.0
    %2014 = vmatprep.mubr.f32.mxu0 0.0
    %2015 = vmatmul.mubr.f32.gmra.mrb[0].mxu0 %v1949
    %v2016 = vpop.f32.mrb[0].mxu0
    %v2017 = vadd.f32 0.0, %v2016
    %v2018 = vpop.f32.mrb[0].mxu0
    %v2019 = vadd.f32 0.0, %v2018
    %2020 = vdwg.mxu0
    %2021 = vmatprep.subr.mxu0 %v437
    %2022 = vmatpush1.msra.mxu0 %v436
    %2023 = vmatprep.subr.mxu0 %v441
    %2024 = vmatpush1.msra.mxu0 %v440
    %2025 = vmatprep.subr.mxu0 %v445
    %2026 = vmatpush1.msra.mxu0 %v444
    %2027 = vmatprep.subr.mxu0 %v449
    %2028 = vmatpush1.msra.mxu0 %v448
    %2029 = vmatprep.subr.mxu0 %v453
    %2030 = vmatpush1.msra.mxu0 %v452
    %2031 = vmatprep.subr.mxu0 %v457
    %2032 = vmatpush1.msra.mxu0 %v456
    %2033 = vmatprep.subr.mxu0 %v461
    %2034 = vmatpush1.msra.mxu0 %v460
    %2035 = vmatprep.subr.mxu0 %v465
    %2036 = vmatpush1.msra.mxu0 %v464
    %2037 = vmatprep.subr.mxu0 %v469
    %2038 = vmatpush1.msra.mxu0 %v468
    %2039 = vmatprep.subr.mxu0 %v473
    %2040 = vmatpush1.msra.mxu0 %v472
    %2041 = vmatprep.subr.mxu0 %v477
    %2042 = vmatpush1.msra.mxu0 %v476
    %2043 = vmatprep.subr.mxu0 %v481
    %2044 = vmatpush1.msra.mxu0 %v480
    %2045 = vmatprep.subr.mxu0 %v485
    %2046 = vmatpush1.msra.mxu0 %v484
    %2047 = vmatprep.subr.mxu0 %v489
    %2048 = vmatpush1.msra.mxu0 %v488
    %2049 = vmatprep.subr.mxu0 %v493
    %2050 = vmatpush1.msra.mxu0 %v492
    %2051 = vmatprep.subr.mxu0 %v497
    %2052 = vmatpush1.msra.mxu0 %v496
    %2053 = vmatprep.subr.mxu0 0.0
    %2054 = vmatpush1.msra.mxu0 0.0
    %2055 = vmatprep.subr.mxu0 0.0
    %2056 = vmatpush1.msra.mxu0 0.0
    %2057 = vmatprep.subr.mxu0 0.0
    %2058 = vmatpush1.msra.mxu0 0.0
    %2059 = vmatprep.subr.mxu0 0.0
    %2060 = vmatpush1.msra.mxu0 0.0
    %2061 = vmatprep.subr.mxu0 0.0
    %2062 = vmatpush1.msra.mxu0 0.0
    %2063 = vmatprep.subr.mxu0 0.0
    %2064 = vmatpush1.msra.mxu0 0.0
    %2065 = vmatprep.subr.mxu0 0.0
    %2066 = vmatpush1.msra.mxu0 0.0
    %2067 = vmatprep.subr.mxu0 0.0
    %2068 = vmatpush1.msra.mxu0 0.0
    %2069 = vmatprep.subr.mxu0 0.0
    %2070 = vmatpush1.msra.mxu0 0.0
    %2071 = vmatprep.subr.mxu0 0.0
    %2072 = vmatpush1.msra.mxu0 0.0
    %2073 = vmatprep.subr.mxu0 0.0
    %2074 = vmatpush1.msra.mxu0 0.0
    %2075 = vmatprep.subr.mxu0 0.0
    %2076 = vmatpush1.msra.mxu0 0.0
    %2077 = vmatprep.subr.mxu0 0.0
    %2078 = vmatpush1.msra.mxu0 0.0
    %2079 = vmatprep.subr.mxu0 0.0
    %2080 = vmatpush1.msra.mxu0 0.0
    %2081 = vmatprep.subr.mxu0 0.0
    %2082 = vmatpush1.msra.mxu0 0.0
    %2083 = vmatprep.subr.mxu0 0.0
    %2084 = vmatpush1.msra.mxu0 0.0
    %2085 = vmatprep.mubr.f32.mxu0 0.0
    %2086 = vmatmul.mubr.f32.gmra.mrb[0].mxu0 %v1949
    %v2087 = vpop.f32.mrb[0].mxu0
    %v2088 = vadd.f32 0.0, %v2087
    %v2089 = vpop.f32.mrb[0].mxu0
    %v2090 = vadd.f32 0.0, %v2089
    %2091 = vdwg.mxu0
    %v2092 = vadd.f32 %v1945, %v2017
    %v2093 = vadd.f32 %v1946, %v2019
    %v2094 = vadd.f32 %v1947, %v2088
    %v2095 = vadd.f32 %v1948, %v2090
    %v2096 = vxor.u32 %v2092, 2147483648
    %v2097 = vmul.f32 %v2096, 1.442695
    %v2098 = vpow.pop %v2097
    %v2099 = vadd.f32 %v2098, 1.0
    %v2100 = vrcp.pop %v2099
    %v2101 = vmul.f32 1.0, %v2100
    %v2102 = vxor.u32 %v2093, 2147483648
    %v2103 = vmul.f32 %v2102, 1.442695
    %v2104 = vpow.pop %v2103
    %v2105 = vadd.f32 %v2104, 1.0
    %v2106 = vrcp.pop %v2105
    %v2107 = vmul.f32 1.0, %v2106
    %v2108 = vtanh.pop %v2094
    %v2109 = vxor.u32 %v2095, 2147483648
    %v2110 = vmul.f32 %v2109, 1.442695
    %v2111 = vpow.pop %v2110
    %v2112 = vadd.f32 %v2111, 1.0
    %v2113 = vrcp.pop %v2112
    %v2114 = vmul.f32 1.0, %v2113
    %v2115 = vld [vmem:[#allocation5] sm:$0xff]
    %v2116 = vmul.f32 %v2107, %v2115
    %v2117 = vmul.f32 %v2101, %v2108
    %v2118 = vadd.f32 %v2116, %v2117
    %v2119 = vtanh.pop %v2118
    %v2120 = vmul.f32 %v2114, %v2119
    %2121 = vst [vmem:[#allocation5] sm:$0xff] %v2118
    %2122 = vst [vmem:[#allocation4] sm:$0xff] %v2120
    %s2123 = scalar_lea.vmem [#allocation2], 64
    %2124 = vst [vmem:[%s2123] sm:$0xff] %v2120
    %v2125 = vld [vmem:[#allocation2] sm:$0xff]
    %v2126 = vld [vmem:[#allocation2 + $0x8] sm:$0xff]
    %v2127 = vld [vmem:[#allocation2 + $0x10] sm:$0xff]
    %v2128 = vld [vmem:[#allocation2 + $0x18] sm:$0xff]
    %v2129 = vld [vmem:[#allocation2 + $0x20] sm:$0xff]
    %v2130 = vld [vmem:[#allocation2 + $0x28] sm:$0xff]
    %v2131 = vld [vmem:[#allocation2 + $0x30] sm:$0xff]
    %v2132 = vld [vmem:[#allocation2 + $0x38] sm:$0xff]
    %v2133 = vld [vmem:[#allocation2 + $0x40] sm:$0xff]
    %s2134 = scalar_lea.vmem [#allocation6], 512
    %v2135 = vld [vmem:[%s2134] sm:$0xff]
    %v2136 = vld [vmem:[%s2134 + $0x8] sm:$0xff]
    %v2137 = vld [vmem:[%s2134 + $0x10] sm:$0xff]
    %v2138 = vld [vmem:[%s2134 + $0x18] sm:$0xff]
    %v2139 = vld [vmem:[%s2134 + $0x20] sm:$0xff]
    %v2140 = vld [vmem:[%s2134 + $0x28] sm:$0xff]
    %v2141 = vld [vmem:[%s2134 + $0x30] sm:$0xff]
    %v2142 = vld [vmem:[%s2134 + $0x38] sm:$0xff]
    %v2143 = vld [vmem:[%s2134 + $0x40] sm:$0xff]
    %v2144 = vld [vmem:[%s2134 + $0x48] sm:$0xff]
    %v2145 = vld [vmem:[%s2134 + $0x50] sm:$0xff]
    %v2146 = vld [vmem:[%s2134 + $0x58] sm:$0xff]
    %v2147 = vld [vmem:[%s2134 + $0x60] sm:$0xff]
    %v2148 = vld [vmem:[%s2134 + $0x68] sm:$0xff]
    %v2149 = vld [vmem:[%s2134 + $0x70] sm:$0xff]
    %v2150 = vld [vmem:[%s2134 + $0x78] sm:$0xff]
    %v2151 = vld [vmem:[%s2134 + $0x80] sm:$0xff]
    %v2152 = vld [vmem:[%s2134 + $0x88] sm:$0xff]
    %v2153 = vld [vmem:[%s2134 + $0x90] sm:$0xff]
    %v2154 = vld [vmem:[%s2134 + $0x98] sm:$0xff]
    %v2155 = vld [vmem:[%s2134 + $0xa0] sm:$0xff]
    %v2156 = vld [vmem:[%s2134 + $0xa8] sm:$0xff]
    %v2157 = vld [vmem:[%s2134 + $0xb0] sm:$0xff]
    %v2158 = vld [vmem:[%s2134 + $0xb8] sm:$0xff]
    %v2159 = vld [vmem:[%s2134 + $0xc0] sm:$0xff]
    %v2160 = vld [vmem:[%s2134 + $0xc8] sm:$0xff]
    %v2161 = vld [vmem:[%s2134 + $0xd0] sm:$0xff]
    %v2162 = vld [vmem:[%s2134 + $0xd8] sm:$0xff]
    %v2163 = vld [vmem:[%s2134 + $0xe0] sm:$0xff]
    %v2164 = vld [vmem:[%s2134 + $0xe8] sm:$0xff]
    %v2165 = vld [vmem:[%s2134 + $0xf0] sm:$0xff]
    %v2166 = vld [vmem:[%s2134 + $0xf8] sm:$0xff]
    %v2167 = vld [vmem:[%s2134 + $0x100] sm:$0xff]
    %v2168 = vld [vmem:[%s2134 + $0x108] sm:$0xff]
    %v2169 = vld [vmem:[%s2134 + $0x110] sm:$0xff]
    %v2170 = vld [vmem:[%s2134 + $0x118] sm:$0xff]
    %v2171 = vld [vmem:[%s2134 + $0x120] sm:$0xff]
    %v2172 = vld [vmem:[%s2134 + $0x128] sm:$0xff]
    %v2173 = vld [vmem:[%s2134 + $0x130] sm:$0xff]
    %v2174 = vld [vmem:[%s2134 + $0x138] sm:$0xff]
    %v2175 = vld [vmem:[%s2134 + $0x140] sm:$0xff]
    %v2176 = vld [vmem:[%s2134 + $0x148] sm:$0xff]
    %v2177 = vld [vmem:[%s2134 + $0x150] sm:$0xff]
    %v2178 = vld [vmem:[%s2134 + $0x158] sm:$0xff]
    %v2179 = vld [vmem:[%s2134 + $0x160] sm:$0xff]
    %v2180 = vld [vmem:[%s2134 + $0x168] sm:$0xff]
    %v2181 = vld [vmem:[%s2134 + $0x170] sm:$0xff]
    %v2182 = vld [vmem:[%s2134 + $0x178] sm:$0xff]
    %v2183 = vld [vmem:[%s2134 + $0x180] sm:$0xff]
    %v2184 = vld [vmem:[%s2134 + $0x188] sm:$0xff]
    %v2185 = vld [vmem:[%s2134 + $0x190] sm:$0xff]
    %v2186 = vld [vmem:[%s2134 + $0x198] sm:$0xff]
    %v2187 = vld [vmem:[%s2134 + $0x1a0] sm:$0xff]
    %v2188 = vld [vmem:[%s2134 + $0x1a8] sm:$0xff]
    %v2189 = vld [vmem:[%s2134 + $0x1b0] sm:$0xff]
    %v2190 = vld [vmem:[%s2134 + $0x1b8] sm:$0xff]
    %v2191 = vld [vmem:[%s2134 + $0x1c0] sm:$0xff]
    %v2192 = vld [vmem:[%s2134 + $0x1c8] sm:$0xff]
    %v2193 = vld [vmem:[%s2134 + $0x1d0] sm:$0xff]
    %v2194 = vld [vmem:[%s2134 + $0x1d8] sm:$0xff]
    %v2195 = vld [vmem:[%s2134 + $0x1e0] sm:$0xff]
    %v2196 = vld [vmem:[%s2134 + $0x1e8] sm:$0xff]
    %v2197 = vld [vmem:[%s2134 + $0x1f0] sm:$0xff]
    %v2198 = vld [vmem:[%s2134 + $0x1f8] sm:$0xff]
    %s2199 = scalar_lea.vmem %s3, 4
    %v2200 = vld [vmem:[%s2199] sm:$0xf]
    %v2202 = vlaneseq
    %v2203 = vshrl.u32 %v2202, 7
    %v2204 = vsub.s32 0, %v2203
    %v2205 = vrot.slane %v2200, %v2204
    %v2206 = vlaneseq
    %v2207 = vshrl.u32 %v2206, 7
    %v2208 = vsub.s32 1, %v2207
    %v2209 = vrot.slane %v2200, %v2208
    %v2210 = vlaneseq
    %v2211 = vshrl.u32 %v2210, 7
    %v2212 = vsub.s32 2, %v2211
    %v2213 = vrot.slane %v2200, %v2212
    %v2214 = vlaneseq
    %v2215 = vshrl.u32 %v2214, 7
    %v2216 = vsub.s32 3, %v2215
    %v2217 = vrot.slane %v2200, %v2216
    %2222 = vmatprep.subr.mxu0 %v2136
    %2223 = vmatpush1.msra.mxu0 %v2135
    %2224 = vmatprep.subr.mxu0 %v2140
    %2225 = vmatpush1.msra.mxu0 %v2139
    %2226 = vmatprep.subr.mxu0 %v2144
    %2227 = vmatpush1.msra.mxu0 %v2143
    %2228 = vmatprep.subr.mxu0 %v2148
    %2229 = vmatpush1.msra.mxu0 %v2147
    %2230 = vmatprep.subr.mxu0 %v2152
    %2231 = vmatpush1.msra.mxu0 %v2151
    %2232 = vmatprep.subr.mxu0 %v2156
    %2233 = vmatpush1.msra.mxu0 %v2155
    %2234 = vmatprep.subr.mxu0 %v2160
    %2235 = vmatpush1.msra.mxu0 %v2159
    %2236 = vmatprep.subr.mxu0 %v2164
    %2237 = vmatpush1.msra.mxu0 %v2163
    %2238 = vmatprep.subr.mxu0 %v2168
    %2239 = vmatpush1.msra.mxu0 %v2167
    %2240 = vmatprep.subr.mxu0 %v2172
    %2241 = vmatpush1.msra.mxu0 %v2171
    %2242 = vmatprep.subr.mxu0 %v2176
    %2243 = vmatpush1.msra.mxu0 %v2175
    %2244 = vmatprep.subr.mxu0 %v2180
    %2245 = vmatpush1.msra.mxu0 %v2179
    %2246 = vmatprep.subr.mxu0 %v2184
    %2247 = vmatpush1.msra.mxu0 %v2183
    %2248 = vmatprep.subr.mxu0 %v2188
    %2249 = vmatpush1.msra.mxu0 %v2187
    %2250 = vmatprep.subr.mxu0 %v2192
    %2251 = vmatpush1.msra.mxu0 %v2191
    %2252 = vmatprep.subr.mxu0 %v2196
    %2253 = vmatpush1.msra.mxu0 %v2195
    %2254 = vmatprep.subr.mxu0 0.0
    %2255 = vmatpush1.msra.mxu0 0.0
    %2256 = vmatprep.subr.mxu0 0.0
    %2257 = vmatpush1.msra.mxu0 0.0
    %2258 = vmatprep.subr.mxu0 0.0
    %2259 = vmatpush1.msra.mxu0 0.0
    %2260 = vmatprep.subr.mxu0 0.0
    %2261 = vmatpush1.msra.mxu0 0.0
    %2262 = vmatprep.subr.mxu0 0.0
    %2263 = vmatpush1.msra.mxu0 0.0
    %2264 = vmatprep.subr.mxu0 0.0
    %2265 = vmatpush1.msra.mxu0 0.0
    %2266 = vmatprep.subr.mxu0 0.0
    %2267 = vmatpush1.msra.mxu0 0.0
    %2268 = vmatprep.subr.mxu0 0.0
    %2269 = vmatpush1.msra.mxu0 0.0
    %2270 = vmatprep.subr.mxu0 0.0
    %2271 = vmatpush1.msra.mxu0 0.0
    %2272 = vmatprep.subr.mxu0 0.0
    %2273 = vmatpush1.msra.mxu0 0.0
    %2274 = vmatprep.subr.mxu0 0.0
    %2275 = vmatpush1.msra.mxu0 0.0
    %2276 = vmatprep.subr.mxu0 0.0
    %2277 = vmatpush1.msra.mxu0 0.0
    %2278 = vmatprep.subr.mxu0 0.0
    %2279 = vmatpush1.msra.mxu0 0.0
    %2280 = vmatprep.subr.mxu0 0.0
    %2281 = vmatpush1.msra.mxu0 0.0
    %2282 = vmatprep.subr.mxu0 0.0
    %2283 = vmatpush1.msra.mxu0 0.0
    %2284 = vmatprep.subr.mxu0 0.0
    %2285 = vmatpush1.msra.mxu0 0.0
    %2286 = vmatprep.mubr.f32.mxu0 0.0
    %2287 = vmatmul.mubr.f32.gmra.mrb[0].mxu0 %v2125
    %v2288 = vpop.f32.mrb[0].mxu0
    %v2289 = vadd.f32 %v2205, %v2288
    %v2290 = vpop.f32.mrb[0].mxu0
    %v2291 = vadd.f32 %v2209, %v2290
    %2292 = vmatprep.mubr.f32.mxu0 0.0
    %2293 = vmatmul.mubr.f32.gmra.mrb[0].mxu0 %v2126
    %v2294 = vpop.f32.mrb[0].mxu0
    %v2295 = vadd.f32 %v2205, %v2294
    %v2296 = vpop.f32.mrb[0].mxu0
    %v2297 = vadd.f32 %v2209, %v2296
    %2298 = vmatprep.mubr.f32.mxu0 0.0
    %2299 = vmatmul.mubr.f32.gmra.mrb[0].mxu0 %v2127
    %v2300 = vpop.f32.mrb[0].mxu0
    %v2301 = vadd.f32 %v2205, %v2300
    %v2302 = vpop.f32.mrb[0].mxu0
    %v2303 = vadd.f32 %v2209, %v2302
    %2304 = vmatprep.mubr.f32.mxu0 0.0
    %2305 = vmatmul.mubr.f32.gmra.mrb[0].mxu0 %v2128
    %v2306 = vpop.f32.mrb[0].mxu0
    %v2307 = vadd.f32 %v2205, %v2306
    %v2308 = vpop.f32.mrb[0].mxu0
    %v2309 = vadd.f32 %v2209, %v2308
    %2310 = vmatprep.mubr.f32.mxu0 0.0
    %2311 = vmatmul.mubr.f32.gmra.mrb[0].mxu0 %v2129
    %v2312 = vpop.f32.mrb[0].mxu0
    %v2313 = vadd.f32 %v2205, %v2312
    %v2314 = vpop.f32.mrb[0].mxu0
    %v2315 = vadd.f32 %v2209, %v2314
    %2316 = vmatprep.mubr.f32.mxu0 0.0
    %2317 = vmatmul.mubr.f32.gmra.mrb[0].mxu0 %v2130
    %v2318 = vpop.f32.mrb[0].mxu0
    %v2319 = vadd.f32 %v2205, %v2318
    %v2320 = vpop.f32.mrb[0].mxu0
    %v2321 = vadd.f32 %v2209, %v2320
    %2322 = vmatprep.mubr.f32.mxu0 0.0
    %2323 = vmatmul.mubr.f32.gmra.mrb[0].mxu0 %v2131
    %v2324 = vpop.f32.mrb[0].mxu0
    %v2325 = vadd.f32 %v2205, %v2324
    %v2326 = vpop.f32.mrb[0].mxu0
    %v2327 = vadd.f32 %v2209, %v2326
    %2328 = vmatprep.mubr.f32.mxu0 0.0
    %2329 = vmatmul.mubr.f32.gmra.mrb[0].mxu0 %v2132
    %v2330 = vpop.f32.mrb[0].mxu0
    %v2331 = vadd.f32 %v2205, %v2330
    %v2332 = vpop.f32.mrb[0].mxu0
    %v2333 = vadd.f32 %v2209, %v2332
    %2334 = vmatprep.mubr.f32.mxu0 0.0
    %2335 = vmatmul.mubr.f32.gmra.mrb[0].mxu0 %v2133
    %v2336 = vpop.f32.mrb[0].mxu0
    %v2337 = vadd.f32 %v2205, %v2336
    %v2338 = vpop.f32.mrb[0].mxu0
    %v2339 = vadd.f32 %v2209, %v2338
    %2340 = vdwg.mxu0
    %2341 = vmatprep.subr.mxu0 %v2138
    %2342 = vmatpush1.msra.mxu0 %v2137
    %2343 = vmatprep.subr.mxu0 %v2142
    %2344 = vmatpush1.msra.mxu0 %v2141
    %2345 = vmatprep.subr.mxu0 %v2146
    %2346 = vmatpush1.msra.mxu0 %v2145
    %2347 = vmatprep.subr.mxu0 %v2150
    %2348 = vmatpush1.msra.mxu0 %v2149
    %2349 = vmatprep.subr.mxu0 %v2154
    %2350 = vmatpush1.msra.mxu0 %v2153
    %2351 = vmatprep.subr.mxu0 %v2158
    %2352 = vmatpush1.msra.mxu0 %v2157
    %2353 = vmatprep.subr.mxu0 %v2162
    %2354 = vmatpush1.msra.mxu0 %v2161
    %2355 = vmatprep.subr.mxu0 %v2166
    %2356 = vmatpush1.msra.mxu0 %v2165
    %2357 = vmatprep.subr.mxu0 %v2170
    %2358 = vmatpush1.msra.mxu0 %v2169
    %2359 = vmatprep.subr.mxu0 %v2174
    %2360 = vmatpush1.msra.mxu0 %v2173
    %2361 = vmatprep.subr.mxu0 %v2178
    %2362 = vmatpush1.msra.mxu0 %v2177
    %2363 = vmatprep.subr.mxu0 %v2182
    %2364 = vmatpush1.msra.mxu0 %v2181
    %2365 = vmatprep.subr.mxu0 %v2186
    %2366 = vmatpush1.msra.mxu0 %v2185
    %2367 = vmatprep.subr.mxu0 %v2190
    %2368 = vmatpush1.msra.mxu0 %v2189
    %2369 = vmatprep.subr.mxu0 %v2194
    %2370 = vmatpush1.msra.mxu0 %v2193
    %2371 = vmatprep.subr.mxu0 %v2198
    %2372 = vmatpush1.msra.mxu0 %v2197
    %2373 = vmatprep.subr.mxu0 0.0
    %2374 = vmatpush1.msra.mxu0 0.0
    %2375 = vmatprep.subr.mxu0 0.0
    %2376 = vmatpush1.msra.mxu0 0.0
    %2377 = vmatprep.subr.mxu0 0.0
    %2378 = vmatpush1.msra.mxu0 0.0
    %2379 = vmatprep.subr.mxu0 0.0
    %2380 = vmatpush1.msra.mxu0 0.0
    %2381 = vmatprep.subr.mxu0 0.0
    %2382 = vmatpush1.msra.mxu0 0.0
    %2383 = vmatprep.subr.mxu0 0.0
    %2384 = vmatpush1.msra.mxu0 0.0
    %2385 = vmatprep.subr.mxu0 0.0
    %2386 = vmatpush1.msra.mxu0 0.0
    %2387 = vmatprep.subr.mxu0 0.0
    %2388 = vmatpush1.msra.mxu0 0.0
    %2389 = vmatprep.subr.mxu0 0.0
    %2390 = vmatpush1.msra.mxu0 0.0
    %2391 = vmatprep.subr.mxu0 0.0
    %2392 = vmatpush1.msra.mxu0 0.0
    %2393 = vmatprep.subr.mxu0 0.0
    %2394 = vmatpush1.msra.mxu0 0.0
    %2395 = vmatprep.subr.mxu0 0.0
    %2396 = vmatpush1.msra.mxu0 0.0
    %2397 = vmatprep.subr.mxu0 0.0
    %2398 = vmatpush1.msra.mxu0 0.0
    %2399 = vmatprep.subr.mxu0 0.0
    %2400 = vmatpush1.msra.mxu0 0.0
    %2401 = vmatprep.subr.mxu0 0.0
    %2402 = vmatpush1.msra.mxu0 0.0
    %2403 = vmatprep.subr.mxu0 0.0
    %2404 = vmatpush1.msra.mxu0 0.0
    %2405 = vmatprep.mubr.f32.mxu0 0.0
    %2406 = vmatmul.mubr.f32.gmra.mrb[0].mxu0 %v2125
    %v2407 = vpop.f32.mrb[0].mxu0
    %v2408 = vadd.f32 %v2213, %v2407
    %v2409 = vpop.f32.mrb[0].mxu0
    %v2410 = vadd.f32 %v2217, %v2409
    %2411 = vmatprep.mubr.f32.mxu0 0.0
    %2412 = vmatmul.mubr.f32.gmra.mrb[0].mxu0 %v2126
    %v2413 = vpop.f32.mrb[0].mxu0
    %v2414 = vadd.f32 %v2213, %v2413
    %v2415 = vpop.f32.mrb[0].mxu0
    %v2416 = vadd.f32 %v2217, %v2415
    %2417 = vmatprep.mubr.f32.mxu0 0.0
    %2418 = vmatmul.mubr.f32.gmra.mrb[0].mxu0 %v2127
    %v2419 = vpop.f32.mrb[0].mxu0
    %v2420 = vadd.f32 %v2213, %v2419
    %v2421 = vpop.f32.mrb[0].mxu0
    %v2422 = vadd.f32 %v2217, %v2421
    %2423 = vmatprep.mubr.f32.mxu0 0.0
    %2424 = vmatmul.mubr.f32.gmra.mrb[0].mxu0 %v2128
    %v2425 = vpop.f32.mrb[0].mxu0
    %v2426 = vadd.f32 %v2213, %v2425
    %v2427 = vpop.f32.mrb[0].mxu0
    %v2428 = vadd.f32 %v2217, %v2427
    %2429 = vmatprep.mubr.f32.mxu0 0.0
    %2430 = vmatmul.mubr.f32.gmra.mrb[0].mxu0 %v2129
    %v2431 = vpop.f32.mrb[0].mxu0
    %v2432 = vadd.f32 %v2213, %v2431
    %v2433 = vpop.f32.mrb[0].mxu0
    %v2434 = vadd.f32 %v2217, %v2433
    %2435 = vmatprep.mubr.f32.mxu0 0.0
    %2436 = vmatmul.mubr.f32.gmra.mrb[0].mxu0 %v2130
    %v2437 = vpop.f32.mrb[0].mxu0
    %v2438 = vadd.f32 %v2213, %v2437
    %v2439 = vpop.f32.mrb[0].mxu0
    %v2440 = vadd.f32 %v2217, %v2439
    %2441 = vmatprep.mubr.f32.mxu0 0.0
    %2442 = vmatmul.mubr.f32.gmra.mrb[0].mxu0 %v2131
    %v2443 = vpop.f32.mrb[0].mxu0
    %v2444 = vadd.f32 %v2213, %v2443
    %v2445 = vpop.f32.mrb[0].mxu0
    %v2446 = vadd.f32 %v2217, %v2445
    %2447 = vmatprep.mubr.f32.mxu0 0.0
    %2448 = vmatmul.mubr.f32.gmra.mrb[0].mxu0 %v2132
    %v2449 = vpop.f32.mrb[0].mxu0
    %v2450 = vadd.f32 %v2213, %v2449
    %v2451 = vpop.f32.mrb[0].mxu0
    %v2452 = vadd.f32 %v2217, %v2451
    %2453 = vmatprep.mubr.f32.mxu0 0.0
    %2454 = vmatmul.mubr.f32.gmra.mrb[0].mxu0 %v2133
    %v2455 = vpop.f32.mrb[0].mxu0
    %v2456 = vadd.f32 %v2213, %v2455
    %v2457 = vpop.f32.mrb[0].mxu0
    %v2458 = vadd.f32 %v2217, %v2457
    %2459 = vdwg.mxu0
    %2460 = vst [vmem:[#allocation3] sm:$0xff] %v2289
    %2461 = vst [vmem:[#allocation3 + $0x8] sm:$0xff] %v2291
    %2462 = vst [vmem:[#allocation3 + $0x10] sm:$0xff] %v2408
    %2463 = vst [vmem:[#allocation3 + $0x18] sm:$0xff] %v2410
    %2464 = vst [vmem:[#allocation3 + $0x20] sm:$0xff] %v2295
    %2465 = vst [vmem:[#allocation3 + $0x28] sm:$0xff] %v2297
    %2466 = vst [vmem:[#allocation3 + $0x30] sm:$0xff] %v2414
    %2467 = vst [vmem:[#allocation3 + $0x38] sm:$0xff] %v2416
    %2468 = vst [vmem:[#allocation3 + $0x40] sm:$0xff] %v2301
    %2469 = vst [vmem:[#allocation3 + $0x48] sm:$0xff] %v2303
    %2470 = vst [vmem:[#allocation3 + $0x50] sm:$0xff] %v2420
    %2471 = vst [vmem:[#allocation3 + $0x58] sm:$0xff] %v2422
    %2472 = vst [vmem:[#allocation3 + $0x60] sm:$0xff] %v2307
    %2473 = vst [vmem:[#allocation3 + $0x68] sm:$0xff] %v2309
    %2474 = vst [vmem:[#allocation3 + $0x70] sm:$0xff] %v2426
    %2475 = vst [vmem:[#allocation3 + $0x78] sm:$0xff] %v2428
    %2476 = vst [vmem:[#allocation3 + $0x80] sm:$0xff] %v2313
    %2477 = vst [vmem:[#allocation3 + $0x88] sm:$0xff] %v2315
    %2478 = vst [vmem:[#allocation3 + $0x90] sm:$0xff] %v2432
    %2479 = vst [vmem:[#allocation3 + $0x98] sm:$0xff] %v2434
    %2480 = vst [vmem:[#allocation3 + $0xa0] sm:$0xff] %v2319
    %2481 = vst [vmem:[#allocation3 + $0xa8] sm:$0xff] %v2321
    %2482 = vst [vmem:[#allocation3 + $0xb0] sm:$0xff] %v2438
    %2483 = vst [vmem:[#allocation3 + $0xb8] sm:$0xff] %v2440
    %2484 = vst [vmem:[#allocation3 + $0xc0] sm:$0xff] %v2325
    %2485 = vst [vmem:[#allocation3 + $0xc8] sm:$0xff] %v2327
    %2486 = vst [vmem:[#allocation3 + $0xd0] sm:$0xff] %v2444
    %2487 = vst [vmem:[#allocation3 + $0xd8] sm:$0xff] %v2446
    %2488 = vst [vmem:[#allocation3 + $0xe0] sm:$0xff] %v2331
    %2489 = vst [vmem:[#allocation3 + $0xe8] sm:$0xff] %v2333
    %2490 = vst [vmem:[#allocation3 + $0xf0] sm:$0xff] %v2450
    %2491 = vst [vmem:[#allocation3 + $0xf8] sm:$0xff] %v2452
    %2492 = vst [vmem:[#allocation3 + $0x100] sm:$0xff] %v2337
    %2493 = vst [vmem:[#allocation3 + $0x108] sm:$0xff] %v2339
    %2494 = vst [vmem:[#allocation3 + $0x110] sm:$0xff] %v2456
    %2495 = vst [vmem:[#allocation3 + $0x118] sm:$0xff] %v2458
    %2496 = vst [vmem:[#allocation4] sm:$0xff] 0.0
    %2497 = vst [vmem:[#allocation5] sm:$0xff] 0.0
    %s2498 = scalar_lea.vmem [#allocation8], 512
    %v2499 = vld [vmem:[%s2498] sm:$0xff]
    %v2500 = vld [vmem:[%s2498 + $0x8] sm:$0xff]
    %v2501 = vld [vmem:[%s2498 + $0x10] sm:$0xff]
    %v2502 = vld [vmem:[%s2498 + $0x18] sm:$0xff]
    %v2503 = vld [vmem:[%s2498 + $0x20] sm:$0xff]
    %v2504 = vld [vmem:[%s2498 + $0x28] sm:$0xff]
    %v2505 = vld [vmem:[%s2498 + $0x30] sm:$0xff]
    %v2506 = vld [vmem:[%s2498 + $0x38] sm:$0xff]
    %v2507 = vld [vmem:[%s2498 + $0x40] sm:$0xff]
    %v2508 = vld [vmem:[%s2498 + $0x48] sm:$0xff]
    %v2509 = vld [vmem:[%s2498 + $0x50] sm:$0xff]
    %v2510 = vld [vmem:[%s2498 + $0x58] sm:$0xff]
    %v2511 = vld [vmem:[%s2498 + $0x60] sm:$0xff]
    %v2512 = vld [vmem:[%s2498 + $0x68] sm:$0xff]
    %v2513 = vld [vmem:[%s2498 + $0x70] sm:$0xff]
    %v2514 = vld [vmem:[%s2498 + $0x78] sm:$0xff]
    %v2515 = vld [vmem:[%s2498 + $0x80] sm:$0xff]
    %v2516 = vld [vmem:[%s2498 + $0x88] sm:$0xff]
    %v2517 = vld [vmem:[%s2498 + $0x90] sm:$0xff]
    %v2518 = vld [vmem:[%s2498 + $0x98] sm:$0xff]
    %v2519 = vld [vmem:[%s2498 + $0xa0] sm:$0xff]
    %v2520 = vld [vmem:[%s2498 + $0xa8] sm:$0xff]
    %v2521 = vld [vmem:[%s2498 + $0xb0] sm:$0xff]
    %v2522 = vld [vmem:[%s2498 + $0xb8] sm:$0xff]
    %v2523 = vld [vmem:[%s2498 + $0xc0] sm:$0xff]
    %v2524 = vld [vmem:[%s2498 + $0xc8] sm:$0xff]
    %v2525 = vld [vmem:[%s2498 + $0xd0] sm:$0xff]
    %v2526 = vld [vmem:[%s2498 + $0xd8] sm:$0xff]
    %v2527 = vld [vmem:[%s2498 + $0xe0] sm:$0xff]
    %v2528 = vld [vmem:[%s2498 + $0xe8] sm:$0xff]
    %v2529 = vld [vmem:[%s2498 + $0xf0] sm:$0xff]
    %v2530 = vld [vmem:[%s2498 + $0xf8] sm:$0xff]
    %v2531 = vld [vmem:[%s2498 + $0x100] sm:$0xff]
    %v2532 = vld [vmem:[%s2498 + $0x108] sm:$0xff]
    %v2533 = vld [vmem:[%s2498 + $0x110] sm:$0xff]
    %v2534 = vld [vmem:[%s2498 + $0x118] sm:$0xff]
    %v2535 = vld [vmem:[%s2498 + $0x120] sm:$0xff]
    %v2536 = vld [vmem:[%s2498 + $0x128] sm:$0xff]
    %v2537 = vld [vmem:[%s2498 + $0x130] sm:$0xff]
    %v2538 = vld [vmem:[%s2498 + $0x138] sm:$0xff]
    %v2539 = vld [vmem:[%s2498 + $0x140] sm:$0xff]
    %v2540 = vld [vmem:[%s2498 + $0x148] sm:$0xff]
    %v2541 = vld [vmem:[%s2498 + $0x150] sm:$0xff]
    %v2542 = vld [vmem:[%s2498 + $0x158] sm:$0xff]
    %v2543 = vld [vmem:[%s2498 + $0x160] sm:$0xff]
    %v2544 = vld [vmem:[%s2498 + $0x168] sm:$0xff]
    %v2545 = vld [vmem:[%s2498 + $0x170] sm:$0xff]
    %v2546 = vld [vmem:[%s2498 + $0x178] sm:$0xff]
    %v2547 = vld [vmem:[%s2498 + $0x180] sm:$0xff]
    %v2548 = vld [vmem:[%s2498 + $0x188] sm:$0xff]
    %v2549 = vld [vmem:[%s2498 + $0x190] sm:$0xff]
    %v2550 = vld [vmem:[%s2498 + $0x198] sm:$0xff]
    %v2551 = vld [vmem:[%s2498 + $0x1a0] sm:$0xff]
    %v2552 = vld [vmem:[%s2498 + $0x1a8] sm:$0xff]
    %v2553 = vld [vmem:[%s2498 + $0x1b0] sm:$0xff]
    %v2554 = vld [vmem:[%s2498 + $0x1b8] sm:$0xff]
    %v2555 = vld [vmem:[%s2498 + $0x1c0] sm:$0xff]
    %v2556 = vld [vmem:[%s2498 + $0x1c8] sm:$0xff]
    %v2557 = vld [vmem:[%s2498 + $0x1d0] sm:$0xff]
    %v2558 = vld [vmem:[%s2498 + $0x1d8] sm:$0xff]
    %v2559 = vld [vmem:[%s2498 + $0x1e0] sm:$0xff]
    %v2560 = vld [vmem:[%s2498 + $0x1e8] sm:$0xff]
    %v2561 = vld [vmem:[%s2498 + $0x1f0] sm:$0xff]
    %v2562 = vld [vmem:[%s2498 + $0x1f8] sm:$0xff]
    %v2563 = vld [vmem:[#allocation3] sm:$0xff]
    %v2564 = vld [vmem:[#allocation3 + $0x8] sm:$0xff]
    %v2565 = vld [vmem:[#allocation3 + $0x10] sm:$0xff]
    %v2566 = vld [vmem:[#allocation3 + $0x18] sm:$0xff]
    %v2567 = vld [vmem:[#allocation4] sm:$0xff]
    %2568 = vmatprep.subr.mxu0 %v2500
    %2569 = vmatpush1.msra.mxu0 %v2499
    %2570 = vmatprep.subr.mxu0 %v2504
    %2571 = vmatpush1.msra.mxu0 %v2503
    %2572 = vmatprep.subr.mxu0 %v2508
    %2573 = vmatpush1.msra.mxu0 %v2507
    %2574 = vmatprep.subr.mxu0 %v2512
    %2575 = vmatpush1.msra.mxu0 %v2511
    %2576 = vmatprep.subr.mxu0 %v2516
    %2577 = vmatpush1.msra.mxu0 %v2515
    %2578 = vmatprep.subr.mxu0 %v2520
    %2579 = vmatpush1.msra.mxu0 %v2519
    %2580 = vmatprep.subr.mxu0 %v2524
    %2581 = vmatpush1.msra.mxu0 %v2523
    %2582 = vmatprep.subr.mxu0 %v2528
    %2583 = vmatpush1.msra.mxu0 %v2527
    %2584 = vmatprep.subr.mxu0 %v2532
    %2585 = vmatpush1.msra.mxu0 %v2531
    %2586 = vmatprep.subr.mxu0 %v2536
    %2587 = vmatpush1.msra.mxu0 %v2535
    %2588 = vmatprep.subr.mxu0 %v2540
    %2589 = vmatpush1.msra.mxu0 %v2539
    %2590 = vmatprep.subr.mxu0 %v2544
    %2591 = vmatpush1.msra.mxu0 %v2543
    %2592 = vmatprep.subr.mxu0 %v2548
    %2593 = vmatpush1.msra.mxu0 %v2547
    %2594 = vmatprep.subr.mxu0 %v2552
    %2595 = vmatpush1.msra.mxu0 %v2551
    %2596 = vmatprep.subr.mxu0 %v2556
    %2597 = vmatpush1.msra.mxu0 %v2555
    %2598 = vmatprep.subr.mxu0 %v2560
    %2599 = vmatpush1.msra.mxu0 %v2559
    %2600 = vmatprep.subr.mxu0 0.0
    %2601 = vmatpush1.msra.mxu0 0.0
    %2602 = vmatprep.subr.mxu0 0.0
    %2603 = vmatpush1.msra.mxu0 0.0
    %2604 = vmatprep.subr.mxu0 0.0
    %2605 = vmatpush1.msra.mxu0 0.0
    %2606 = vmatprep.subr.mxu0 0.0
    %2607 = vmatpush1.msra.mxu0 0.0
    %2608 = vmatprep.subr.mxu0 0.0
    %2609 = vmatpush1.msra.mxu0 0.0
    %2610 = vmatprep.subr.mxu0 0.0
    %2611 = vmatpush1.msra.mxu0 0.0
    %2612 = vmatprep.subr.mxu0 0.0
    %2613 = vmatpush1.msra.mxu0 0.0
    %2614 = vmatprep.subr.mxu0 0.0
    %2615 = vmatpush1.msra.mxu0 0.0
    %2616 = vmatprep.subr.mxu0 0.0
    %2617 = vmatpush1.msra.mxu0 0.0
    %2618 = vmatprep.subr.mxu0 0.0
    %2619 = vmatpush1.msra.mxu0 0.0
    %2620 = vmatprep.subr.mxu0 0.0
    %2621 = vmatpush1.msra.mxu0 0.0
    %2622 = vmatprep.subr.mxu0 0.0
    %2623 = vmatpush1.msra.mxu0 0.0
    %2624 = vmatprep.subr.mxu0 0.0
    %2625 = vmatpush1.msra.mxu0 0.0
    %2626 = vmatprep.subr.mxu0 0.0
    %2627 = vmatpush1.msra.mxu0 0.0
    %2628 = vmatprep.subr.mxu0 0.0
    %2629 = vmatpush1.msra.mxu0 0.0
    %2630 = vmatprep.subr.mxu0 0.0
    %2631 = vmatpush1.msra.mxu0 0.0
    %2632 = vmatprep.mubr.f32.mxu0 0.0
    %2633 = vmatmul.mubr.f32.gmra.mrb[0].mxu0 %v2567
    %v2634 = vpop.f32.mrb[0].mxu0
    %v2635 = vadd.f32 0.0, %v2634
    %v2636 = vpop.f32.mrb[0].mxu0
    %v2637 = vadd.f32 0.0, %v2636
    %2638 = vdwg.mxu0
    %2639 = vmatprep.subr.mxu0 %v2502
    %2640 = vmatpush1.msra.mxu0 %v2501
    %2641 = vmatprep.subr.mxu0 %v2506
    %2642 = vmatpush1.msra.mxu0 %v2505
    %2643 = vmatprep.subr.mxu0 %v2510
    %2644 = vmatpush1.msra.mxu0 %v2509
    %2645 = vmatprep.subr.mxu0 %v2514
    %2646 = vmatpush1.msra.mxu0 %v2513
    %2647 = vmatprep.subr.mxu0 %v2518
    %2648 = vmatpush1.msra.mxu0 %v2517
    %2649 = vmatprep.subr.mxu0 %v2522
    %2650 = vmatpush1.msra.mxu0 %v2521
    %2651 = vmatprep.subr.mxu0 %v2526
    %2652 = vmatpush1.msra.mxu0 %v2525
    %2653 = vmatprep.subr.mxu0 %v2530
    %2654 = vmatpush1.msra.mxu0 %v2529
    %2655 = vmatprep.subr.mxu0 %v2534
    %2656 = vmatpush1.msra.mxu0 %v2533
    %2657 = vmatprep.subr.mxu0 %v2538
    %2658 = vmatpush1.msra.mxu0 %v2537
    %2659 = vmatprep.subr.mxu0 %v2542
    %2660 = vmatpush1.msra.mxu0 %v2541
    %2661 = vmatprep.subr.mxu0 %v2546
    %2662 = vmatpush1.msra.mxu0 %v2545
    %2663 = vmatprep.subr.mxu0 %v2550
    %2664 = vmatpush1.msra.mxu0 %v2549
    %2665 = vmatprep.subr.mxu0 %v2554
    %2666 = vmatpush1.msra.mxu0 %v2553
    %2667 = vmatprep.subr.mxu0 %v2558
    %2668 = vmatpush1.msra.mxu0 %v2557
    %2669 = vmatprep.subr.mxu0 %v2562
    %2670 = vmatpush1.msra.mxu0 %v2561
    %2671 = vmatprep.subr.mxu0 0.0
    %2672 = vmatpush1.msra.mxu0 0.0
    %2673 = vmatprep.subr.mxu0 0.0
    %2674 = vmatpush1.msra.mxu0 0.0
    %2675 = vmatprep.subr.mxu0 0.0
    %2676 = vmatpush1.msra.mxu0 0.0
    %2677 = vmatprep.subr.mxu0 0.0
    %2678 = vmatpush1.msra.mxu0 0.0
    %2679 = vmatprep.subr.mxu0 0.0
    %2680 = vmatpush1.msra.mxu0 0.0
    %2681 = vmatprep.subr.mxu0 0.0
    %2682 = vmatpush1.msra.mxu0 0.0
    %2683 = vmatprep.subr.mxu0 0.0
    %2684 = vmatpush1.msra.mxu0 0.0
    %2685 = vmatprep.subr.mxu0 0.0
    %2686 = vmatpush1.msra.mxu0 0.0
    %2687 = vmatprep.subr.mxu0 0.0
    %2688 = vmatpush1.msra.mxu0 0.0
    %2689 = vmatprep.subr.mxu0 0.0
    %2690 = vmatpush1.msra.mxu0 0.0
    %2691 = vmatprep.subr.mxu0 0.0
    %2692 = vmatpush1.msra.mxu0 0.0
    %2693 = vmatprep.subr.mxu0 0.0
    %2694 = vmatpush1.msra.mxu0 0.0
    %2695 = vmatprep.subr.mxu0 0.0
    %2696 = vmatpush1.msra.mxu0 0.0
    %2697 = vmatprep.subr.mxu0 0.0
    %2698 = vmatpush1.msra.mxu0 0.0
    %2699 = vmatprep.subr.mxu0 0.0
    %2700 = vmatpush1.msra.mxu0 0.0
    %2701 = vmatprep.subr.mxu0 0.0
    %2702 = vmatpush1.msra.mxu0 0.0
    %2703 = vmatprep.mubr.f32.mxu0 0.0
    %2704 = vmatmul.mubr.f32.gmra.mrb[0].mxu0 %v2567
    %v2705 = vpop.f32.mrb[0].mxu0
    %v2706 = vadd.f32 0.0, %v2705
    %v2707 = vpop.f32.mrb[0].mxu0
    %v2708 = vadd.f32 0.0, %v2707
    %2709 = vdwg.mxu0
    %v2710 = vadd.f32 %v2563, %v2635
    %v2711 = vadd.f32 %v2564, %v2637
    %v2712 = vadd.f32 %v2565, %v2706
    %v2713 = vadd.f32 %v2566, %v2708
    %v2714 = vxor.u32 %v2710, 2147483648
    %v2715 = vmul.f32 %v2714, 1.442695
    %v2716 = vpow.pop %v2715
    %v2717 = vadd.f32 %v2716, 1.0
    %v2718 = vrcp.pop %v2717
    %v2719 = vmul.f32 1.0, %v2718
    %v2720 = vxor.u32 %v2711, 2147483648
    %v2721 = vmul.f32 %v2720, 1.442695
    %v2722 = vpow.pop %v2721
    %v2723 = vadd.f32 %v2722, 1.0
    %v2724 = vrcp.pop %v2723
    %v2725 = vmul.f32 1.0, %v2724
    %v2726 = vtanh.pop %v2712
    %v2727 = vxor.u32 %v2713, 2147483648
    %v2728 = vmul.f32 %v2727, 1.442695
    %v2729 = vpow.pop %v2728
    %v2730 = vadd.f32 %v2729, 1.0
    %v2731 = vrcp.pop %v2730
    %v2732 = vmul.f32 1.0, %v2731
    %v2733 = vld [vmem:[#allocation5] sm:$0xff]
    %v2734 = vmul.f32 %v2725, %v2733
    %v2735 = vmul.f32 %v2719, %v2726
    %v2736 = vadd.f32 %v2734, %v2735
    %v2737 = vtanh.pop %v2736
    %v2738 = vmul.f32 %v2732, %v2737
    %2739 = vst [vmem:[#allocation5] sm:$0xff] %v2736
    %2740 = vst [vmem:[#allocation4] sm:$0xff] %v2738
    %2741 = vst [vmem:[%s4] sm:$0xff] %v2738
    %v2742 = vld [vmem:[%s677] sm:$0xff]
    %v2743 = vld [vmem:[%s677 + $0x8] sm:$0xff]
    %v2744 = vld [vmem:[%s677 + $0x10] sm:$0xff]
    %v2745 = vld [vmem:[%s677 + $0x18] sm:$0xff]
    %v2746 = vld [vmem:[#allocation4] sm:$0xff]
    %2747 = vmatprep.subr.mxu0 %v2500
    %2748 = vmatpush1.msra.mxu0 %v2499
    %2749 = vmatprep.subr.mxu0 %v2504
    %2750 = vmatpush1.msra.mxu0 %v2503
    %2751 = vmatprep.subr.mxu0 %v2508
    %2752 = vmatpush1.msra.mxu0 %v2507
    %2753 = vmatprep.subr.mxu0 %v2512
    %2754 = vmatpush1.msra.mxu0 %v2511
    %2755 = vmatprep.subr.mxu0 %v2516
    %2756 = vmatpush1.msra.mxu0 %v2515
    %2757 = vmatprep.subr.mxu0 %v2520
    %2758 = vmatpush1.msra.mxu0 %v2519
    %2759 = vmatprep.subr.mxu0 %v2524
    %2760 = vmatpush1.msra.mxu0 %v2523
    %2761 = vmatprep.subr.mxu0 %v2528
    %2762 = vmatpush1.msra.mxu0 %v2527
    %2763 = vmatprep.subr.mxu0 %v2532
    %2764 = vmatpush1.msra.mxu0 %v2531
    %2765 = vmatprep.subr.mxu0 %v2536
    %2766 = vmatpush1.msra.mxu0 %v2535
    %2767 = vmatprep.subr.mxu0 %v2540
    %2768 = vmatpush1.msra.mxu0 %v2539
    %2769 = vmatprep.subr.mxu0 %v2544
    %2770 = vmatpush1.msra.mxu0 %v2543
    %2771 = vmatprep.subr.mxu0 %v2548
    %2772 = vmatpush1.msra.mxu0 %v2547
    %2773 = vmatprep.subr.mxu0 %v2552
    %2774 = vmatpush1.msra.mxu0 %v2551
    %2775 = vmatprep.subr.mxu0 %v2556
    %2776 = vmatpush1.msra.mxu0 %v2555
    %2777 = vmatprep.subr.mxu0 %v2560
    %2778 = vmatpush1.msra.mxu0 %v2559
    %2779 = vmatprep.subr.mxu0 0.0
    %2780 = vmatpush1.msra.mxu0 0.0
    %2781 = vmatprep.subr.mxu0 0.0
    %2782 = vmatpush1.msra.mxu0 0.0
    %2783 = vmatprep.subr.mxu0 0.0
    %2784 = vmatpush1.msra.mxu0 0.0
    %2785 = vmatprep.subr.mxu0 0.0
    %2786 = vmatpush1.msra.mxu0 0.0
    %2787 = vmatprep.subr.mxu0 0.0
    %2788 = vmatpush1.msra.mxu0 0.0
    %2789 = vmatprep.subr.mxu0 0.0
    %2790 = vmatpush1.msra.mxu0 0.0
    %2791 = vmatprep.subr.mxu0 0.0
    %2792 = vmatpush1.msra.mxu0 0.0
    %2793 = vmatprep.subr.mxu0 0.0
    %2794 = vmatpush1.msra.mxu0 0.0
    %2795 = vmatprep.subr.mxu0 0.0
    %2796 = vmatpush1.msra.mxu0 0.0
    %2797 = vmatprep.subr.mxu0 0.0
    %2798 = vmatpush1.msra.mxu0 0.0
    %2799 = vmatprep.subr.mxu0 0.0
    %2800 = vmatpush1.msra.mxu0 0.0
    %2801 = vmatprep.subr.mxu0 0.0
    %2802 = vmatpush1.msra.mxu0 0.0
    %2803 = vmatprep.subr.mxu0 0.0
    %2804 = vmatpush1.msra.mxu0 0.0
    %2805 = vmatprep.subr.mxu0 0.0
    %2806 = vmatpush1.msra.mxu0 0.0
    %2807 = vmatprep.subr.mxu0 0.0
    %2808 = vmatpush1.msra.mxu0 0.0
    %2809 = vmatprep.subr.mxu0 0.0
    %2810 = vmatpush1.msra.mxu0 0.0
    %2811 = vmatprep.mubr.f32.mxu0 0.0
    %2812 = vmatmul.mubr.f32.gmra.mrb[0].mxu0 %v2746
    %v2813 = vpop.f32.mrb[0].mxu0
    %v2814 = vadd.f32 0.0, %v2813
    %v2815 = vpop.f32.mrb[0].mxu0
    %v2816 = vadd.f32 0.0, %v2815
    %2817 = vdwg.mxu0
    %2818 = vmatprep.subr.mxu0 %v2502
    %2819 = vmatpush1.msra.mxu0 %v2501
    %2820 = vmatprep.subr.mxu0 %v2506
    %2821 = vmatpush1.msra.mxu0 %v2505
    %2822 = vmatprep.subr.mxu0 %v2510
    %2823 = vmatpush1.msra.mxu0 %v2509
    %2824 = vmatprep.subr.mxu0 %v2514
    %2825 = vmatpush1.msra.mxu0 %v2513
    %2826 = vmatprep.subr.mxu0 %v2518
    %2827 = vmatpush1.msra.mxu0 %v2517
    %2828 = vmatprep.subr.mxu0 %v2522
    %2829 = vmatpush1.msra.mxu0 %v2521
    %2830 = vmatprep.subr.mxu0 %v2526
    %2831 = vmatpush1.msra.mxu0 %v2525
    %2832 = vmatprep.subr.mxu0 %v2530
    %2833 = vmatpush1.msra.mxu0 %v2529
    %2834 = vmatprep.subr.mxu0 %v2534
    %2835 = vmatpush1.msra.mxu0 %v2533
    %2836 = vmatprep.subr.mxu0 %v2538
    %2837 = vmatpush1.msra.mxu0 %v2537
    %2838 = vmatprep.subr.mxu0 %v2542
    %2839 = vmatpush1.msra.mxu0 %v2541
    %2840 = vmatprep.subr.mxu0 %v2546
    %2841 = vmatpush1.msra.mxu0 %v2545
    %2842 = vmatprep.subr.mxu0 %v2550
    %2843 = vmatpush1.msra.mxu0 %v2549
    %2844 = vmatprep.subr.mxu0 %v2554
    %2845 = vmatpush1.msra.mxu0 %v2553
    %2846 = vmatprep.subr.mxu0 %v2558
    %2847 = vmatpush1.msra.mxu0 %v2557
    %2848 = vmatprep.subr.mxu0 %v2562
    %2849 = vmatpush1.msra.mxu0 %v2561
    %2850 = vmatprep.subr.mxu0 0.0
    %2851 = vmatpush1.msra.mxu0 0.0
    %2852 = vmatprep.subr.mxu0 0.0
    %2853 = vmatpush1.msra.mxu0 0.0
    %2854 = vmatprep.subr.mxu0 0.0
    %2855 = vmatpush1.msra.mxu0 0.0
    %2856 = vmatprep.subr.mxu0 0.0
    %2857 = vmatpush1.msra.mxu0 0.0
    %2858 = vmatprep.subr.mxu0 0.0
    %2859 = vmatpush1.msra.mxu0 0.0
    %2860 = vmatprep.subr.mxu0 0.0
    %2861 = vmatpush1.msra.mxu0 0.0
    %2862 = vmatprep.subr.mxu0 0.0
    %2863 = vmatpush1.msra.mxu0 0.0
    %2864 = vmatprep.subr.mxu0 0.0
    %2865 = vmatpush1.msra.mxu0 0.0
    %2866 = vmatprep.subr.mxu0 0.0
    %2867 = vmatpush1.msra.mxu0 0.0
    %2868 = vmatprep.subr.mxu0 0.0
    %2869 = vmatpush1.msra.mxu0 0.0
    %2870 = vmatprep.subr.mxu0 0.0
    %2871 = vmatpush1.msra.mxu0 0.0
    %2872 = vmatprep.subr.mxu0 0.0
    %2873 = vmatpush1.msra.mxu0 0.0
    %2874 = vmatprep.subr.mxu0 0.0
    %2875 = vmatpush1.msra.mxu0 0.0
    %2876 = vmatprep.subr.mxu0 0.0
    %2877 = vmatpush1.msra.mxu0 0.0
    %2878 = vmatprep.subr.mxu0 0.0
    %2879 = vmatpush1.msra.mxu0 0.0
    %2880 = vmatprep.subr.mxu0 0.0
    %2881 = vmatpush1.msra.mxu0 0.0
    %2882 = vmatprep.mubr.f32.mxu0 0.0
    %2883 = vmatmul.mubr.f32.gmra.mrb[0].mxu0 %v2746
    %v2884 = vpop.f32.mrb[0].mxu0
    %v2885 = vadd.f32 0.0, %v2884
    %v2886 = vpop.f32.mrb[0].mxu0
    %v2887 = vadd.f32 0.0, %v2886
    %2888 = vdwg.mxu0
    %v2889 = vadd.f32 %v2742, %v2814
    %v2890 = vadd.f32 %v2743, %v2816
    %v2891 = vadd.f32 %v2744, %v2885
    %v2892 = vadd.f32 %v2745, %v2887
    %v2893 = vxor.u32 %v2889, 2147483648
    %v2894 = vmul.f32 %v2893, 1.442695
    %v2895 = vpow.pop %v2894
    %v2896 = vadd.f32 %v2895, 1.0
    %v2897 = vrcp.pop %v2896
    %v2898 = vmul.f32 1.0, %v2897
    %v2899 = vxor.u32 %v2890, 2147483648
    %v2900 = vmul.f32 %v2899, 1.442695
    %v2901 = vpow.pop %v2900
    %v2902 = vadd.f32 %v2901, 1.0
    %v2903 = vrcp.pop %v2902
    %v2904 = vmul.f32 1.0, %v2903
    %v2905 = vtanh.pop %v2891
    %v2906 = vxor.u32 %v2892, 2147483648
    %v2907 = vmul.f32 %v2906, 1.442695
    %v2908 = vpow.pop %v2907
    %v2909 = vadd.f32 %v2908, 1.0
    %v2910 = vrcp.pop %v2909
    %v2911 = vmul.f32 1.0, %v2910
    %v2912 = vld [vmem:[#allocation5] sm:$0xff]
    %v2913 = vmul.f32 %v2904, %v2912
    %v2914 = vmul.f32 %v2898, %v2905
    %v2915 = vadd.f32 %v2913, %v2914
    %v2916 = vtanh.pop %v2915
    %v2917 = vmul.f32 %v2911, %v2916
    %2918 = vst [vmem:[#allocation5] sm:$0xff] %v2915
    %2919 = vst [vmem:[#allocation4] sm:$0xff] %v2917
    %s2920 = scalar_lea.vmem %s4, 8
    %2921 = vst [vmem:[%s2920] sm:$0xff] %v2917
    %v2922 = vld [vmem:[%s858] sm:$0xff]
    %v2923 = vld [vmem:[%s858 + $0x8] sm:$0xff]
    %v2924 = vld [vmem:[%s858 + $0x10] sm:$0xff]
    %v2925 = vld [vmem:[%s858 + $0x18] sm:$0xff]
    %v2926 = vld [vmem:[#allocation4] sm:$0xff]
    %2927 = vmatprep.subr.mxu0 %v2500
    %2928 = vmatpush1.msra.mxu0 %v2499
    %2929 = vmatprep.subr.mxu0 %v2504
    %2930 = vmatpush1.msra.mxu0 %v2503
    %2931 = vmatprep.subr.mxu0 %v2508
    %2932 = vmatpush1.msra.mxu0 %v2507
    %2933 = vmatprep.subr.mxu0 %v2512
    %2934 = vmatpush1.msra.mxu0 %v2511
    %2935 = vmatprep.subr.mxu0 %v2516
    %2936 = vmatpush1.msra.mxu0 %v2515
    %2937 = vmatprep.subr.mxu0 %v2520
    %2938 = vmatpush1.msra.mxu0 %v2519
    %2939 = vmatprep.subr.mxu0 %v2524
    %2940 = vmatpush1.msra.mxu0 %v2523
    %2941 = vmatprep.subr.mxu0 %v2528
    %2942 = vmatpush1.msra.mxu0 %v2527
    %2943 = vmatprep.subr.mxu0 %v2532
    %2944 = vmatpush1.msra.mxu0 %v2531
    %2945 = vmatprep.subr.mxu0 %v2536
    %2946 = vmatpush1.msra.mxu0 %v2535
    %2947 = vmatprep.subr.mxu0 %v2540
    %2948 = vmatpush1.msra.mxu0 %v2539
    %2949 = vmatprep.subr.mxu0 %v2544
    %2950 = vmatpush1.msra.mxu0 %v2543
    %2951 = vmatprep.subr.mxu0 %v2548
    %2952 = vmatpush1.msra.mxu0 %v2547
    %2953 = vmatprep.subr.mxu0 %v2552
    %2954 = vmatpush1.msra.mxu0 %v2551
    %2955 = vmatprep.subr.mxu0 %v2556
    %2956 = vmatpush1.msra.mxu0 %v2555
    %2957 = vmatprep.subr.mxu0 %v2560
    %2958 = vmatpush1.msra.mxu0 %v2559
    %2959 = vmatprep.subr.mxu0 0.0
    %2960 = vmatpush1.msra.mxu0 0.0
    %2961 = vmatprep.subr.mxu0 0.0
    %2962 = vmatpush1.msra.mxu0 0.0
    %2963 = vmatprep.subr.mxu0 0.0
    %2964 = vmatpush1.msra.mxu0 0.0
    %2965 = vmatprep.subr.mxu0 0.0
    %2966 = vmatpush1.msra.mxu0 0.0
    %2967 = vmatprep.subr.mxu0 0.0
    %2968 = vmatpush1.msra.mxu0 0.0
    %2969 = vmatprep.subr.mxu0 0.0
    %2970 = vmatpush1.msra.mxu0 0.0
    %2971 = vmatprep.subr.mxu0 0.0
    %2972 = vmatpush1.msra.mxu0 0.0
    %2973 = vmatprep.subr.mxu0 0.0
    %2974 = vmatpush1.msra.mxu0 0.0
    %2975 = vmatprep.subr.mxu0 0.0
    %2976 = vmatpush1.msra.mxu0 0.0
    %2977 = vmatprep.subr.mxu0 0.0
    %2978 = vmatpush1.msra.mxu0 0.0
    %2979 = vmatprep.subr.mxu0 0.0
    %2980 = vmatpush1.msra.mxu0 0.0
    %2981 = vmatprep.subr.mxu0 0.0
    %2982 = vmatpush1.msra.mxu0 0.0
    %2983 = vmatprep.subr.mxu0 0.0
    %2984 = vmatpush1.msra.mxu0 0.0
    %2985 = vmatprep.subr.mxu0 0.0
    %2986 = vmatpush1.msra.mxu0 0.0
    %2987 = vmatprep.subr.mxu0 0.0
    %2988 = vmatpush1.msra.mxu0 0.0
    %2989 = vmatprep.subr.mxu0 0.0
    %2990 = vmatpush1.msra.mxu0 0.0
    %2991 = vmatprep.mubr.f32.mxu0 0.0
    %2992 = vmatmul.mubr.f32.gmra.mrb[0].mxu0 %v2926
    %v2993 = vpop.f32.mrb[0].mxu0
    %v2994 = vadd.f32 0.0, %v2993
    %v2995 = vpop.f32.mrb[0].mxu0
    %v2996 = vadd.f32 0.0, %v2995
    %2997 = vdwg.mxu0
    %2998 = vmatprep.subr.mxu0 %v2502
    %2999 = vmatpush1.msra.mxu0 %v2501
    %3000 = vmatprep.subr.mxu0 %v2506
    %3001 = vmatpush1.msra.mxu0 %v2505
    %3002 = vmatprep.subr.mxu0 %v2510
    %3003 = vmatpush1.msra.mxu0 %v2509
    %3004 = vmatprep.subr.mxu0 %v2514
    %3005 = vmatpush1.msra.mxu0 %v2513
    %3006 = vmatprep.subr.mxu0 %v2518
    %3007 = vmatpush1.msra.mxu0 %v2517
    %3008 = vmatprep.subr.mxu0 %v2522
    %3009 = vmatpush1.msra.mxu0 %v2521
    %3010 = vmatprep.subr.mxu0 %v2526
    %3011 = vmatpush1.msra.mxu0 %v2525
    %3012 = vmatprep.subr.mxu0 %v2530
    %3013 = vmatpush1.msra.mxu0 %v2529
    %3014 = vmatprep.subr.mxu0 %v2534
    %3015 = vmatpush1.msra.mxu0 %v2533
    %3016 = vmatprep.subr.mxu0 %v2538
    %3017 = vmatpush1.msra.mxu0 %v2537
    %3018 = vmatprep.subr.mxu0 %v2542
    %3019 = vmatpush1.msra.mxu0 %v2541
    %3020 = vmatprep.subr.mxu0 %v2546
    %3021 = vmatpush1.msra.mxu0 %v2545
    %3022 = vmatprep.subr.mxu0 %v2550
    %3023 = vmatpush1.msra.mxu0 %v2549
    %3024 = vmatprep.subr.mxu0 %v2554
    %3025 = vmatpush1.msra.mxu0 %v2553
    %3026 = vmatprep.subr.mxu0 %v2558
    %3027 = vmatpush1.msra.mxu0 %v2557
    %3028 = vmatprep.subr.mxu0 %v2562
    %3029 = vmatpush1.msra.mxu0 %v2561
    %3030 = vmatprep.subr.mxu0 0.0
    %3031 = vmatpush1.msra.mxu0 0.0
    %3032 = vmatprep.subr.mxu0 0.0
    %3033 = vmatpush1.msra.mxu0 0.0
    %3034 = vmatprep.subr.mxu0 0.0
    %3035 = vmatpush1.msra.mxu0 0.0
    %3036 = vmatprep.subr.mxu0 0.0
    %3037 = vmatpush1.msra.mxu0 0.0
    %3038 = vmatprep.subr.mxu0 0.0
    %3039 = vmatpush1.msra.mxu0 0.0
    %3040 = vmatprep.subr.mxu0 0.0
    %3041 = vmatpush1.msra.mxu0 0.0
    %3042 = vmatprep.subr.mxu0 0.0
    %3043 = vmatpush1.msra.mxu0 0.0
    %3044 = vmatprep.subr.mxu0 0.0
    %3045 = vmatpush1.msra.mxu0 0.0
    %3046 = vmatprep.subr.mxu0 0.0
    %3047 = vmatpush1.msra.mxu0 0.0
    %3048 = vmatprep.subr.mxu0 0.0
    %3049 = vmatpush1.msra.mxu0 0.0
    %3050 = vmatprep.subr.mxu0 0.0
    %3051 = vmatpush1.msra.mxu0 0.0
    %3052 = vmatprep.subr.mxu0 0.0
    %3053 = vmatpush1.msra.mxu0 0.0
    %3054 = vmatprep.subr.mxu0 0.0
    %3055 = vmatpush1.msra.mxu0 0.0
    %3056 = vmatprep.subr.mxu0 0.0
    %3057 = vmatpush1.msra.mxu0 0.0
    %3058 = vmatprep.subr.mxu0 0.0
    %3059 = vmatpush1.msra.mxu0 0.0
    %3060 = vmatprep.subr.mxu0 0.0
    %3061 = vmatpush1.msra.mxu0 0.0
    %3062 = vmatprep.mubr.f32.mxu0 0.0
    %3063 = vmatmul.mubr.f32.gmra.mrb[0].mxu0 %v2926
    %v3064 = vpop.f32.mrb[0].mxu0
    %v3065 = vadd.f32 0.0, %v3064
    %v3066 = vpop.f32.mrb[0].mxu0
    %v3067 = vadd.f32 0.0, %v3066
    %3068 = vdwg.mxu0
    %v3069 = vadd.f32 %v2922, %v2994
    %v3070 = vadd.f32 %v2923, %v2996
    %v3071 = vadd.f32 %v2924, %v3065
    %v3072 = vadd.f32 %v2925, %v3067
    %v3073 = vxor.u32 %v3069, 2147483648
    %v3074 = vmul.f32 %v3073, 1.442695
    %v3075 = vpow.pop %v3074
    %v3076 = vadd.f32 %v3075, 1.0
    %v3077 = vrcp.pop %v3076
    %v3078 = vmul.f32 1.0, %v3077
    %v3079 = vxor.u32 %v3070, 2147483648
    %v3080 = vmul.f32 %v3079, 1.442695
    %v3081 = vpow.pop %v3080
    %v3082 = vadd.f32 %v3081, 1.0
    %v3083 = vrcp.pop %v3082
    %v3084 = vmul.f32 1.0, %v3083
    %v3085 = vtanh.pop %v3071
    %v3086 = vxor.u32 %v3072, 2147483648
    %v3087 = vmul.f32 %v3086, 1.442695
    %v3088 = vpow.pop %v3087
    %v3089 = vadd.f32 %v3088, 1.0
    %v3090 = vrcp.pop %v3089
    %v3091 = vmul.f32 1.0, %v3090
    %v3092 = vld [vmem:[#allocation5] sm:$0xff]
    %v3093 = vmul.f32 %v3084, %v3092
    %v3094 = vmul.f32 %v3078, %v3085
    %v3095 = vadd.f32 %v3093, %v3094
    %v3096 = vtanh.pop %v3095
    %v3097 = vmul.f32 %v3091, %v3096
    %3098 = vst [vmem:[#allocation5] sm:$0xff] %v3095
    %3099 = vst [vmem:[#allocation4] sm:$0xff] %v3097
    %s3100 = scalar_lea.vmem %s4, 16
    %3101 = vst [vmem:[%s3100] sm:$0xff] %v3097
    %v3102 = vld [vmem:[%s1039] sm:$0xff]
    %v3103 = vld [vmem:[%s1039 + $0x8] sm:$0xff]
    %v3104 = vld [vmem:[%s1039 + $0x10] sm:$0xff]
    %v3105 = vld [vmem:[%s1039 + $0x18] sm:$0xff]
    %v3106 = vld [vmem:[#allocation4] sm:$0xff]
    %3107 = vmatprep.subr.mxu0 %v2500
    %3108 = vmatpush1.msra.mxu0 %v2499
    %3109 = vmatprep.subr.mxu0 %v2504
    %3110 = vmatpush1.msra.mxu0 %v2503
    %3111 = vmatprep.subr.mxu0 %v2508
    %3112 = vmatpush1.msra.mxu0 %v2507
    %3113 = vmatprep.subr.mxu0 %v2512
    %3114 = vmatpush1.msra.mxu0 %v2511
    %3115 = vmatprep.subr.mxu0 %v2516
    %3116 = vmatpush1.msra.mxu0 %v2515
    %3117 = vmatprep.subr.mxu0 %v2520
    %3118 = vmatpush1.msra.mxu0 %v2519
    %3119 = vmatprep.subr.mxu0 %v2524
    %3120 = vmatpush1.msra.mxu0 %v2523
    %3121 = vmatprep.subr.mxu0 %v2528
    %3122 = vmatpush1.msra.mxu0 %v2527
    %3123 = vmatprep.subr.mxu0 %v2532
    %3124 = vmatpush1.msra.mxu0 %v2531
    %3125 = vmatprep.subr.mxu0 %v2536
    %3126 = vmatpush1.msra.mxu0 %v2535
    %3127 = vmatprep.subr.mxu0 %v2540
    %3128 = vmatpush1.msra.mxu0 %v2539
    %3129 = vmatprep.subr.mxu0 %v2544
    %3130 = vmatpush1.msra.mxu0 %v2543
    %3131 = vmatprep.subr.mxu0 %v2548
    %3132 = vmatpush1.msra.mxu0 %v2547
    %3133 = vmatprep.subr.mxu0 %v2552
    %3134 = vmatpush1.msra.mxu0 %v2551
    %3135 = vmatprep.subr.mxu0 %v2556
    %3136 = vmatpush1.msra.mxu0 %v2555
    %3137 = vmatprep.subr.mxu0 %v2560
    %3138 = vmatpush1.msra.mxu0 %v2559
    %3139 = vmatprep.subr.mxu0 0.0
    %3140 = vmatpush1.msra.mxu0 0.0
    %3141 = vmatprep.subr.mxu0 0.0
    %3142 = vmatpush1.msra.mxu0 0.0
    %3143 = vmatprep.subr.mxu0 0.0
    %3144 = vmatpush1.msra.mxu0 0.0
    %3145 = vmatprep.subr.mxu0 0.0
    %3146 = vmatpush1.msra.mxu0 0.0
    %3147 = vmatprep.subr.mxu0 0.0
    %3148 = vmatpush1.msra.mxu0 0.0
    %3149 = vmatprep.subr.mxu0 0.0
    %3150 = vmatpush1.msra.mxu0 0.0
    %3151 = vmatprep.subr.mxu0 0.0
    %3152 = vmatpush1.msra.mxu0 0.0
    %3153 = vmatprep.subr.mxu0 0.0
    %3154 = vmatpush1.msra.mxu0 0.0
    %3155 = vmatprep.subr.mxu0 0.0
    %3156 = vmatpush1.msra.mxu0 0.0
    %3157 = vmatprep.subr.mxu0 0.0
    %3158 = vmatpush1.msra.mxu0 0.0
    %3159 = vmatprep.subr.mxu0 0.0
    %3160 = vmatpush1.msra.mxu0 0.0
    %3161 = vmatprep.subr.mxu0 0.0
    %3162 = vmatpush1.msra.mxu0 0.0
    %3163 = vmatprep.subr.mxu0 0.0
    %3164 = vmatpush1.msra.mxu0 0.0
    %3165 = vmatprep.subr.mxu0 0.0
    %3166 = vmatpush1.msra.mxu0 0.0
    %3167 = vmatprep.subr.mxu0 0.0
    %3168 = vmatpush1.msra.mxu0 0.0
    %3169 = vmatprep.subr.mxu0 0.0
    %3170 = vmatpush1.msra.mxu0 0.0
    %3171 = vmatprep.mubr.f32.mxu0 0.0
    %3172 = vmatmul.mubr.f32.gmra.mrb[0].mxu0 %v3106
    %v3173 = vpop.f32.mrb[0].mxu0
    %v3174 = vadd.f32 0.0, %v3173
    %v3175 = vpop.f32.mrb[0].mxu0
    %v3176 = vadd.f32 0.0, %v3175
    %3177 = vdwg.mxu0
    %3178 = vmatprep.subr.mxu0 %v2502
    %3179 = vmatpush1.msra.mxu0 %v2501
    %3180 = vmatprep.subr.mxu0 %v2506
    %3181 = vmatpush1.msra.mxu0 %v2505
    %3182 = vmatprep.subr.mxu0 %v2510
    %3183 = vmatpush1.msra.mxu0 %v2509
    %3184 = vmatprep.subr.mxu0 %v2514
    %3185 = vmatpush1.msra.mxu0 %v2513
    %3186 = vmatprep.subr.mxu0 %v2518
    %3187 = vmatpush1.msra.mxu0 %v2517
    %3188 = vmatprep.subr.mxu0 %v2522
    %3189 = vmatpush1.msra.mxu0 %v2521
    %3190 = vmatprep.subr.mxu0 %v2526
    %3191 = vmatpush1.msra.mxu0 %v2525
    %3192 = vmatprep.subr.mxu0 %v2530
    %3193 = vmatpush1.msra.mxu0 %v2529
    %3194 = vmatprep.subr.mxu0 %v2534
    %3195 = vmatpush1.msra.mxu0 %v2533
    %3196 = vmatprep.subr.mxu0 %v2538
    %3197 = vmatpush1.msra.mxu0 %v2537
    %3198 = vmatprep.subr.mxu0 %v2542
    %3199 = vmatpush1.msra.mxu0 %v2541
    %3200 = vmatprep.subr.mxu0 %v2546
    %3201 = vmatpush1.msra.mxu0 %v2545
    %3202 = vmatprep.subr.mxu0 %v2550
    %3203 = vmatpush1.msra.mxu0 %v2549
    %3204 = vmatprep.subr.mxu0 %v2554
    %3205 = vmatpush1.msra.mxu0 %v2553
    %3206 = vmatprep.subr.mxu0 %v2558
    %3207 = vmatpush1.msra.mxu0 %v2557
    %3208 = vmatprep.subr.mxu0 %v2562
    %3209 = vmatpush1.msra.mxu0 %v2561
    %3210 = vmatprep.subr.mxu0 0.0
    %3211 = vmatpush1.msra.mxu0 0.0
    %3212 = vmatprep.subr.mxu0 0.0
    %3213 = vmatpush1.msra.mxu0 0.0
    %3214 = vmatprep.subr.mxu0 0.0
    %3215 = vmatpush1.msra.mxu0 0.0
    %3216 = vmatprep.subr.mxu0 0.0
    %3217 = vmatpush1.msra.mxu0 0.0
    %3218 = vmatprep.subr.mxu0 0.0
    %3219 = vmatpush1.msra.mxu0 0.0
    %3220 = vmatprep.subr.mxu0 0.0
    %3221 = vmatpush1.msra.mxu0 0.0
    %3222 = vmatprep.subr.mxu0 0.0
    %3223 = vmatpush1.msra.mxu0 0.0
    %3224 = vmatprep.subr.mxu0 0.0
    %3225 = vmatpush1.msra.mxu0 0.0
    %3226 = vmatprep.subr.mxu0 0.0
    %3227 = vmatpush1.msra.mxu0 0.0
    %3228 = vmatprep.subr.mxu0 0.0
    %3229 = vmatpush1.msra.mxu0 0.0
    %3230 = vmatprep.subr.mxu0 0.0
    %3231 = vmatpush1.msra.mxu0 0.0
    %3232 = vmatprep.subr.mxu0 0.0
    %3233 = vmatpush1.msra.mxu0 0.0
    %3234 = vmatprep.subr.mxu0 0.0
    %3235 = vmatpush1.msra.mxu0 0.0
    %3236 = vmatprep.subr.mxu0 0.0
    %3237 = vmatpush1.msra.mxu0 0.0
    %3238 = vmatprep.subr.mxu0 0.0
    %3239 = vmatpush1.msra.mxu0 0.0
    %3240 = vmatprep.subr.mxu0 0.0
    %3241 = vmatpush1.msra.mxu0 0.0
    %3242 = vmatprep.mubr.f32.mxu0 0.0
    %3243 = vmatmul.mubr.f32.gmra.mrb[0].mxu0 %v3106
    %v3244 = vpop.f32.mrb[0].mxu0
    %v3245 = vadd.f32 0.0, %v3244
    %v3246 = vpop.f32.mrb[0].mxu0
    %v3247 = vadd.f32 0.0, %v3246
    %3248 = vdwg.mxu0
    %v3249 = vadd.f32 %v3102, %v3174
    %v3250 = vadd.f32 %v3103, %v3176
    %v3251 = vadd.f32 %v3104, %v3245
    %v3252 = vadd.f32 %v3105, %v3247
    %v3253 = vxor.u32 %v3249, 2147483648
    %v3254 = vmul.f32 %v3253, 1.442695
    %v3255 = vpow.pop %v3254
    %v3256 = vadd.f32 %v3255, 1.0
    %v3257 = vrcp.pop %v3256
    %v3258 = vmul.f32 1.0, %v3257
    %v3259 = vxor.u32 %v3250, 2147483648
    %v3260 = vmul.f32 %v3259, 1.442695
    %v3261 = vpow.pop %v3260
    %v3262 = vadd.f32 %v3261, 1.0
    %v3263 = vrcp.pop %v3262
    %v3264 = vmul.f32 1.0, %v3263
    %v3265 = vtanh.pop %v3251
    %v3266 = vxor.u32 %v3252, 2147483648
    %v3267 = vmul.f32 %v3266, 1.442695
    %v3268 = vpow.pop %v3267
    %v3269 = vadd.f32 %v3268, 1.0
    %v3270 = vrcp.pop %v3269
    %v3271 = vmul.f32 1.0, %v3270
    %v3272 = vld [vmem:[#allocation5] sm:$0xff]
    %v3273 = vmul.f32 %v3264, %v3272
    %v3274 = vmul.f32 %v3258, %v3265
    %v3275 = vadd.f32 %v3273, %v3274
    %v3276 = vtanh.pop %v3275
    %v3277 = vmul.f32 %v3271, %v3276
    %3278 = vst [vmem:[#allocation5] sm:$0xff] %v3275
    %3279 = vst [vmem:[#allocation4] sm:$0xff] %v3277
    %s3280 = scalar_lea.vmem %s4, 24
    %3281 = vst [vmem:[%s3280] sm:$0xff] %v3277
    %v3282 = vld [vmem:[%s1220] sm:$0xff]
    %v3283 = vld [vmem:[%s1220 + $0x8] sm:$0xff]
    %v3284 = vld [vmem:[%s1220 + $0x10] sm:$0xff]
    %v3285 = vld [vmem:[%s1220 + $0x18] sm:$0xff]
    %v3286 = vld [vmem:[#allocation4] sm:$0xff]
    %3287 = vmatprep.subr.mxu0 %v2500
    %3288 = vmatpush1.msra.mxu0 %v2499
    %3289 = vmatprep.subr.mxu0 %v2504
    %3290 = vmatpush1.msra.mxu0 %v2503
    %3291 = vmatprep.subr.mxu0 %v2508
    %3292 = vmatpush1.msra.mxu0 %v2507
    %3293 = vmatprep.subr.mxu0 %v2512
    %3294 = vmatpush1.msra.mxu0 %v2511
    %3295 = vmatprep.subr.mxu0 %v2516
    %3296 = vmatpush1.msra.mxu0 %v2515
    %3297 = vmatprep.subr.mxu0 %v2520
    %3298 = vmatpush1.msra.mxu0 %v2519
    %3299 = vmatprep.subr.mxu0 %v2524
    %3300 = vmatpush1.msra.mxu0 %v2523
    %3301 = vmatprep.subr.mxu0 %v2528
    %3302 = vmatpush1.msra.mxu0 %v2527
    %3303 = vmatprep.subr.mxu0 %v2532
    %3304 = vmatpush1.msra.mxu0 %v2531
    %3305 = vmatprep.subr.mxu0 %v2536
    %3306 = vmatpush1.msra.mxu0 %v2535
    %3307 = vmatprep.subr.mxu0 %v2540
    %3308 = vmatpush1.msra.mxu0 %v2539
    %3309 = vmatprep.subr.mxu0 %v2544
    %3310 = vmatpush1.msra.mxu0 %v2543
    %3311 = vmatprep.subr.mxu0 %v2548
    %3312 = vmatpush1.msra.mxu0 %v2547
    %3313 = vmatprep.subr.mxu0 %v2552
    %3314 = vmatpush1.msra.mxu0 %v2551
    %3315 = vmatprep.subr.mxu0 %v2556
    %3316 = vmatpush1.msra.mxu0 %v2555
    %3317 = vmatprep.subr.mxu0 %v2560
    %3318 = vmatpush1.msra.mxu0 %v2559
    %3319 = vmatprep.subr.mxu0 0.0
    %3320 = vmatpush1.msra.mxu0 0.0
    %3321 = vmatprep.subr.mxu0 0.0
    %3322 = vmatpush1.msra.mxu0 0.0
    %3323 = vmatprep.subr.mxu0 0.0
    %3324 = vmatpush1.msra.mxu0 0.0
    %3325 = vmatprep.subr.mxu0 0.0
    %3326 = vmatpush1.msra.mxu0 0.0
    %3327 = vmatprep.subr.mxu0 0.0
    %3328 = vmatpush1.msra.mxu0 0.0
    %3329 = vmatprep.subr.mxu0 0.0
    %3330 = vmatpush1.msra.mxu0 0.0
    %3331 = vmatprep.subr.mxu0 0.0
    %3332 = vmatpush1.msra.mxu0 0.0
    %3333 = vmatprep.subr.mxu0 0.0
    %3334 = vmatpush1.msra.mxu0 0.0
    %3335 = vmatprep.subr.mxu0 0.0
    %3336 = vmatpush1.msra.mxu0 0.0
    %3337 = vmatprep.subr.mxu0 0.0
    %3338 = vmatpush1.msra.mxu0 0.0
    %3339 = vmatprep.subr.mxu0 0.0
    %3340 = vmatpush1.msra.mxu0 0.0
    %3341 = vmatprep.subr.mxu0 0.0
    %3342 = vmatpush1.msra.mxu0 0.0
    %3343 = vmatprep.subr.mxu0 0.0
    %3344 = vmatpush1.msra.mxu0 0.0
    %3345 = vmatprep.subr.mxu0 0.0
    %3346 = vmatpush1.msra.mxu0 0.0
    %3347 = vmatprep.subr.mxu0 0.0
    %3348 = vmatpush1.msra.mxu0 0.0
    %3349 = vmatprep.subr.mxu0 0.0
    %3350 = vmatpush1.msra.mxu0 0.0
    %3351 = vmatprep.mubr.f32.mxu0 0.0
    %3352 = vmatmul.mubr.f32.gmra.mrb[0].mxu0 %v3286
    %v3353 = vpop.f32.mrb[0].mxu0
    %v3354 = vadd.f32 0.0, %v3353
    %v3355 = vpop.f32.mrb[0].mxu0
    %v3356 = vadd.f32 0.0, %v3355
    %3357 = vdwg.mxu0
    %3358 = vmatprep.subr.mxu0 %v2502
    %3359 = vmatpush1.msra.mxu0 %v2501
    %3360 = vmatprep.subr.mxu0 %v2506
    %3361 = vmatpush1.msra.mxu0 %v2505
    %3362 = vmatprep.subr.mxu0 %v2510
    %3363 = vmatpush1.msra.mxu0 %v2509
    %3364 = vmatprep.subr.mxu0 %v2514
    %3365 = vmatpush1.msra.mxu0 %v2513
    %3366 = vmatprep.subr.mxu0 %v2518
    %3367 = vmatpush1.msra.mxu0 %v2517
    %3368 = vmatprep.subr.mxu0 %v2522
    %3369 = vmatpush1.msra.mxu0 %v2521
    %3370 = vmatprep.subr.mxu0 %v2526
    %3371 = vmatpush1.msra.mxu0 %v2525
    %3372 = vmatprep.subr.mxu0 %v2530
    %3373 = vmatpush1.msra.mxu0 %v2529
    %3374 = vmatprep.subr.mxu0 %v2534
    %3375 = vmatpush1.msra.mxu0 %v2533
    %3376 = vmatprep.subr.mxu0 %v2538
    %3377 = vmatpush1.msra.mxu0 %v2537
    %3378 = vmatprep.subr.mxu0 %v2542
    %3379 = vmatpush1.msra.mxu0 %v2541
    %3380 = vmatprep.subr.mxu0 %v2546
    %3381 = vmatpush1.msra.mxu0 %v2545
    %3382 = vmatprep.subr.mxu0 %v2550
    %3383 = vmatpush1.msra.mxu0 %v2549
    %3384 = vmatprep.subr.mxu0 %v2554
    %3385 = vmatpush1.msra.mxu0 %v2553
    %3386 = vmatprep.subr.mxu0 %v2558
    %3387 = vmatpush1.msra.mxu0 %v2557
    %3388 = vmatprep.subr.mxu0 %v2562
    %3389 = vmatpush1.msra.mxu0 %v2561
    %3390 = vmatprep.subr.mxu0 0.0
    %3391 = vmatpush1.msra.mxu0 0.0
    %3392 = vmatprep.subr.mxu0 0.0
    %3393 = vmatpush1.msra.mxu0 0.0
    %3394 = vmatprep.subr.mxu0 0.0
    %3395 = vmatpush1.msra.mxu0 0.0
    %3396 = vmatprep.subr.mxu0 0.0
    %3397 = vmatpush1.msra.mxu0 0.0
    %3398 = vmatprep.subr.mxu0 0.0
    %3399 = vmatpush1.msra.mxu0 0.0
    %3400 = vmatprep.subr.mxu0 0.0
    %3401 = vmatpush1.msra.mxu0 0.0
    %3402 = vmatprep.subr.mxu0 0.0
    %3403 = vmatpush1.msra.mxu0 0.0
    %3404 = vmatprep.subr.mxu0 0.0
    %3405 = vmatpush1.msra.mxu0 0.0
    %3406 = vmatprep.subr.mxu0 0.0
    %3407 = vmatpush1.msra.mxu0 0.0
    %3408 = vmatprep.subr.mxu0 0.0
    %3409 = vmatpush1.msra.mxu0 0.0
    %3410 = vmatprep.subr.mxu0 0.0
    %3411 = vmatpush1.msra.mxu0 0.0
    %3412 = vmatprep.subr.mxu0 0.0
    %3413 = vmatpush1.msra.mxu0 0.0
    %3414 = vmatprep.subr.mxu0 0.0
    %3415 = vmatpush1.msra.mxu0 0.0
    %3416 = vmatprep.subr.mxu0 0.0
    %3417 = vmatpush1.msra.mxu0 0.0
    %3418 = vmatprep.subr.mxu0 0.0
    %3419 = vmatpush1.msra.mxu0 0.0
    %3420 = vmatprep.subr.mxu0 0.0
    %3421 = vmatpush1.msra.mxu0 0.0
    %3422 = vmatprep.mubr.f32.mxu0 0.0
    %3423 = vmatmul.mubr.f32.gmra.mrb[0].mxu0 %v3286
    %v3424 = vpop.f32.mrb[0].mxu0
    %v3425 = vadd.f32 0.0, %v3424
    %v3426 = vpop.f32.mrb[0].mxu0
    %v3427 = vadd.f32 0.0, %v3426
    %3428 = vdwg.mxu0
    %v3429 = vadd.f32 %v3282, %v3354
    %v3430 = vadd.f32 %v3283, %v3356
    %v3431 = vadd.f32 %v3284, %v3425
    %v3432 = vadd.f32 %v3285, %v3427
    %v3433 = vxor.u32 %v3429, 2147483648
    %v3434 = vmul.f32 %v3433, 1.442695
    %v3435 = vpow.pop %v3434
    %v3436 = vadd.f32 %v3435, 1.0
    %v3437 = vrcp.pop %v3436
    %v3438 = vmul.f32 1.0, %v3437
    %v3439 = vxor.u32 %v3430, 2147483648
    %v3440 = vmul.f32 %v3439, 1.442695
    %v3441 = vpow.pop %v3440
    %v3442 = vadd.f32 %v3441, 1.0
    %v3443 = vrcp.pop %v3442
    %v3444 = vmul.f32 1.0, %v3443
    %v3445 = vtanh.pop %v3431
    %v3446 = vxor.u32 %v3432, 2147483648
    %v3447 = vmul.f32 %v3446, 1.442695
    %v3448 = vpow.pop %v3447
    %v3449 = vadd.f32 %v3448, 1.0
    %v3450 = vrcp.pop %v3449
    %v3451 = vmul.f32 1.0, %v3450
    %v3452 = vld [vmem:[#allocation5] sm:$0xff]
    %v3453 = vmul.f32 %v3444, %v3452
    %v3454 = vmul.f32 %v3438, %v3445
    %v3455 = vadd.f32 %v3453, %v3454
    %v3456 = vtanh.pop %v3455
    %v3457 = vmul.f32 %v3451, %v3456
    %3458 = vst [vmem:[#allocation5] sm:$0xff] %v3455
    %3459 = vst [vmem:[#allocation4] sm:$0xff] %v3457
    %s3460 = scalar_lea.vmem %s4, 32
    %3461 = vst [vmem:[%s3460] sm:$0xff] %v3457
    %v3462 = vld [vmem:[%s1401] sm:$0xff]
    %v3463 = vld [vmem:[%s1401 + $0x8] sm:$0xff]
    %v3464 = vld [vmem:[%s1401 + $0x10] sm:$0xff]
    %v3465 = vld [vmem:[%s1401 + $0x18] sm:$0xff]
    %v3466 = vld [vmem:[#allocation4] sm:$0xff]
    %3467 = vmatprep.subr.mxu0 %v2500
    %3468 = vmatpush1.msra.mxu0 %v2499
    %3469 = vmatprep.subr.mxu0 %v2504
    %3470 = vmatpush1.msra.mxu0 %v2503
    %3471 = vmatprep.subr.mxu0 %v2508
    %3472 = vmatpush1.msra.mxu0 %v2507
    %3473 = vmatprep.subr.mxu0 %v2512
    %3474 = vmatpush1.msra.mxu0 %v2511
    %3475 = vmatprep.subr.mxu0 %v2516
    %3476 = vmatpush1.msra.mxu0 %v2515
    %3477 = vmatprep.subr.mxu0 %v2520
    %3478 = vmatpush1.msra.mxu0 %v2519
    %3479 = vmatprep.subr.mxu0 %v2524
    %3480 = vmatpush1.msra.mxu0 %v2523
    %3481 = vmatprep.subr.mxu0 %v2528
    %3482 = vmatpush1.msra.mxu0 %v2527
    %3483 = vmatprep.subr.mxu0 %v2532
    %3484 = vmatpush1.msra.mxu0 %v2531
    %3485 = vmatprep.subr.mxu0 %v2536
    %3486 = vmatpush1.msra.mxu0 %v2535
    %3487 = vmatprep.subr.mxu0 %v2540
    %3488 = vmatpush1.msra.mxu0 %v2539
    %3489 = vmatprep.subr.mxu0 %v2544
    %3490 = vmatpush1.msra.mxu0 %v2543
    %3491 = vmatprep.subr.mxu0 %v2548
    %3492 = vmatpush1.msra.mxu0 %v2547
    %3493 = vmatprep.subr.mxu0 %v2552
    %3494 = vmatpush1.msra.mxu0 %v2551
    %3495 = vmatprep.subr.mxu0 %v2556
    %3496 = vmatpush1.msra.mxu0 %v2555
    %3497 = vmatprep.subr.mxu0 %v2560
    %3498 = vmatpush1.msra.mxu0 %v2559
    %3499 = vmatprep.subr.mxu0 0.0
    %3500 = vmatpush1.msra.mxu0 0.0
    %3501 = vmatprep.subr.mxu0 0.0
    %3502 = vmatpush1.msra.mxu0 0.0
    %3503 = vmatprep.subr.mxu0 0.0
    %3504 = vmatpush1.msra.mxu0 0.0
    %3505 = vmatprep.subr.mxu0 0.0
    %3506 = vmatpush1.msra.mxu0 0.0
    %3507 = vmatprep.subr.mxu0 0.0
    %3508 = vmatpush1.msra.mxu0 0.0
    %3509 = vmatprep.subr.mxu0 0.0
    %3510 = vmatpush1.msra.mxu0 0.0
    %3511 = vmatprep.subr.mxu0 0.0
    %3512 = vmatpush1.msra.mxu0 0.0
    %3513 = vmatprep.subr.mxu0 0.0
    %3514 = vmatpush1.msra.mxu0 0.0
    %3515 = vmatprep.subr.mxu0 0.0
    %3516 = vmatpush1.msra.mxu0 0.0
    %3517 = vmatprep.subr.mxu0 0.0
    %3518 = vmatpush1.msra.mxu0 0.0
    %3519 = vmatprep.subr.mxu0 0.0
    %3520 = vmatpush1.msra.mxu0 0.0
    %3521 = vmatprep.subr.mxu0 0.0
    %3522 = vmatpush1.msra.mxu0 0.0
    %3523 = vmatprep.subr.mxu0 0.0
    %3524 = vmatpush1.msra.mxu0 0.0
    %3525 = vmatprep.subr.mxu0 0.0
    %3526 = vmatpush1.msra.mxu0 0.0
    %3527 = vmatprep.subr.mxu0 0.0
    %3528 = vmatpush1.msra.mxu0 0.0
    %3529 = vmatprep.subr.mxu0 0.0
    %3530 = vmatpush1.msra.mxu0 0.0
    %3531 = vmatprep.mubr.f32.mxu0 0.0
    %3532 = vmatmul.mubr.f32.gmra.mrb[0].mxu0 %v3466
    %v3533 = vpop.f32.mrb[0].mxu0
    %v3534 = vadd.f32 0.0, %v3533
    %v3535 = vpop.f32.mrb[0].mxu0
    %v3536 = vadd.f32 0.0, %v3535
    %3537 = vdwg.mxu0
    %3538 = vmatprep.subr.mxu0 %v2502
    %3539 = vmatpush1.msra.mxu0 %v2501
    %3540 = vmatprep.subr.mxu0 %v2506
    %3541 = vmatpush1.msra.mxu0 %v2505
    %3542 = vmatprep.subr.mxu0 %v2510
    %3543 = vmatpush1.msra.mxu0 %v2509
    %3544 = vmatprep.subr.mxu0 %v2514
    %3545 = vmatpush1.msra.mxu0 %v2513
    %3546 = vmatprep.subr.mxu0 %v2518
    %3547 = vmatpush1.msra.mxu0 %v2517
    %3548 = vmatprep.subr.mxu0 %v2522
    %3549 = vmatpush1.msra.mxu0 %v2521
    %3550 = vmatprep.subr.mxu0 %v2526
    %3551 = vmatpush1.msra.mxu0 %v2525
    %3552 = vmatprep.subr.mxu0 %v2530
    %3553 = vmatpush1.msra.mxu0 %v2529
    %3554 = vmatprep.subr.mxu0 %v2534
    %3555 = vmatpush1.msra.mxu0 %v2533
    %3556 = vmatprep.subr.mxu0 %v2538
    %3557 = vmatpush1.msra.mxu0 %v2537
    %3558 = vmatprep.subr.mxu0 %v2542
    %3559 = vmatpush1.msra.mxu0 %v2541
    %3560 = vmatprep.subr.mxu0 %v2546
    %3561 = vmatpush1.msra.mxu0 %v2545
    %3562 = vmatprep.subr.mxu0 %v2550
    %3563 = vmatpush1.msra.mxu0 %v2549
    %3564 = vmatprep.subr.mxu0 %v2554
    %3565 = vmatpush1.msra.mxu0 %v2553
    %3566 = vmatprep.subr.mxu0 %v2558
    %3567 = vmatpush1.msra.mxu0 %v2557
    %3568 = vmatprep.subr.mxu0 %v2562
    %3569 = vmatpush1.msra.mxu0 %v2561
    %3570 = vmatprep.subr.mxu0 0.0
    %3571 = vmatpush1.msra.mxu0 0.0
    %3572 = vmatprep.subr.mxu0 0.0
    %3573 = vmatpush1.msra.mxu0 0.0
    %3574 = vmatprep.subr.mxu0 0.0
    %3575 = vmatpush1.msra.mxu0 0.0
    %3576 = vmatprep.subr.mxu0 0.0
    %3577 = vmatpush1.msra.mxu0 0.0
    %3578 = vmatprep.subr.mxu0 0.0
    %3579 = vmatpush1.msra.mxu0 0.0
    %3580 = vmatprep.subr.mxu0 0.0
    %3581 = vmatpush1.msra.mxu0 0.0
    %3582 = vmatprep.subr.mxu0 0.0
    %3583 = vmatpush1.msra.mxu0 0.0
    %3584 = vmatprep.subr.mxu0 0.0
    %3585 = vmatpush1.msra.mxu0 0.0
    %3586 = vmatprep.subr.mxu0 0.0
    %3587 = vmatpush1.msra.mxu0 0.0
    %3588 = vmatprep.subr.mxu0 0.0
    %3589 = vmatpush1.msra.mxu0 0.0
    %3590 = vmatprep.subr.mxu0 0.0
    %3591 = vmatpush1.msra.mxu0 0.0
    %3592 = vmatprep.subr.mxu0 0.0
    %3593 = vmatpush1.msra.mxu0 0.0
    %3594 = vmatprep.subr.mxu0 0.0
    %3595 = vmatpush1.msra.mxu0 0.0
    %3596 = vmatprep.subr.mxu0 0.0
    %3597 = vmatpush1.msra.mxu0 0.0
    %3598 = vmatprep.subr.mxu0 0.0
    %3599 = vmatpush1.msra.mxu0 0.0
    %3600 = vmatprep.subr.mxu0 0.0
    %3601 = vmatpush1.msra.mxu0 0.0
    %3602 = vmatprep.mubr.f32.mxu0 0.0
    %3603 = vmatmul.mubr.f32.gmra.mrb[0].mxu0 %v3466
    %v3604 = vpop.f32.mrb[0].mxu0
    %v3605 = vadd.f32 0.0, %v3604
    %v3606 = vpop.f32.mrb[0].mxu0
    %v3607 = vadd.f32 0.0, %v3606
    %3608 = vdwg.mxu0
    %v3609 = vadd.f32 %v3462, %v3534
    %v3610 = vadd.f32 %v3463, %v3536
    %v3611 = vadd.f32 %v3464, %v3605
    %v3612 = vadd.f32 %v3465, %v3607
    %v3613 = vxor.u32 %v3609, 2147483648
    %v3614 = vmul.f32 %v3613, 1.442695
    %v3615 = vpow.pop %v3614
    %v3616 = vadd.f32 %v3615, 1.0
    %v3617 = vrcp.pop %v3616
    %v3618 = vmul.f32 1.0, %v3617
    %v3619 = vxor.u32 %v3610, 2147483648
    %v3620 = vmul.f32 %v3619, 1.442695
    %v3621 = vpow.pop %v3620
    %v3622 = vadd.f32 %v3621, 1.0
    %v3623 = vrcp.pop %v3622
    %v3624 = vmul.f32 1.0, %v3623
    %v3625 = vtanh.pop %v3611
    %v3626 = vxor.u32 %v3612, 2147483648
    %v3627 = vmul.f32 %v3626, 1.442695
    %v3628 = vpow.pop %v3627
    %v3629 = vadd.f32 %v3628, 1.0
    %v3630 = vrcp.pop %v3629
    %v3631 = vmul.f32 1.0, %v3630
    %v3632 = vld [vmem:[#allocation5] sm:$0xff]
    %v3633 = vmul.f32 %v3624, %v3632
    %v3634 = vmul.f32 %v3618, %v3625
    %v3635 = vadd.f32 %v3633, %v3634
    %v3636 = vtanh.pop %v3635
    %v3637 = vmul.f32 %v3631, %v3636
    %3638 = vst [vmem:[#allocation5] sm:$0xff] %v3635
    %3639 = vst [vmem:[#allocation4] sm:$0xff] %v3637
    %s3640 = scalar_lea.vmem %s4, 40
    %3641 = vst [vmem:[%s3640] sm:$0xff] %v3637
    %v3642 = vld [vmem:[%s1582] sm:$0xff]
    %v3643 = vld [vmem:[%s1582 + $0x8] sm:$0xff]
    %v3644 = vld [vmem:[%s1582 + $0x10] sm:$0xff]
    %v3645 = vld [vmem:[%s1582 + $0x18] sm:$0xff]
    %v3646 = vld [vmem:[#allocation4] sm:$0xff]
    %3647 = vmatprep.subr.mxu0 %v2500
    %3648 = vmatpush1.msra.mxu0 %v2499
    %3649 = vmatprep.subr.mxu0 %v2504
    %3650 = vmatpush1.msra.mxu0 %v2503
    %3651 = vmatprep.subr.mxu0 %v2508
    %3652 = vmatpush1.msra.mxu0 %v2507
    %3653 = vmatprep.subr.mxu0 %v2512
    %3654 = vmatpush1.msra.mxu0 %v2511
    %3655 = vmatprep.subr.mxu0 %v2516
    %3656 = vmatpush1.msra.mxu0 %v2515
    %3657 = vmatprep.subr.mxu0 %v2520
    %3658 = vmatpush1.msra.mxu0 %v2519
    %3659 = vmatprep.subr.mxu0 %v2524
    %3660 = vmatpush1.msra.mxu0 %v2523
    %3661 = vmatprep.subr.mxu0 %v2528
    %3662 = vmatpush1.msra.mxu0 %v2527
    %3663 = vmatprep.subr.mxu0 %v2532
    %3664 = vmatpush1.msra.mxu0 %v2531
    %3665 = vmatprep.subr.mxu0 %v2536
    %3666 = vmatpush1.msra.mxu0 %v2535
    %3667 = vmatprep.subr.mxu0 %v2540
    %3668 = vmatpush1.msra.mxu0 %v2539
    %3669 = vmatprep.subr.mxu0 %v2544
    %3670 = vmatpush1.msra.mxu0 %v2543
    %3671 = vmatprep.subr.mxu0 %v2548
    %3672 = vmatpush1.msra.mxu0 %v2547
    %3673 = vmatprep.subr.mxu0 %v2552
    %3674 = vmatpush1.msra.mxu0 %v2551
    %3675 = vmatprep.subr.mxu0 %v2556
    %3676 = vmatpush1.msra.mxu0 %v2555
    %3677 = vmatprep.subr.mxu0 %v2560
    %3678 = vmatpush1.msra.mxu0 %v2559
    %3679 = vmatprep.subr.mxu0 0.0
    %3680 = vmatpush1.msra.mxu0 0.0
    %3681 = vmatprep.subr.mxu0 0.0
    %3682 = vmatpush1.msra.mxu0 0.0
    %3683 = vmatprep.subr.mxu0 0.0
    %3684 = vmatpush1.msra.mxu0 0.0
    %3685 = vmatprep.subr.mxu0 0.0
    %3686 = vmatpush1.msra.mxu0 0.0
    %3687 = vmatprep.subr.mxu0 0.0
    %3688 = vmatpush1.msra.mxu0 0.0
    %3689 = vmatprep.subr.mxu0 0.0
    %3690 = vmatpush1.msra.mxu0 0.0
    %3691 = vmatprep.subr.mxu0 0.0
    %3692 = vmatpush1.msra.mxu0 0.0
    %3693 = vmatprep.subr.mxu0 0.0
    %3694 = vmatpush1.msra.mxu0 0.0
    %3695 = vmatprep.subr.mxu0 0.0
    %3696 = vmatpush1.msra.mxu0 0.0
    %3697 = vmatprep.subr.mxu0 0.0
    %3698 = vmatpush1.msra.mxu0 0.0
    %3699 = vmatprep.subr.mxu0 0.0
    %3700 = vmatpush1.msra.mxu0 0.0
    %3701 = vmatprep.subr.mxu0 0.0
    %3702 = vmatpush1.msra.mxu0 0.0
    %3703 = vmatprep.subr.mxu0 0.0
    %3704 = vmatpush1.msra.mxu0 0.0
    %3705 = vmatprep.subr.mxu0 0.0
    %3706 = vmatpush1.msra.mxu0 0.0
    %3707 = vmatprep.subr.mxu0 0.0
    %3708 = vmatpush1.msra.mxu0 0.0
    %3709 = vmatprep.subr.mxu0 0.0
    %3710 = vmatpush1.msra.mxu0 0.0
    %3711 = vmatprep.mubr.f32.mxu0 0.0
    %3712 = vmatmul.mubr.f32.gmra.mrb[0].mxu0 %v3646
    %v3713 = vpop.f32.mrb[0].mxu0
    %v3714 = vadd.f32 0.0, %v3713
    %v3715 = vpop.f32.mrb[0].mxu0
    %v3716 = vadd.f32 0.0, %v3715
    %3717 = vdwg.mxu0
    %3718 = vmatprep.subr.mxu0 %v2502
    %3719 = vmatpush1.msra.mxu0 %v2501
    %3720 = vmatprep.subr.mxu0 %v2506
    %3721 = vmatpush1.msra.mxu0 %v2505
    %3722 = vmatprep.subr.mxu0 %v2510
    %3723 = vmatpush1.msra.mxu0 %v2509
    %3724 = vmatprep.subr.mxu0 %v2514
    %3725 = vmatpush1.msra.mxu0 %v2513
    %3726 = vmatprep.subr.mxu0 %v2518
    %3727 = vmatpush1.msra.mxu0 %v2517
    %3728 = vmatprep.subr.mxu0 %v2522
    %3729 = vmatpush1.msra.mxu0 %v2521
    %3730 = vmatprep.subr.mxu0 %v2526
    %3731 = vmatpush1.msra.mxu0 %v2525
    %3732 = vmatprep.subr.mxu0 %v2530
    %3733 = vmatpush1.msra.mxu0 %v2529
    %3734 = vmatprep.subr.mxu0 %v2534
    %3735 = vmatpush1.msra.mxu0 %v2533
    %3736 = vmatprep.subr.mxu0 %v2538
    %3737 = vmatpush1.msra.mxu0 %v2537
    %3738 = vmatprep.subr.mxu0 %v2542
    %3739 = vmatpush1.msra.mxu0 %v2541
    %3740 = vmatprep.subr.mxu0 %v2546
    %3741 = vmatpush1.msra.mxu0 %v2545
    %3742 = vmatprep.subr.mxu0 %v2550
    %3743 = vmatpush1.msra.mxu0 %v2549
    %3744 = vmatprep.subr.mxu0 %v2554
    %3745 = vmatpush1.msra.mxu0 %v2553
    %3746 = vmatprep.subr.mxu0 %v2558
    %3747 = vmatpush1.msra.mxu0 %v2557
    %3748 = vmatprep.subr.mxu0 %v2562
    %3749 = vmatpush1.msra.mxu0 %v2561
    %3750 = vmatprep.subr.mxu0 0.0
    %3751 = vmatpush1.msra.mxu0 0.0
    %3752 = vmatprep.subr.mxu0 0.0
    %3753 = vmatpush1.msra.mxu0 0.0
    %3754 = vmatprep.subr.mxu0 0.0
    %3755 = vmatpush1.msra.mxu0 0.0
    %3756 = vmatprep.subr.mxu0 0.0
    %3757 = vmatpush1.msra.mxu0 0.0
    %3758 = vmatprep.subr.mxu0 0.0
    %3759 = vmatpush1.msra.mxu0 0.0
    %3760 = vmatprep.subr.mxu0 0.0
    %3761 = vmatpush1.msra.mxu0 0.0
    %3762 = vmatprep.subr.mxu0 0.0
    %3763 = vmatpush1.msra.mxu0 0.0
    %3764 = vmatprep.subr.mxu0 0.0
    %3765 = vmatpush1.msra.mxu0 0.0
    %3766 = vmatprep.subr.mxu0 0.0
    %3767 = vmatpush1.msra.mxu0 0.0
    %3768 = vmatprep.subr.mxu0 0.0
    %3769 = vmatpush1.msra.mxu0 0.0
    %3770 = vmatprep.subr.mxu0 0.0
    %3771 = vmatpush1.msra.mxu0 0.0
    %3772 = vmatprep.subr.mxu0 0.0
    %3773 = vmatpush1.msra.mxu0 0.0
    %3774 = vmatprep.subr.mxu0 0.0
    %3775 = vmatpush1.msra.mxu0 0.0
    %3776 = vmatprep.subr.mxu0 0.0
    %3777 = vmatpush1.msra.mxu0 0.0
    %3778 = vmatprep.subr.mxu0 0.0
    %3779 = vmatpush1.msra.mxu0 0.0
    %3780 = vmatprep.subr.mxu0 0.0
    %3781 = vmatpush1.msra.mxu0 0.0
    %3782 = vmatprep.mubr.f32.mxu0 0.0
    %3783 = vmatmul.mubr.f32.gmra.mrb[0].mxu0 %v3646
    %v3784 = vpop.f32.mrb[0].mxu0
    %v3785 = vadd.f32 0.0, %v3784
    %v3786 = vpop.f32.mrb[0].mxu0
    %v3787 = vadd.f32 0.0, %v3786
    %3788 = vdwg.mxu0
    %v3789 = vadd.f32 %v3642, %v3714
    %v3790 = vadd.f32 %v3643, %v3716
    %v3791 = vadd.f32 %v3644, %v3785
    %v3792 = vadd.f32 %v3645, %v3787
    %v3793 = vxor.u32 %v3789, 2147483648
    %v3794 = vmul.f32 %v3793, 1.442695
    %v3795 = vpow.pop %v3794
    %v3796 = vadd.f32 %v3795, 1.0
    %v3797 = vrcp.pop %v3796
    %v3798 = vmul.f32 1.0, %v3797
    %v3799 = vxor.u32 %v3790, 2147483648
    %v3800 = vmul.f32 %v3799, 1.442695
    %v3801 = vpow.pop %v3800
    %v3802 = vadd.f32 %v3801, 1.0
    %v3803 = vrcp.pop %v3802
    %v3804 = vmul.f32 1.0, %v3803
    %v3805 = vtanh.pop %v3791
    %v3806 = vxor.u32 %v3792, 2147483648
    %v3807 = vmul.f32 %v3806, 1.442695
    %v3808 = vpow.pop %v3807
    %v3809 = vadd.f32 %v3808, 1.0
    %v3810 = vrcp.pop %v3809
    %v3811 = vmul.f32 1.0, %v3810
    %v3812 = vld [vmem:[#allocation5] sm:$0xff]
    %v3813 = vmul.f32 %v3804, %v3812
    %v3814 = vmul.f32 %v3798, %v3805
    %v3815 = vadd.f32 %v3813, %v3814
    %v3816 = vtanh.pop %v3815
    %v3817 = vmul.f32 %v3811, %v3816
    %3818 = vst [vmem:[#allocation5] sm:$0xff] %v3815
    %3819 = vst [vmem:[#allocation4] sm:$0xff] %v3817
    %s3820 = scalar_lea.vmem %s4, 48
    %3821 = vst [vmem:[%s3820] sm:$0xff] %v3817
    %v3822 = vld [vmem:[%s1763] sm:$0xff]
    %v3823 = vld [vmem:[%s1763 + $0x8] sm:$0xff]
    %v3824 = vld [vmem:[%s1763 + $0x10] sm:$0xff]
    %v3825 = vld [vmem:[%s1763 + $0x18] sm:$0xff]
    %v3826 = vld [vmem:[#allocation4] sm:$0xff]
    %3827 = vmatprep.subr.mxu0 %v2500
    %3828 = vmatpush1.msra.mxu0 %v2499
    %3829 = vmatprep.subr.mxu0 %v2504
    %3830 = vmatpush1.msra.mxu0 %v2503
    %3831 = vmatprep.subr.mxu0 %v2508
    %3832 = vmatpush1.msra.mxu0 %v2507
    %3833 = vmatprep.subr.mxu0 %v2512
    %3834 = vmatpush1.msra.mxu0 %v2511
    %3835 = vmatprep.subr.mxu0 %v2516
    %3836 = vmatpush1.msra.mxu0 %v2515
    %3837 = vmatprep.subr.mxu0 %v2520
    %3838 = vmatpush1.msra.mxu0 %v2519
    %3839 = vmatprep.subr.mxu0 %v2524
    %3840 = vmatpush1.msra.mxu0 %v2523
    %3841 = vmatprep.subr.mxu0 %v2528
    %3842 = vmatpush1.msra.mxu0 %v2527
    %3843 = vmatprep.subr.mxu0 %v2532
    %3844 = vmatpush1.msra.mxu0 %v2531
    %3845 = vmatprep.subr.mxu0 %v2536
    %3846 = vmatpush1.msra.mxu0 %v2535
    %3847 = vmatprep.subr.mxu0 %v2540
    %3848 = vmatpush1.msra.mxu0 %v2539
    %3849 = vmatprep.subr.mxu0 %v2544
    %3850 = vmatpush1.msra.mxu0 %v2543
    %3851 = vmatprep.subr.mxu0 %v2548
    %3852 = vmatpush1.msra.mxu0 %v2547
    %3853 = vmatprep.subr.mxu0 %v2552
    %3854 = vmatpush1.msra.mxu0 %v2551
    %3855 = vmatprep.subr.mxu0 %v2556
    %3856 = vmatpush1.msra.mxu0 %v2555
    %3857 = vmatprep.subr.mxu0 %v2560
    %3858 = vmatpush1.msra.mxu0 %v2559
    %3859 = vmatprep.subr.mxu0 0.0
    %3860 = vmatpush1.msra.mxu0 0.0
    %3861 = vmatprep.subr.mxu0 0.0
    %3862 = vmatpush1.msra.mxu0 0.0
    %3863 = vmatprep.subr.mxu0 0.0
    %3864 = vmatpush1.msra.mxu0 0.0
    %3865 = vmatprep.subr.mxu0 0.0
    %3866 = vmatpush1.msra.mxu0 0.0
    %3867 = vmatprep.subr.mxu0 0.0
    %3868 = vmatpush1.msra.mxu0 0.0
    %3869 = vmatprep.subr.mxu0 0.0
    %3870 = vmatpush1.msra.mxu0 0.0
    %3871 = vmatprep.subr.mxu0 0.0
    %3872 = vmatpush1.msra.mxu0 0.0
    %3873 = vmatprep.subr.mxu0 0.0
    %3874 = vmatpush1.msra.mxu0 0.0
    %3875 = vmatprep.subr.mxu0 0.0
    %3876 = vmatpush1.msra.mxu0 0.0
    %3877 = vmatprep.subr.mxu0 0.0
    %3878 = vmatpush1.msra.mxu0 0.0
    %3879 = vmatprep.subr.mxu0 0.0
    %3880 = vmatpush1.msra.mxu0 0.0
    %3881 = vmatprep.subr.mxu0 0.0
    %3882 = vmatpush1.msra.mxu0 0.0
    %3883 = vmatprep.subr.mxu0 0.0
    %3884 = vmatpush1.msra.mxu0 0.0
    %3885 = vmatprep.subr.mxu0 0.0
    %3886 = vmatpush1.msra.mxu0 0.0
    %3887 = vmatprep.subr.mxu0 0.0
    %3888 = vmatpush1.msra.mxu0 0.0
    %3889 = vmatprep.subr.mxu0 0.0
    %3890 = vmatpush1.msra.mxu0 0.0
    %3891 = vmatprep.mubr.f32.mxu0 0.0
    %3892 = vmatmul.mubr.f32.gmra.mrb[0].mxu0 %v3826
    %v3893 = vpop.f32.mrb[0].mxu0
    %v3894 = vadd.f32 0.0, %v3893
    %v3895 = vpop.f32.mrb[0].mxu0
    %v3896 = vadd.f32 0.0, %v3895
    %3897 = vdwg.mxu0
    %3898 = vmatprep.subr.mxu0 %v2502
    %3899 = vmatpush1.msra.mxu0 %v2501
    %3900 = vmatprep.subr.mxu0 %v2506
    %3901 = vmatpush1.msra.mxu0 %v2505
    %3902 = vmatprep.subr.mxu0 %v2510
    %3903 = vmatpush1.msra.mxu0 %v2509
    %3904 = vmatprep.subr.mxu0 %v2514
    %3905 = vmatpush1.msra.mxu0 %v2513
    %3906 = vmatprep.subr.mxu0 %v2518
    %3907 = vmatpush1.msra.mxu0 %v2517
    %3908 = vmatprep.subr.mxu0 %v2522
    %3909 = vmatpush1.msra.mxu0 %v2521
    %3910 = vmatprep.subr.mxu0 %v2526
    %3911 = vmatpush1.msra.mxu0 %v2525
    %3912 = vmatprep.subr.mxu0 %v2530
    %3913 = vmatpush1.msra.mxu0 %v2529
    %3914 = vmatprep.subr.mxu0 %v2534
    %3915 = vmatpush1.msra.mxu0 %v2533
    %3916 = vmatprep.subr.mxu0 %v2538
    %3917 = vmatpush1.msra.mxu0 %v2537
    %3918 = vmatprep.subr.mxu0 %v2542
    %3919 = vmatpush1.msra.mxu0 %v2541
    %3920 = vmatprep.subr.mxu0 %v2546
    %3921 = vmatpush1.msra.mxu0 %v2545
    %3922 = vmatprep.subr.mxu0 %v2550
    %3923 = vmatpush1.msra.mxu0 %v2549
    %3924 = vmatprep.subr.mxu0 %v2554
    %3925 = vmatpush1.msra.mxu0 %v2553
    %3926 = vmatprep.subr.mxu0 %v2558
    %3927 = vmatpush1.msra.mxu0 %v2557
    %3928 = vmatprep.subr.mxu0 %v2562
    %3929 = vmatpush1.msra.mxu0 %v2561
    %3930 = vmatprep.subr.mxu0 0.0
    %3931 = vmatpush1.msra.mxu0 0.0
    %3932 = vmatprep.subr.mxu0 0.0
    %3933 = vmatpush1.msra.mxu0 0.0
    %3934 = vmatprep.subr.mxu0 0.0
    %3935 = vmatpush1.msra.mxu0 0.0
    %3936 = vmatprep.subr.mxu0 0.0
    %3937 = vmatpush1.msra.mxu0 0.0
    %3938 = vmatprep.subr.mxu0 0.0
    %3939 = vmatpush1.msra.mxu0 0.0
    %3940 = vmatprep.subr.mxu0 0.0
    %3941 = vmatpush1.msra.mxu0 0.0
    %3942 = vmatprep.subr.mxu0 0.0
    %3943 = vmatpush1.msra.mxu0 0.0
    %3944 = vmatprep.subr.mxu0 0.0
    %3945 = vmatpush1.msra.mxu0 0.0
    %3946 = vmatprep.subr.mxu0 0.0
    %3947 = vmatpush1.msra.mxu0 0.0
    %3948 = vmatprep.subr.mxu0 0.0
    %3949 = vmatpush1.msra.mxu0 0.0
    %3950 = vmatprep.subr.mxu0 0.0
    %3951 = vmatpush1.msra.mxu0 0.0
    %3952 = vmatprep.subr.mxu0 0.0
    %3953 = vmatpush1.msra.mxu0 0.0
    %3954 = vmatprep.subr.mxu0 0.0
    %3955 = vmatpush1.msra.mxu0 0.0
    %3956 = vmatprep.subr.mxu0 0.0
    %3957 = vmatpush1.msra.mxu0 0.0
    %3958 = vmatprep.subr.mxu0 0.0
    %3959 = vmatpush1.msra.mxu0 0.0
    %3960 = vmatprep.subr.mxu0 0.0
    %3961 = vmatpush1.msra.mxu0 0.0
    %3962 = vmatprep.mubr.f32.mxu0 0.0
    %3963 = vmatmul.mubr.f32.gmra.mrb[0].mxu0 %v3826
    %v3964 = vpop.f32.mrb[0].mxu0
    %v3965 = vadd.f32 0.0, %v3964
    %v3966 = vpop.f32.mrb[0].mxu0
    %v3967 = vadd.f32 0.0, %v3966
    %3968 = vdwg.mxu0
    %v3969 = vadd.f32 %v3822, %v3894
    %v3970 = vadd.f32 %v3823, %v3896
    %v3971 = vadd.f32 %v3824, %v3965
    %v3972 = vadd.f32 %v3825, %v3967
    %v3973 = vxor.u32 %v3969, 2147483648
    %v3974 = vmul.f32 %v3973, 1.442695
    %v3975 = vpow.pop %v3974
    %v3976 = vadd.f32 %v3975, 1.0
    %v3977 = vrcp.pop %v3976
    %v3978 = vmul.f32 1.0, %v3977
    %v3979 = vxor.u32 %v3970, 2147483648
    %v3980 = vmul.f32 %v3979, 1.442695
    %v3981 = vpow.pop %v3980
    %v3982 = vadd.f32 %v3981, 1.0
    %v3983 = vrcp.pop %v3982
    %v3984 = vmul.f32 1.0, %v3983
    %v3985 = vtanh.pop %v3971
    %v3986 = vxor.u32 %v3972, 2147483648
    %v3987 = vmul.f32 %v3986, 1.442695
    %v3988 = vpow.pop %v3987
    %v3989 = vadd.f32 %v3988, 1.0
    %v3990 = vrcp.pop %v3989
    %v3991 = vmul.f32 1.0, %v3990
    %v3992 = vld [vmem:[#allocation5] sm:$0xff]
    %v3993 = vmul.f32 %v3984, %v3992
    %v3994 = vmul.f32 %v3978, %v3985
    %v3995 = vadd.f32 %v3993, %v3994
    %v3996 = vtanh.pop %v3995
    %v3997 = vmul.f32 %v3991, %v3996
    %3998 = vst [vmem:[#allocation5] sm:$0xff] %v3995
    %3999 = vst [vmem:[#allocation4] sm:$0xff] %v3997
    %s4000 = scalar_lea.vmem %s4, 56
    %4001 = vst [vmem:[%s4000] sm:$0xff] %v3997
    %v4002 = vld [vmem:[%s1944] sm:$0xff]
    %v4003 = vld [vmem:[%s1944 + $0x8] sm:$0xff]
    %v4004 = vld [vmem:[%s1944 + $0x10] sm:$0xff]
    %v4005 = vld [vmem:[%s1944 + $0x18] sm:$0xff]
    %v4006 = vld [vmem:[#allocation4] sm:$0xff]
    %4007 = vmatprep.subr.mxu0 %v2500
    %4008 = vmatpush1.msra.mxu0 %v2499
    %4009 = vmatprep.subr.mxu0 %v2504
    %4010 = vmatpush1.msra.mxu0 %v2503
    %4011 = vmatprep.subr.mxu0 %v2508
    %4012 = vmatpush1.msra.mxu0 %v2507
    %4013 = vmatprep.subr.mxu0 %v2512
    %4014 = vmatpush1.msra.mxu0 %v2511
    %4015 = vmatprep.subr.mxu0 %v2516
    %4016 = vmatpush1.msra.mxu0 %v2515
    %4017 = vmatprep.subr.mxu0 %v2520
    %4018 = vmatpush1.msra.mxu0 %v2519
    %4019 = vmatprep.subr.mxu0 %v2524
    %4020 = vmatpush1.msra.mxu0 %v2523
    %4021 = vmatprep.subr.mxu0 %v2528
    %4022 = vmatpush1.msra.mxu0 %v2527
    %4023 = vmatprep.subr.mxu0 %v2532
    %4024 = vmatpush1.msra.mxu0 %v2531
    %4025 = vmatprep.subr.mxu0 %v2536
    %4026 = vmatpush1.msra.mxu0 %v2535
    %4027 = vmatprep.subr.mxu0 %v2540
    %4028 = vmatpush1.msra.mxu0 %v2539
    %4029 = vmatprep.subr.mxu0 %v2544
    %4030 = vmatpush1.msra.mxu0 %v2543
    %4031 = vmatprep.subr.mxu0 %v2548
    %4032 = vmatpush1.msra.mxu0 %v2547
    %4033 = vmatprep.subr.mxu0 %v2552
    %4034 = vmatpush1.msra.mxu0 %v2551
    %4035 = vmatprep.subr.mxu0 %v2556
    %4036 = vmatpush1.msra.mxu0 %v2555
    %4037 = vmatprep.subr.mxu0 %v2560
    %4038 = vmatpush1.msra.mxu0 %v2559
    %4039 = vmatprep.subr.mxu0 0.0
    %4040 = vmatpush1.msra.mxu0 0.0
    %4041 = vmatprep.subr.mxu0 0.0
    %4042 = vmatpush1.msra.mxu0 0.0
    %4043 = vmatprep.subr.mxu0 0.0
    %4044 = vmatpush1.msra.mxu0 0.0
    %4045 = vmatprep.subr.mxu0 0.0
    %4046 = vmatpush1.msra.mxu0 0.0
    %4047 = vmatprep.subr.mxu0 0.0
    %4048 = vmatpush1.msra.mxu0 0.0
    %4049 = vmatprep.subr.mxu0 0.0
    %4050 = vmatpush1.msra.mxu0 0.0
    %4051 = vmatprep.subr.mxu0 0.0
    %4052 = vmatpush1.msra.mxu0 0.0
    %4053 = vmatprep.subr.mxu0 0.0
    %4054 = vmatpush1.msra.mxu0 0.0
    %4055 = vmatprep.subr.mxu0 0.0
    %4056 = vmatpush1.msra.mxu0 0.0
    %4057 = vmatprep.subr.mxu0 0.0
    %4058 = vmatpush1.msra.mxu0 0.0
    %4059 = vmatprep.subr.mxu0 0.0
    %4060 = vmatpush1.msra.mxu0 0.0
    %4061 = vmatprep.subr.mxu0 0.0
    %4062 = vmatpush1.msra.mxu0 0.0
    %4063 = vmatprep.subr.mxu0 0.0
    %4064 = vmatpush1.msra.mxu0 0.0
    %4065 = vmatprep.subr.mxu0 0.0
    %4066 = vmatpush1.msra.mxu0 0.0
    %4067 = vmatprep.subr.mxu0 0.0
    %4068 = vmatpush1.msra.mxu0 0.0
    %4069 = vmatprep.subr.mxu0 0.0
    %4070 = vmatpush1.msra.mxu0 0.0
    %4071 = vmatprep.mubr.f32.mxu0 0.0
    %4072 = vmatmul.mubr.f32.gmra.mrb[0].mxu0 %v4006
    %v4073 = vpop.f32.mrb[0].mxu0
    %v4074 = vadd.f32 0.0, %v4073
    %v4075 = vpop.f32.mrb[0].mxu0
    %v4076 = vadd.f32 0.0, %v4075
    %4077 = vdwg.mxu0
    %4078 = vmatprep.subr.mxu0 %v2502
    %4079 = vmatpush1.msra.mxu0 %v2501
    %4080 = vmatprep.subr.mxu0 %v2506
    %4081 = vmatpush1.msra.mxu0 %v2505
    %4082 = vmatprep.subr.mxu0 %v2510
    %4083 = vmatpush1.msra.mxu0 %v2509
    %4084 = vmatprep.subr.mxu0 %v2514
    %4085 = vmatpush1.msra.mxu0 %v2513
    %4086 = vmatprep.subr.mxu0 %v2518
    %4087 = vmatpush1.msra.mxu0 %v2517
    %4088 = vmatprep.subr.mxu0 %v2522
    %4089 = vmatpush1.msra.mxu0 %v2521
    %4090 = vmatprep.subr.mxu0 %v2526
    %4091 = vmatpush1.msra.mxu0 %v2525
    %4092 = vmatprep.subr.mxu0 %v2530
    %4093 = vmatpush1.msra.mxu0 %v2529
    %4094 = vmatprep.subr.mxu0 %v2534
    %4095 = vmatpush1.msra.mxu0 %v2533
    %4096 = vmatprep.subr.mxu0 %v2538
    %4097 = vmatpush1.msra.mxu0 %v2537
    %4098 = vmatprep.subr.mxu0 %v2542
    %4099 = vmatpush1.msra.mxu0 %v2541
    %4100 = vmatprep.subr.mxu0 %v2546
    %4101 = vmatpush1.msra.mxu0 %v2545
    %4102 = vmatprep.subr.mxu0 %v2550
    %4103 = vmatpush1.msra.mxu0 %v2549
    %4104 = vmatprep.subr.mxu0 %v2554
    %4105 = vmatpush1.msra.mxu0 %v2553
    %4106 = vmatprep.subr.mxu0 %v2558
    %4107 = vmatpush1.msra.mxu0 %v2557
    %4108 = vmatprep.subr.mxu0 %v2562
    %4109 = vmatpush1.msra.mxu0 %v2561
    %4110 = vmatprep.subr.mxu0 0.0
    %4111 = vmatpush1.msra.mxu0 0.0
    %4112 = vmatprep.subr.mxu0 0.0
    %4113 = vmatpush1.msra.mxu0 0.0
    %4114 = vmatprep.subr.mxu0 0.0
    %4115 = vmatpush1.msra.mxu0 0.0
    %4116 = vmatprep.subr.mxu0 0.0
    %4117 = vmatpush1.msra.mxu0 0.0
    %4118 = vmatprep.subr.mxu0 0.0
    %4119 = vmatpush1.msra.mxu0 0.0
    %4120 = vmatprep.subr.mxu0 0.0
    %4121 = vmatpush1.msra.mxu0 0.0
    %4122 = vmatprep.subr.mxu0 0.0
    %4123 = vmatpush1.msra.mxu0 0.0
    %4124 = vmatprep.subr.mxu0 0.0
    %4125 = vmatpush1.msra.mxu0 0.0
    %4126 = vmatprep.subr.mxu0 0.0
    %4127 = vmatpush1.msra.mxu0 0.0
    %4128 = vmatprep.subr.mxu0 0.0
    %4129 = vmatpush1.msra.mxu0 0.0
    %4130 = vmatprep.subr.mxu0 0.0
    %4131 = vmatpush1.msra.mxu0 0.0
    %4132 = vmatprep.subr.mxu0 0.0
    %4133 = vmatpush1.msra.mxu0 0.0
    %4134 = vmatprep.subr.mxu0 0.0
    %4135 = vmatpush1.msra.mxu0 0.0
    %4136 = vmatprep.subr.mxu0 0.0
    %4137 = vmatpush1.msra.mxu0 0.0
    %4138 = vmatprep.subr.mxu0 0.0
    %4139 = vmatpush1.msra.mxu0 0.0
    %4140 = vmatprep.subr.mxu0 0.0
    %4141 = vmatpush1.msra.mxu0 0.0
    %4142 = vmatprep.mubr.f32.mxu0 0.0
    %4143 = vmatmul.mubr.f32.gmra.mrb[0].mxu0 %v4006
    %v4144 = vpop.f32.mrb[0].mxu0
    %v4145 = vadd.f32 0.0, %v4144
    %v4146 = vpop.f32.mrb[0].mxu0
    %v4147 = vadd.f32 0.0, %v4146
    %4148 = vdwg.mxu0
    %v4149 = vadd.f32 %v4002, %v4074
    %v4150 = vadd.f32 %v4003, %v4076
    %v4151 = vadd.f32 %v4004, %v4145
    %v4152 = vadd.f32 %v4005, %v4147
    %v4153 = vxor.u32 %v4149, 2147483648
    %v4154 = vmul.f32 %v4153, 1.442695
    %v4155 = vpow.pop %v4154
    %v4156 = vadd.f32 %v4155, 1.0
    %v4157 = vrcp.pop %v4156
    %v4158 = vmul.f32 1.0, %v4157
    %v4159 = vxor.u32 %v4150, 2147483648
    %v4160 = vmul.f32 %v4159, 1.442695
    %v4161 = vpow.pop %v4160
    %v4162 = vadd.f32 %v4161, 1.0
    %v4163 = vrcp.pop %v4162
    %v4164 = vmul.f32 1.0, %v4163
    %v4165 = vtanh.pop %v4151
    %v4166 = vxor.u32 %v4152, 2147483648
    %v4167 = vmul.f32 %v4166, 1.442695
    %v4168 = vpow.pop %v4167
    %v4169 = vadd.f32 %v4168, 1.0
    %v4170 = vrcp.pop %v4169
    %v4171 = vmul.f32 1.0, %v4170
    %v4172 = vld [vmem:[#allocation5] sm:$0xff]
    %v4173 = vmul.f32 %v4164, %v4172
    %v4174 = vmul.f32 %v4158, %v4165
    %v4175 = vadd.f32 %v4173, %v4174
    %v4176 = vtanh.pop %v4175
    %v4177 = vmul.f32 %v4171, %v4176
    %4178 = vst [vmem:[#allocation5] sm:$0xff] %v4175
    %4179 = vst [vmem:[#allocation4] sm:$0xff] %v4177
    %s4180 = scalar_lea.vmem %s4, 64
    %4181 = vst [vmem:[%s4180] sm:$0xff] %v4177
    // Predicated region
    $region26: #{decoder_forward.2} parent=1 // pred_check
      _
    $region27: #{decoder_forward.2} parent=1 // pred_check_branch
      %4183 = sbr.rel (0) target = $region29
    $region28: #{decoder_forward.2} parent=1 // pred_region
      _
    $region29: #{decoder_forward.2} parent=1 // pred_fallthru
      _
    // Predicated region
    $region30: #{decoder_forward.2} parent=1 // pred_check
      _
    $region31: #{decoder_forward.2} parent=1 // pred_check_branch
      %4185 = sbr.rel (0) target = $region33
    $region32: #{decoder_forward.2} parent=1 // pred_region
      _
    $region33: #{decoder_forward.2} parent=1 // pred_fallthru
      _
    %4186 = vsyncpa [#allocation7], 1
    %4187 = vsyncpa [#allocation9], 1

</llo_original>
